<compile_context>
chip_gen: v6e
topology: v6e:2x2x1
jax: 0.10.0
libtpu: 0.0.40
codegen_flags: <defaults>
</compile_context>

<pallas_src>
import math
from functools import partial

import jax
import jax.numpy as jnp
from jax.experimental import pallas as pl
from jax.experimental.pallas import tpu as pltpu


# ------------------------- small in-kernel helpers --------------------------

def _ln_rows(x, g, b, eps):
    """LayerNorm over the last axis of a [rows, H] tile (f32)."""
    mean = jnp.mean(x, axis=-1, keepdims=True)
    xc = x - mean
    var = jnp.mean(xc * xc, axis=-1, keepdims=True)
    return xc * jax.lax.rsqrt(var + eps) * g + b


def _key_scores(x, key):
    """x[rows,Cin] @ key[P,Cin]^T / sqrt(Cin); bf16 MXU operands, f32 accumulate."""
    scale = 1.0 / math.sqrt(x.shape[-1])
    return jax.lax.dot_general(
        x.astype(key.dtype), key, (((1,), (1,)), ((), ())),
        preferred_element_type=jnp.float32) * scale


def _gelu_l2_value(scores, val, *, slots):
    """gelu_l2_norm(scores) @ val  (Tokenformer norm_activation_type)."""
    g = jax.nn.gelu(scores, approximate=True)
    ss = jnp.sum(g * g, axis=-1, keepdims=True)
    # rsqrt (EUP) instead of sqrt+divide; eps avoids NaN on all-zero rows.
    w = g * jax.lax.rsqrt(ss + 1e-12) * jnp.float32(math.sqrt(slots))
    return jnp.dot(w.astype(val.dtype), val, preferred_element_type=jnp.float32)


def _choose_tile(n, target):
    """Largest MXU/VMEM-friendly sequence tile that divides n."""
    if n <= target:
        return n
    for t in (target, 256, 128, 64, 32, 16, 8):
        if n % t == 0:
            return t
    return n


def _vmem_limit_bytes():
    """Per-generation scoped-VMEM budget (v5e/v6e: 128 MiB phys, v7x: 64 MiB)."""
    try:
        cap = int(pltpu.get_tpu_info().vmem_capacity_bytes)
    except Exception:  # interpret mode / older jax: conservative default
        cap = 64 * 1024 * 1024
    return max(32 * 1024 * 1024, min(int(cap * 0.75), 100 * 1024 * 1024))


# ----------------- Kernel A: LN1 + Q/K/V Pattention + rotary -----------------

def _ln_qkv_rotary_kernel(x_ref, g_ref, b_ref, key_ref, val_ref, cos_ref, sin_ref,
                          q_ref, k_ref, v_ref, *, num_heads, slots, eps):
    x = x_ref[0]                                        # [TS, H] f32
    H = x.shape[-1]
    HD = H // num_heads
    HD2 = HD // 2
    P = slots

    normed = _ln_rows(x, g_ref[...], b_ref[...], eps)   # [TS, H] f32
    # One stacked bf16 key matmul for Q/K/V: [TS, 3P] (f32 accumulate).
    scores = _key_scores(normed, key_ref[...])

    cos = cos_ref[...]                                  # [TS, H]  (tiled to H)
    sin_signed = sin_ref[...]                           # [TS, H]  sign folded in

    def roll_heads(t):
        # per-head rotate-half WITHOUT negate (sign folded into sin_signed)
        return jnp.concatenate(
            [jnp.concatenate([t[:, h * HD + HD2:(h + 1) * HD],
                              t[:, h * HD:h * HD + HD2]], axis=-1)
             for h in range(num_heads)], axis=-1)

    for idx, out_ref in enumerate((q_ref, k_ref, v_ref)):
        o = _gelu_l2_value(scores[:, idx * P:(idx + 1) * P], val_ref[idx],
                           slots=P)                     # [TS, H] f32
        if idx < 2:                                     # rotary on q and k only
            o = o * cos + roll_heads(o) * sin_signed
        out_ref[0] = o.astype(out_ref.dtype)            # single lane-dense store


def fused_ln1_qkv_rotary(x, ln_g, ln_b, qkv_key, qkv_val, cos_h, sin_h, num_heads,
                         *, eps=1e-5, vmem_limit):
    B, S, H = x.shape
    three_p = qkv_key.shape[0]
    P = three_p // 3
    TS = _choose_tile(S, 512)

    out_shape = jax.ShapeDtypeStruct((B, S, H), jnp.bfloat16)   # lane-dense bf16
    kernel = partial(_ln_qkv_rotary_kernel, num_heads=num_heads, slots=P, eps=eps)

    return pl.pallas_call(
        kernel,
        out_shape=(out_shape, out_shape, out_shape),
        grid=(B, S // TS),
        in_specs=[
            pl.BlockSpec((1, TS, H), lambda b, s: (b, s, 0)),
            pl.BlockSpec((1, H), lambda b, s: (0, 0)),
            pl.BlockSpec((1, H), lambda b, s: (0, 0)),
            pl.BlockSpec((three_p, H), lambda b, s: (0, 0)),    # resident (bf16)
            pl.BlockSpec((3, P, H), lambda b, s: (0, 0, 0)),    # resident (bf16)
            pl.BlockSpec((TS, H), lambda b, s: (s, 0)),
            pl.BlockSpec((TS, H), lambda b, s: (s, 0)),
        ],
        out_specs=(
            pl.BlockSpec((1, TS, H), lambda b, s: (b, s, 0)),
            pl.BlockSpec((1, TS, H), lambda b, s: (b, s, 0)),
            pl.BlockSpec((1, TS, H), lambda b, s: (b, s, 0)),
        ),
        compiler_params=pltpu.CompilerParams(
            dimension_semantics=("parallel", "parallel"),
            vmem_limit_bytes=vmem_limit,
        ),
    )(x, ln_g.reshape(1, H), ln_b.reshape(1, H), qkv_key, qkv_val, cos_h, sin_h)


# ---- Kernel B: flash causal attention + proj Pattention + LN2 + FFN ---------

def _flash_proj_mlp_kernel(q_ref, k_ref, v_ref, resid_ref,
                           pk_ref, pv_ref, fk_ref, fv_ref, g2_ref, b2_ref,
                           o_ref, m_sc, l_sc, acc_sc, *, num_heads, tq, tk, eps):
    qi = pl.program_id(1)
    ki = pl.program_id(2)

    H = q_ref.shape[-1]
    HD = H // num_heads
    scale = 1.0 / math.sqrt(HD)

    @pl.when(ki == 0)
    def _():
        m_sc[...] = jnp.full_like(m_sc, -1e30)
        l_sc[...] = jnp.zeros_like(l_sc)
        acc_sc[...] = jnp.zeros_like(acc_sc)

    def update(masked):
        q = q_ref[0].astype(jnp.bfloat16)               # [TQ, H] lane-dense
        k = k_ref[0].astype(jnp.bfloat16)               # [TK, H]
        v = v_ref[0].astype(jnp.bfloat16)
        if masked:
            # causal mask built in-kernel, only on the diagonal tile
            q_pos = qi * tq + jax.lax.broadcasted_iota(jnp.int32, (tq, tk), 0)
            k_pos = ki * tk + jax.lax.broadcasted_iota(jnp.int32, (tq, tk), 1)
            neg = jnp.where(k_pos > q_pos, jnp.float32(-1e9), jnp.float32(0.0))
        for h in range(num_heads):
            sl = slice(h * HD, (h + 1) * HD)
            s = jax.lax.dot_general(
                q[:, sl], k[:, sl], (((1,), (1,)), ((), ())),
                preferred_element_type=jnp.float32) * scale      # [TQ, TK]
            if masked:
                s = s + neg
            m_prev = m_sc[h]                                      # [TQ, 1]
            m_new = jnp.maximum(m_prev, jnp.max(s, axis=-1, keepdims=True))
            alpha = jnp.exp(m_prev - m_new)
            p = jnp.exp(s - m_new)
            l_sc[h] = alpha * l_sc[h] + jnp.sum(p, axis=-1, keepdims=True)
            acc_sc[:, sl] = alpha * acc_sc[:, sl] + jnp.dot(
                p.astype(jnp.bfloat16), v[:, sl],
                preferred_element_type=jnp.float32)
            m_sc[h] = m_new

    # interior below-diagonal tiles: no mask work at all (TQ == TK)
    @pl.when(ki < qi)
    def _():
        update(masked=False)

    # diagonal tile: masked update + epilogue (last valid causal KV tile)
    @pl.when(ki == qi)
    def _():
        update(masked=True)
        # head merge is free: the accumulator is already lane-dense [TQ, H]
        ctx = jnp.concatenate(
            [acc_sc[:, h * HD:(h + 1) * HD] * pl.reciprocal(l_sc[h], approx=True)
             for h in range(num_heads)], axis=-1)                 # [TQ, H] f32

        # output-projection Pattention + residual (dropout=identity in eval)
        proj = _gelu_l2_value(_key_scores(ctx, pk_ref[...]), pv_ref[...],
                              slots=pk_ref.shape[0])
        attn_out = proj + resid_ref[0]

        # post-attention LN + FFN Pattention + residual
        normed2 = _ln_rows(attn_out, g2_ref[...], b2_ref[...], eps)
        mlp = _gelu_l2_value(_key_scores(normed2, fk_ref[...]), fv_ref[...],
                             slots=fk_ref.shape[0])
        o_ref[0] = (mlp + attn_out).astype(o_ref.dtype)


def fused_attention_proj_mlp(q, k, v, residual, proj_key, proj_val,
                             ffn_key, ffn_val, ln2_g, ln2_b, *, num_heads,
                             eps=1e-5, vmem_limit):
    B, S, H = q.shape
    # TODO(synk): re-sweep per generation once tables are P-tiled
    #             (v6e/v7x: try 512; v5e: keep 256).
    TQ = _choose_tile(S, 256)
    TK = TQ   # epilogue-at-diagonal and diagonal-only-mask require TQ == TK

    kernel = partial(_flash_proj_mlp_kernel, num_heads=num_heads,
                     tq=TQ, tk=TK, eps=eps)
    return pl.pallas_call(
        kernel,
        out_shape=jax.ShapeDtypeStruct((B, S, H), residual.dtype),
        grid=(B, S // TQ, S // TK),
        in_specs=[
            pl.BlockSpec((1, TQ, H), lambda b, qi, ki: (b, qi, 0)),             # q
            # clamp: fully-masked causal tiles reuse the previous K/V block
            pl.BlockSpec((1, TK, H), lambda b, qi, ki: (b, jnp.minimum(ki, qi), 0)),
            pl.BlockSpec((1, TK, H), lambda b, qi, ki: (b, jnp.minimum(ki, qi), 0)),
            pl.BlockSpec((1, TQ, H), lambda b, qi, ki: (b, qi, 0)),             # resid
            pl.BlockSpec(proj_key.shape, lambda b, qi, ki: (0, 0)),
            pl.BlockSpec(proj_val.shape, lambda b, qi, ki: (0, 0)),
            pl.BlockSpec(ffn_key.shape, lambda b, qi, ki: (0, 0)),
            pl.BlockSpec(ffn_val.shape, lambda b, qi, ki: (0, 0)),
            pl.BlockSpec((1, H), lambda b, qi, ki: (0, 0)),
            pl.BlockSpec((1, H), lambda b, qi, ki: (0, 0)),
        ],
        out_specs=pl.BlockSpec((1, TQ, H), lambda b, qi, ki: (b, qi, 0)),
        scratch_shapes=[
            pltpu.VMEM((num_heads, TQ, 1), jnp.float32),   # running max
            pltpu.VMEM((num_heads, TQ, 1), jnp.float32),   # running denom
            pltpu.VMEM((TQ, H), jnp.float32),              # running context (lane-dense)
        ],
        compiler_params=pltpu.CompilerParams(
            dimension_semantics=("parallel", "parallel", "arbitrary"),
            vmem_limit_bytes=vmem_limit,
        ),
    )(q, k, v, residual, proj_key, proj_val, ffn_key, ffn_val,
      ln2_g.reshape(1, H), ln2_b.reshape(1, H))


# -------------------------- glue (plain JAX) --------------------------------

def rotary_cos_sin(seq_len, dim, base=10000.0, dtype=jnp.float32):
    inv_freq = 1.0 / (base ** (jnp.arange(0, dim, 2, dtype=jnp.float32) / dim))
    t = jnp.arange(seq_len, dtype=jnp.float32)
    freqs = jnp.einsum("i,j->ij", t, inv_freq)          # [S, dim/2]
    emb = jnp.concatenate([freqs, freqs], axis=-1)      # [S, dim]
    return jnp.cos(emb).astype(dtype), jnp.sin(emb).astype(dtype)


def init_params(key, hidden, qkv_slots, proj_slots, ffn_slots, std=0.02):
    ks = jax.random.split(key, 10)

    def nrm(k, shape):
        return jax.random.normal(k, shape, jnp.float32) * std

    return {
        "ln1_g": jnp.ones((hidden,), jnp.float32),
        "ln1_b": jnp.zeros((hidden,), jnp.float32),
        "ln2_g": jnp.ones((hidden,), jnp.float32),
        "ln2_b": jnp.zeros((hidden,), jnp.float32),
        "q_key": nrm(ks[0], (qkv_slots, hidden)),
        "q_val": nrm(ks[1], (qkv_slots, hidden)),
        "k_key": nrm(ks[2], (qkv_slots, hidden)),
        "k_val": nrm(ks[3], (qkv_slots, hidden)),
        "v_key": nrm(ks[4], (qkv_slots, hidden)),
        "v_val": nrm(ks[5], (qkv_slots, hidden)),
        "proj_key": nrm(ks[6], (proj_slots, hidden)),
        "proj_val": nrm(ks[7], (proj_slots, hidden)),
        "ffn_key": nrm(ks[8], (ffn_slots, hidden)),
        "ffn_val": nrm(ks[9], (ffn_slots, hidden)),
    }


def tokenformer_layer_forward(params, x, attention_mask, num_heads, hh=None):
    if hh is not None:
        x = jnp.concatenate([hh, x], axis=1)
    B, S, H = x.shape
    HD = H // num_heads

    # TODO(synk): attention_mask is assumed to be the standard GPT-NeoX causal
    # mask (True = masked); the causal structure is regenerated in-kernel via
    # broadcasted_iota so the [S,S] bias never has to be read from HBM. Any
    # padding / non-causal component of the provided mask is ignored.
    del attention_mask

    cos, sin = rotary_cos_sin(S, HD, dtype=jnp.float32)
    # fold the rotate_half negate into sin and tile the rotary tables to full
    # hidden width so the kernel applies rotary on the whole [TS, H] row.
    sign = jnp.concatenate([-jnp.ones((HD // 2,), jnp.float32),
                            jnp.ones((HD // 2,), jnp.float32)])
    cos_h = jnp.tile(cos, (1, num_heads))               # [S, H]
    sin_h = jnp.tile(sin * sign, (1, num_heads))        # [S, H]

    bf = jnp.bfloat16
    # stack the Q/K/V token-parameter tables (bf16 MXU operands, f32 accumulate)
    qkv_key = jnp.concatenate(
        [params["q_key"], params["k_key"], params["v_key"]], axis=0).astype(bf)
    qkv_val = jnp.stack(
        [params["q_val"], params["k_val"], params["v_val"]], axis=0).astype(bf)

    vlim = _vmem_limit_bytes()

    # Kernel A: LN1 + QKV Pattention + rotary, lane-dense bf16 q/k/v
    q, k, v = fused_ln1_qkv_rotary(
        x, params["ln1_g"], params["ln1_b"], qkv_key, qkv_val, cos_h, sin_h,
        num_heads, vmem_limit=vlim)

    # Kernel B: flash causal attention + proj Pattention + residual + LN2
    #           + FFN Pattention + residual
    output = fused_attention_proj_mlp(
        q, k, v, x,
        params["proj_key"].astype(bf), params["proj_val"].astype(bf),
        params["ffn_key"].astype(bf), params["ffn_val"].astype(bf),
        params["ln2_g"], params["ln2_b"], num_heads=num_heads, vmem_limit=vlim)

    # TODO(synk): index 1 kept from the original module's `output[:, 1, :]`.
    new_hh = output[:, 1, :] if hh is not None else None
    return output, new_hh


# --------------------------- pure-JAX reference ------------------------------

def _reference_forward(params, x, num_heads):
    B, S, H = x.shape
    HD = H // num_heads
    hi = jax.lax.Precision.HIGHEST

    def ln(t, g, b):
        m = jnp.mean(t, -1, keepdims=True)
        c = t - m
        v = jnp.mean(c * c, -1, keepdims=True)
        return c * jax.lax.rsqrt(v + 1e-5) * g + b

    def pattn(t, key, val):
        a = jnp.einsum("bsh,ph->bsp", t, key, precision=hi) / math.sqrt(t.shape[-1])
        g = jax.nn.gelu(a, approximate=True)
        w = g * jax.lax.rsqrt(jnp.sum(g * g, -1, keepdims=True) + 1e-12)
        w = w * math.sqrt(key.shape[0])
        return jnp.einsum("bsp,ph->bsh", w, val, precision=hi)

    residual = x
    n1 = ln(x, params["ln1_g"], params["ln1_b"])
    q = pattn(n1, params["q_key"], params["q_val"])
    k = pattn(n1, params["k_key"], params["k_val"])
    v = pattn(n1, params["v_key"], params["v_val"])

    def heads(t):
        return t.reshape(B, S, num_heads, HD).transpose(0, 2, 1, 3)

    q, k, v = heads(q), heads(k), heads(v)
    cos, sin = rotary_cos_sin(S, HD, dtype=x.dtype)

    def rot(t):
        d = HD // 2
        rh = jnp.concatenate([-t[..., d:], t[..., :d]], axis=-1)
        return t * cos + rh * sin

    q, k = rot(q), rot(k)
    s = jnp.einsum("bhqd,bhkd->bhqk", q, k, precision=hi) / math.sqrt(HD)
    mask = jnp.triu(jnp.ones((S, S), bool), 1)
    s = s + jnp.where(mask, -1e9, 0.0)
    p = jax.nn.softmax(s, axis=-1)
    ctx = jnp.einsum("bhqk,bhkd->bhqd", p, v, precision=hi)
    ctx = ctx.transpose(0, 2, 1, 3).reshape(B, S, H)
    attn_out = pattn(ctx, params["proj_key"], params["proj_val"]) + residual
    n2 = ln(attn_out, params["ln2_g"], params["ln2_b"])
    return pattn(n2, params["ffn_key"], params["ffn_val"]) + attn_out


# --------------------------------- main --------------------------------------

if __name__ == "__main__":
    B, S, H, NH = 2, 8, 32, 4
    QKV_SLOTS, PROJ_SLOTS, FFN_SLOTS = 16, 16, 64

    root = jax.random.PRNGKey(0)
    pkey, xkey = jax.random.split(root)
    params = init_params(pkey, H, QKV_SLOTS, PROJ_SLOTS, FFN_SLOTS)
    x = jax.random.normal(xkey, (B, S, H), jnp.float32)

    # causal mask, True = masked (upper triangle above the diagonal)
    attention_mask = jnp.triu(jnp.ones((S, S), dtype=bool), k=1).reshape(1, 1, S, S)

    fwd = jax.jit(partial(tokenformer_layer_forward, num_heads=NH))
    out, new_hh = fwd(params, x, attention_mask)
    jax.block_until_ready(out)

    assert out.shape == (B, S, H)
    assert out.dtype == jnp.float32
    assert bool(jnp.all(jnp.isfinite(out)))

    ref = _reference_forward(params, x, NH)
    # bf16 MXU operands (f32 accumulate) + approx reciprocal => slightly looser
    # tolerance than the pure-f32 path; errors are well below this in practice.
    assert bool(jnp.allclose(out, ref, atol=3e-2, rtol=3e-2)), (
        float(jnp.max(jnp.abs(out - ref))))

    print("KERNEL_OK")
</pallas_src>

<mosaic_0001>
module attributes {stable_mosaic.version = 11 : i64} {
  func.func @_ln_qkv_rotary_kernel(%arg0: i32, %arg1: i32, %arg2: memref<1x8x32xf32, #tpu.memory_space<vmem>>, %arg3: memref<1x32xf32, #tpu.memory_space<vmem>>, %arg4: memref<1x32xf32, #tpu.memory_space<vmem>>, %arg5: memref<48x32xbf16, #tpu.memory_space<vmem>>, %arg6: memref<3x16x32xbf16, #tpu.memory_space<vmem>>, %arg7: memref<8x32xf32, #tpu.memory_space<vmem>>, %arg8: memref<8x32xf32, #tpu.memory_space<vmem>>, %arg9: memref<1x8x32xbf16, #tpu.memory_space<vmem>>, %arg10: memref<1x8x32xbf16, #tpu.memory_space<vmem>>, %arg11: memref<1x8x32xbf16, #tpu.memory_space<vmem>>) attributes {dimension_semantics = [#tpu.dimension_semantics<parallel>, #tpu.dimension_semantics<parallel>], iteration_bounds = array<i64: 2, 1>, scalar_prefetch = 0 : i64, scratch_operands = 0 : i64, tpu.core_type = #tpu.core_type<tc>, window_params = [{transform_indices = @transform_0, window_bounds = array<i64: 1, 8, 32>}, {pipeline_mode = #tpu.pipeline_mode<synchronous>, transform_indices = @transform_1, window_bounds = array<i64: 1, 32>}, {pipeline_mode = #tpu.pipeline_mode<synchronous>, transform_indices = @transform_2, window_bounds = array<i64: 1, 32>}, {pipeline_mode = #tpu.pipeline_mode<synchronous>, transform_indices = @transform_3, window_bounds = array<i64: 48, 32>}, {pipeline_mode = #tpu.pipeline_mode<synchronous>, transform_indices = @transform_4, window_bounds = array<i64: 3, 16, 32>}, {transform_indices = @transform_5, window_bounds = array<i64: 8, 32>}, {transform_indices = @transform_6, window_bounds = array<i64: 8, 32>}, {transform_indices = @transform_7, window_bounds = array<i64: 1, 8, 32>}, {transform_indices = @transform_8, window_bounds = array<i64: 1, 8, 32>}, {transform_indices = @transform_9, window_bounds = array<i64: 1, 8, 32>}]} {
    %c0 = arith.constant 0 : index
    %c0_0 = arith.constant 0 : index
    %c0_1 = arith.constant 0 : index
    %0 = vector.load %arg2[%c0, %c0_0, %c0_1] : memref<1x8x32xf32, #tpu.memory_space<vmem>>, vector<1x8x32xf32>
    %1 = vector.shape_cast %0 : vector<1x8x32xf32> to vector<8x32xf32>
    %c0_2 = arith.constant 0 : index
    %c0_3 = arith.constant 0 : index
    %2 = vector.load %arg3[%c0_2, %c0_3] : memref<1x32xf32, #tpu.memory_space<vmem>>, vector<1x32xf32>
    %c0_4 = arith.constant 0 : index
    %c0_5 = arith.constant 0 : index
    %3 = vector.load %arg4[%c0_4, %c0_5] : memref<1x32xf32, #tpu.memory_space<vmem>>, vector<1x32xf32>
    %cst = arith.constant dense<0.000000e+00> : vector<8xf32>
    %4 = vector.multi_reduction <add>, %1, %cst [1] : vector<8x32xf32> to vector<8xf32>
    %5 = vector.shape_cast %4 : vector<8xf32> to vector<8x1xf32>
    %cst_6 = arith.constant 3.200000e+01 : f32
    %6 = vector.broadcast %cst_6 : f32 to vector<8x1xf32>
    %7 = arith.divf %5, %6 : vector<8x1xf32>
    %8 = vector.broadcast %7 : vector<8x1xf32> to vector<8x32xf32>
    %9 = arith.subf %1, %8 : vector<8x32xf32>
    %10 = arith.mulf %9, %9 : vector<8x32xf32>
    %cst_7 = arith.constant dense<0.000000e+00> : vector<8xf32>
    %11 = vector.multi_reduction <add>, %10, %cst_7 [1] : vector<8x32xf32> to vector<8xf32>
    %12 = vector.shape_cast %11 : vector<8xf32> to vector<8x1xf32>
    %cst_8 = arith.constant 3.200000e+01 : f32
    %13 = vector.broadcast %cst_8 : f32 to vector<8x1xf32>
    %14 = arith.divf %12, %13 : vector<8x1xf32>
    %cst_9 = arith.constant 9.99999974E-6 : f32
    %15 = vector.broadcast %cst_9 : f32 to vector<8x1xf32>
    %16 = arith.addf %14, %15 : vector<8x1xf32>
    %17 = math.rsqrt %16 : vector<8x1xf32>
    %18 = vector.broadcast %17 : vector<8x1xf32> to vector<8x32xf32>
    %19 = arith.mulf %9, %18 : vector<8x32xf32>
    %20 = vector.broadcast %2 : vector<1x32xf32> to vector<8x32xf32>
    %21 = arith.mulf %19, %20 : vector<8x32xf32>
    %22 = vector.broadcast %3 : vector<1x32xf32> to vector<8x32xf32>
    %23 = arith.addf %21, %22 : vector<8x32xf32>
    %c0_10 = arith.constant 0 : index
    %c0_11 = arith.constant 0 : index
    %24 = vector.load %arg5[%c0_10, %c0_11] : memref<48x32xbf16, #tpu.memory_space<vmem>>, vector<48x32xbf16>
    %25 = arith.truncf %23 : vector<8x32xf32> to vector<8x32xbf16>
    %cst_12 = arith.constant dense<0.000000e+00> : vector<8x48xf32>
    %26 = tpu.matmul %25, %24, %cst_12 {dimension_numbers = #tpu.dot_dimension_numbers<[1], [1], [0], [0], [0, 0, 1, 0], [], []>} : vector<8x32xbf16>, vector<48x32xbf16>, vector<8x48xf32> -> vector<8x48xf32>
    %cst_13 = arith.constant 0.176776692 : f32
    %27 = vector.broadcast %cst_13 : f32 to vector<8x48xf32>
    %28 = arith.mulf %26, %27 : vector<8x48xf32>
    %c0_14 = arith.constant 0 : index
    %c0_15 = arith.constant 0 : index
    %29 = vector.load %arg7[%c0_14, %c0_15] : memref<8x32xf32, #tpu.memory_space<vmem>>, vector<8x32xf32>
    %c0_16 = arith.constant 0 : index
    %c0_17 = arith.constant 0 : index
    %30 = vector.load %arg8[%c0_16, %c0_17] : memref<8x32xf32, #tpu.memory_space<vmem>>, vector<8x32xf32>
    %31 = vector.extract_strided_slice %28 {offsets = [0, 0], sizes = [8, 16], strides = [1, 1]} : vector<8x48xf32> to vector<8x16xf32>
    %c0_18 = arith.constant 0 : index
    %c0_19 = arith.constant 0 : index
    %c0_20 = arith.constant 0 : index
    %32 = vector.load %arg6[%c0_18, %c0_19, %c0_20] : memref<3x16x32xbf16, #tpu.memory_space<vmem>>, vector<1x16x32xbf16>
    %33 = vector.shape_cast %32 : vector<1x16x32xbf16> to vector<16x32xbf16>
    %34 = arith.mulf %31, %31 : vector<8x16xf32>
    %35 = arith.mulf %31, %34 : vector<8x16xf32>
    %cst_21 = arith.constant 4.471500e-02 : f32
    %36 = vector.broadcast %cst_21 : f32 to vector<8x16xf32>
    %37 = arith.mulf %36, %35 : vector<8x16xf32>
    %38 = arith.addf %31, %37 : vector<8x16xf32>
    %cst_22 = arith.constant 0.797884583 : f32
    %39 = vector.broadcast %cst_22 : f32 to vector<8x16xf32>
    %40 = arith.mulf %39, %38 : vector<8x16xf32>
    %41 = math.tanh %40 : vector<8x16xf32>
    %cst_23 = arith.constant 1.000000e+00 : f32
    %42 = vector.broadcast %cst_23 : f32 to vector<8x16xf32>
    %43 = arith.addf %42, %41 : vector<8x16xf32>
    %cst_24 = arith.constant 5.000000e-01 : f32
    %44 = vector.broadcast %cst_24 : f32 to vector<8x16xf32>
    %45 = arith.mulf %44, %43 : vector<8x16xf32>
    %46 = arith.mulf %31, %45 : vector<8x16xf32>
    %47 = arith.mulf %46, %46 : vector<8x16xf32>
    %cst_25 = arith.constant dense<0.000000e+00> : vector<8xf32>
    %48 = vector.multi_reduction <add>, %47, %cst_25 [1] : vector<8x16xf32> to vector<8xf32>
    %49 = vector.shape_cast %48 : vector<8xf32> to vector<8x1xf32>
    %cst_26 = arith.constant 9.99999996E-13 : f32
    %50 = vector.broadcast %cst_26 : f32 to vector<8x1xf32>
    %51 = arith.addf %49, %50 : vector<8x1xf32>
    %52 = math.rsqrt %51 : vector<8x1xf32>
    %53 = vector.broadcast %52 : vector<8x1xf32> to vector<8x16xf32>
    %54 = arith.mulf %46, %53 : vector<8x16xf32>
    %cst_27 = arith.constant 4.000000e+00 : f32
    %55 = vector.broadcast %cst_27 : f32 to vector<8x16xf32>
    %56 = arith.mulf %54, %55 : vector<8x16xf32>
    %57 = arith.truncf %56 : vector<8x16xf32> to vector<8x16xbf16>
    %cst_28 = arith.constant dense<0.000000e+00> : vector<8x32xf32>
    %58 = tpu.matmul %57, %33, %cst_28 {dimension_numbers = #tpu.dot_dimension_numbers<[1], [0], [0], [1], [0, 0, 1, 1], [], []>} : vector<8x16xbf16>, vector<16x32xbf16>, vector<8x32xf32> -> vector<8x32xf32>
    %59 = arith.mulf %58, %29 : vector<8x32xf32>
    %60 = vector.extract_strided_slice %58 {offsets = [0, 4], sizes = [8, 4], strides = [1, 1]} : vector<8x32xf32> to vector<8x4xf32>
    %61 = vector.extract_strided_slice %58 {offsets = [0, 0], sizes = [8, 4], strides = [1, 1]} : vector<8x32xf32> to vector<8x4xf32>
    %62 = tpu.concatenate %60, %61 in 1 : vector<8x4xf32>, vector<8x4xf32> -> vector<8x8xf32>
    %63 = vector.extract_strided_slice %58 {offsets = [0, 12], sizes = [8, 4], strides = [1, 1]} : vector<8x32xf32> to vector<8x4xf32>
    %64 = vector.extract_strided_slice %58 {offsets = [0, 8], sizes = [8, 4], strides = [1, 1]} : vector<8x32xf32> to vector<8x4xf32>
    %65 = tpu.concatenate %63, %64 in 1 : vector<8x4xf32>, vector<8x4xf32> -> vector<8x8xf32>
    %66 = vector.extract_strided_slice %58 {offsets = [0, 20], sizes = [8, 4], strides = [1, 1]} : vector<8x32xf32> to vector<8x4xf32>
    %67 = vector.extract_strided_slice %58 {offsets = [0, 16], sizes = [8, 4], strides = [1, 1]} : vector<8x32xf32> to vector<8x4xf32>
    %68 = tpu.concatenate %66, %67 in 1 : vector<8x4xf32>, vector<8x4xf32> -> vector<8x8xf32>
    %69 = vector.extract_strided_slice %58 {offsets = [0, 28], sizes = [8, 4], strides = [1, 1]} : vector<8x32xf32> to vector<8x4xf32>
    %70 = vector.extract_strided_slice %58 {offsets = [0, 24], sizes = [8, 4], strides = [1, 1]} : vector<8x32xf32> to vector<8x4xf32>
    %71 = tpu.concatenate %69, %70 in 1 : vector<8x4xf32>, vector<8x4xf32> -> vector<8x8xf32>
    %72 = tpu.concatenate %62, %65, %68, %71 in 1 : vector<8x8xf32>, vector<8x8xf32>, vector<8x8xf32>, vector<8x8xf32> -> vector<8x32xf32>
    %73 = arith.mulf %72, %30 : vector<8x32xf32>
    %74 = arith.addf %59, %73 : vector<8x32xf32>
    %75 = arith.truncf %74 : vector<8x32xf32> to vector<8x32xbf16>
    %c0_29 = arith.constant 0 : index
    %c0_30 = arith.constant 0 : index
    %c0_31 = arith.constant 0 : index
    %76 = vector.load %arg9[%c0_29, %c0_30, %c0_31] : memref<1x8x32xbf16, #tpu.memory_space<vmem>>, vector<1x8x32xbf16>
    %77 = vector.shape_cast %76 : vector<1x8x32xbf16> to vector<8x32xbf16>
    %78 = vector.shape_cast %75 : vector<8x32xbf16> to vector<1x8x32xbf16>
    tpu.vector_store %arg9[%c0_29, %c0_30, %c0_31], %78 {strides = array<i32>} : memref<1x8x32xbf16, #tpu.memory_space<vmem>>, vector<1x8x32xbf16>,
    %79 = vector.extract_strided_slice %28 {offsets = [0, 16], sizes = [8, 16], strides = [1, 1]} : vector<8x48xf32> to vector<8x16xf32>
    %c1 = arith.constant 1 : index
    %c0_32 = arith.constant 0 : index
    %c0_33 = arith.constant 0 : index
    %80 = vector.load %arg6[%c1, %c0_32, %c0_33] : memref<3x16x32xbf16, #tpu.memory_space<vmem>>, vector<1x16x32xbf16>
    %81 = vector.shape_cast %80 : vector<1x16x32xbf16> to vector<16x32xbf16>
    %82 = arith.mulf %79, %79 : vector<8x16xf32>
    %83 = arith.mulf %79, %82 : vector<8x16xf32>
    %cst_34 = arith.constant 4.471500e-02 : f32
    %84 = vector.broadcast %cst_34 : f32 to vector<8x16xf32>
    %85 = arith.mulf %84, %83 : vector<8x16xf32>
    %86 = arith.addf %79, %85 : vector<8x16xf32>
    %cst_35 = arith.constant 0.797884583 : f32
    %87 = vector.broadcast %cst_35 : f32 to vector<8x16xf32>
    %88 = arith.mulf %87, %86 : vector<8x16xf32>
    %89 = math.tanh %88 : vector<8x16xf32>
    %cst_36 = arith.constant 1.000000e+00 : f32
    %90 = vector.broadcast %cst_36 : f32 to vector<8x16xf32>
    %91 = arith.addf %90, %89 : vector<8x16xf32>
    %cst_37 = arith.constant 5.000000e-01 : f32
    %92 = vector.broadcast %cst_37 : f32 to vector<8x16xf32>
    %93 = arith.mulf %92, %91 : vector<8x16xf32>
    %94 = arith.mulf %79, %93 : vector<8x16xf32>
    %95 = arith.mulf %94, %94 : vector<8x16xf32>
    %cst_38 = arith.constant dense<0.000000e+00> : vector<8xf32>
    %96 = vector.multi_reduction <add>, %95, %cst_38 [1] : vector<8x16xf32> to vector<8xf32>
    %97 = vector.shape_cast %96 : vector<8xf32> to vector<8x1xf32>
    %cst_39 = arith.constant 9.99999996E-13 : f32
    %98 = vector.broadcast %cst_39 : f32 to vector<8x1xf32>
    %99 = arith.addf %97, %98 : vector<8x1xf32>
    %100 = math.rsqrt %99 : vector<8x1xf32>
    %101 = vector.broadcast %100 : vector<8x1xf32> to vector<8x16xf32>
    %102 = arith.mulf %94, %101 : vector<8x16xf32>
    %cst_40 = arith.constant 4.000000e+00 : f32
    %103 = vector.broadcast %cst_40 : f32 to vector<8x16xf32>
    %104 = arith.mulf %102, %103 : vector<8x16xf32>
    %105 = arith.truncf %104 : vector<8x16xf32> to vector<8x16xbf16>
    %cst_41 = arith.constant dense<0.000000e+00> : vector<8x32xf32>
    %106 = tpu.matmul %105, %81, %cst_41 {dimension_numbers = #tpu.dot_dimension_numbers<[1], [0], [0], [1], [0, 0, 1, 1], [], []>} : vector<8x16xbf16>, vector<16x32xbf16>, vector<8x32xf32> -> vector<8x32xf32>
    %107 = arith.mulf %106, %29 : vector<8x32xf32>
    %108 = vector.extract_strided_slice %106 {offsets = [0, 4], sizes = [8, 4], strides = [1, 1]} : vector<8x32xf32> to vector<8x4xf32>
    %109 = vector.extract_strided_slice %106 {offsets = [0, 0], sizes = [8, 4], strides = [1, 1]} : vector<8x32xf32> to vector<8x4xf32>
    %110 = tpu.concatenate %108, %109 in 1 : vector<8x4xf32>, vector<8x4xf32> -> vector<8x8xf32>
    %111 = vector.extract_strided_slice %106 {offsets = [0, 12], sizes = [8, 4], strides = [1, 1]} : vector<8x32xf32> to vector<8x4xf32>
    %112 = vector.extract_strided_slice %106 {offsets = [0, 8], sizes = [8, 4], strides = [1, 1]} : vector<8x32xf32> to vector<8x4xf32>
    %113 = tpu.concatenate %111, %112 in 1 : vector<8x4xf32>, vector<8x4xf32> -> vector<8x8xf32>
    %114 = vector.extract_strided_slice %106 {offsets = [0, 20], sizes = [8, 4], strides = [1, 1]} : vector<8x32xf32> to vector<8x4xf32>
    %115 = vector.extract_strided_slice %106 {offsets = [0, 16], sizes = [8, 4], strides = [1, 1]} : vector<8x32xf32> to vector<8x4xf32>
    %116 = tpu.concatenate %114, %115 in 1 : vector<8x4xf32>, vector<8x4xf32> -> vector<8x8xf32>
    %117 = vector.extract_strided_slice %106 {offsets = [0, 28], sizes = [8, 4], strides = [1, 1]} : vector<8x32xf32> to vector<8x4xf32>
    %118 = vector.extract_strided_slice %106 {offsets = [0, 24], sizes = [8, 4], strides = [1, 1]} : vector<8x32xf32> to vector<8x4xf32>
    %119 = tpu.concatenate %117, %118 in 1 : vector<8x4xf32>, vector<8x4xf32> -> vector<8x8xf32>
    %120 = tpu.concatenate %110, %113, %116, %119 in 1 : vector<8x8xf32>, vector<8x8xf32>, vector<8x8xf32>, vector<8x8xf32> -> vector<8x32xf32>
    %121 = arith.mulf %120, %30 : vector<8x32xf32>
    %122 = arith.addf %107, %121 : vector<8x32xf32>
    %123 = arith.truncf %122 : vector<8x32xf32> to vector<8x32xbf16>
    %c0_42 = arith.constant 0 : index
    %c0_43 = arith.constant 0 : index
    %c0_44 = arith.constant 0 : index
    %124 = vector.load %arg10[%c0_42, %c0_43, %c0_44] : memref<1x8x32xbf16, #tpu.memory_space<vmem>>, vector<1x8x32xbf16>
    %125 = vector.shape_cast %124 : vector<1x8x32xbf16> to vector<8x32xbf16>
    %126 = vector.shape_cast %123 : vector<8x32xbf16> to vector<1x8x32xbf16>
    tpu.vector_store %arg10[%c0_42, %c0_43, %c0_44], %126 {strides = array<i32>} : memref<1x8x32xbf16, #tpu.memory_space<vmem>>, vector<1x8x32xbf16>,
    %127 = vector.extract_strided_slice %28 {offsets = [0, 32], sizes = [8, 16], strides = [1, 1]} : vector<8x48xf32> to vector<8x16xf32>
    %c2 = arith.constant 2 : index
    %c0_45 = arith.constant 0 : index
    %c0_46 = arith.constant 0 : index
    %128 = vector.load %arg6[%c2, %c0_45, %c0_46] : memref<3x16x32xbf16, #tpu.memory_space<vmem>>, vector<1x16x32xbf16>
    %129 = vector.shape_cast %128 : vector<1x16x32xbf16> to vector<16x32xbf16>
    %130 = arith.mulf %127, %127 : vector<8x16xf32>
    %131 = arith.mulf %127, %130 : vector<8x16xf32>
    %cst_47 = arith.constant 4.471500e-02 : f32
    %132 = vector.broadcast %cst_47 : f32 to vector<8x16xf32>
    %133 = arith.mulf %132, %131 : vector<8x16xf32>
    %134 = arith.addf %127, %133 : vector<8x16xf32>
    %cst_48 = arith.constant 0.797884583 : f32
    %135 = vector.broadcast %cst_48 : f32 to vector<8x16xf32>
    %136 = arith.mulf %135, %134 : vector<8x16xf32>
    %137 = math.tanh %136 : vector<8x16xf32>
    %cst_49 = arith.constant 1.000000e+00 : f32
    %138 = vector.broadcast %cst_49 : f32 to vector<8x16xf32>
    %139 = arith.addf %138, %137 : vector<8x16xf32>
    %cst_50 = arith.constant 5.000000e-01 : f32
    %140 = vector.broadcast %cst_50 : f32 to vector<8x16xf32>
    %141 = arith.mulf %140, %139 : vector<8x16xf32>
    %142 = arith.mulf %127, %141 : vector<8x16xf32>
    %143 = arith.mulf %142, %142 : vector<8x16xf32>
    %cst_51 = arith.constant dense<0.000000e+00> : vector<8xf32>
    %144 = vector.multi_reduction <add>, %143, %cst_51 [1] : vector<8x16xf32> to vector<8xf32>
    %145 = vector.shape_cast %144 : vector<8xf32> to vector<8x1xf32>
    %cst_52 = arith.constant 9.99999996E-13 : f32
    %146 = vector.broadcast %cst_52 : f32 to vector<8x1xf32>
    %147 = arith.addf %145, %146 : vector<8x1xf32>
    %148 = math.rsqrt %147 : vector<8x1xf32>
    %149 = vector.broadcast %148 : vector<8x1xf32> to vector<8x16xf32>
    %150 = arith.mulf %142, %149 : vector<8x16xf32>
    %cst_53 = arith.constant 4.000000e+00 : f32
    %151 = vector.broadcast %cst_53 : f32 to vector<8x16xf32>
    %152 = arith.mulf %150, %151 : vector<8x16xf32>
    %153 = arith.truncf %152 : vector<8x16xf32> to vector<8x16xbf16>
    %cst_54 = arith.constant dense<0.000000e+00> : vector<8x32xf32>
    %154 = tpu.matmul %153, %129, %cst_54 {dimension_numbers = #tpu.dot_dimension_numbers<[1], [0], [0], [1], [0, 0, 1, 1], [], []>} : vector<8x16xbf16>, vector<16x32xbf16>, vector<8x32xf32> -> vector<8x32xf32>
    %155 = arith.truncf %154 : vector<8x32xf32> to vector<8x32xbf16>
    %c0_55 = arith.constant 0 : index
    %c0_56 = arith.constant 0 : index
    %c0_57 = arith.constant 0 : index
    %156 = vector.load %arg11[%c0_55, %c0_56, %c0_57] : memref<1x8x32xbf16, #tpu.memory_space<vmem>>, vector<1x8x32xbf16>
    %157 = vector.shape_cast %156 : vector<1x8x32xbf16> to vector<8x32xbf16>
    %158 = vector.shape_cast %155 : vector<8x32xbf16> to vector<1x8x32xbf16>
    tpu.vector_store %arg11[%c0_55, %c0_56, %c0_57], %158 {strides = array<i32>} : memref<1x8x32xbf16, #tpu.memory_space<vmem>>, vector<1x8x32xbf16>,
    return
  }
  func.func @transform_0(%arg0: i32, %arg1: i32) -> (i32, i32, i32) {
    %c0_i32 = arith.constant 0 : i32
    %c0_i32_0 = arith.constant 0 : i32
    return %arg0, %arg1, %c0_i32 : i32, i32, i32
  }
  func.func @transform_1(%arg0: i32, %arg1: i32) -> (i32, i32) {
    %c0_i32 = arith.constant 0 : i32
    %c0_i32_0 = arith.constant 0 : i32
    %c0_i32_1 = arith.constant 0 : i32
    return %c0_i32, %c0_i32_0 : i32, i32
  }
  func.func @transform_2(%arg0: i32, %arg1: i32) -> (i32, i32) {
    %c0_i32 = arith.constant 0 : i32
    %c0_i32_0 = arith.constant 0 : i32
    %c0_i32_1 = arith.constant 0 : i32
    return %c0_i32, %c0_i32_0 : i32, i32
  }
  func.func @transform_3(%arg0: i32, %arg1: i32) -> (i32, i32) {
    %c0_i32 = arith.constant 0 : i32
    %c0_i32_0 = arith.constant 0 : i32
    %c0_i32_1 = arith.constant 0 : i32
    return %c0_i32, %c0_i32_0 : i32, i32
  }
  func.func @transform_4(%arg0: i32, %arg1: i32) -> (i32, i32, i32) {
    %c0_i32 = arith.constant 0 : i32
    %c0_i32_0 = arith.constant 0 : i32
    %c0_i32_1 = arith.constant 0 : i32
    %c0_i32_2 = arith.constant 0 : i32
    return %c0_i32, %c0_i32_0, %c0_i32_1 : i32, i32, i32
  }
  func.func @transform_5(%arg0: i32, %arg1: i32) -> (i32, i32) {
    %c0_i32 = arith.constant 0 : i32
    %c0_i32_0 = arith.constant 0 : i32
    return %arg1, %c0_i32 : i32, i32
  }
  func.func @transform_6(%arg0: i32, %arg1: i32) -> (i32, i32) {
    %c0_i32 = arith.constant 0 : i32
    %c0_i32_0 = arith.constant 0 : i32
    return %arg1, %c0_i32 : i32, i32
  }
  func.func @transform_7(%arg0: i32, %arg1: i32) -> (i32, i32, i32) {
    %c0_i32 = arith.constant 0 : i32
    %c0_i32_0 = arith.constant 0 : i32
    return %arg0, %arg1, %c0_i32 : i32, i32, i32
  }
  func.func @transform_8(%arg0: i32, %arg1: i32) -> (i32, i32, i32) {
    %c0_i32 = arith.constant 0 : i32
    %c0_i32_0 = arith.constant 0 : i32
    return %arg0, %arg1, %c0_i32 : i32, i32, i32
  }
  func.func @transform_9(%arg0: i32, %arg1: i32) -> (i32, i32, i32) {
    %c0_i32 = arith.constant 0 : i32
    %c0_i32_0 = arith.constant 0 : i32
    return %arg0, %arg1, %c0_i32 : i32, i32, i32
  }
}

module attributes {stable_mosaic.version = 11 : i64} {
  func.func @_flash_proj_mlp_kernel(%arg0: i32, %arg1: i32, %arg2: i32, %arg3: memref<1x8x32xbf16, #tpu.memory_space<vmem>>, %arg4: memref<1x8x32xbf16, #tpu.memory_space<vmem>>, %arg5: memref<1x8x32xbf16, #tpu.memory_space<vmem>>, %arg6: memref<1x8x32xf32, #tpu.memory_space<vmem>>, %arg7: memref<16x32xbf16, #tpu.memory_space<vmem>>, %arg8: memref<16x32xbf16, #tpu.memory_space<vmem>>, %arg9: memref<64x32xbf16, #tpu.memory_space<vmem>>, %arg10: memref<64x32xbf16, #tpu.memory_space<vmem>>, %arg11: memref<1x32xf32, #tpu.memory_space<vmem>>, %arg12: memref<1x32xf32, #tpu.memory_space<vmem>>, %arg13: memref<1x8x32xf32, #tpu.memory_space<vmem>>, %arg14: memref<4x8x1xf32, #tpu.memory_space<vmem>>, %arg15: memref<4x8x1xf32, #tpu.memory_space<vmem>>, %arg16: memref<8x32xf32, #tpu.memory_space<vmem>>) attributes {dimension_semantics = [#tpu.dimension_semantics<parallel>, #tpu.dimension_semantics<parallel>, #tpu.dimension_semantics<arbitrary>], iteration_bounds = array<i64: 2, 1, 1>, scalar_prefetch = 0 : i64, scratch_operands = 3 : i64, tpu.core_type = #tpu.core_type<tc>, window_params = [{transform_indices = @transform_0, window_bounds = array<i64: 1, 8, 32>}, {transform_indices = @transform_1, window_bounds = array<i64: 1, 8, 32>}, {transform_indices = @transform_2, window_bounds = array<i64: 1, 8, 32>}, {transform_indices = @transform_3, window_bounds = array<i64: 1, 8, 32>}, {pipeline_mode = #tpu.pipeline_mode<synchronous>, transform_indices = @transform_4, window_bounds = array<i64: 16, 32>}, {pipeline_mode = #tpu.pipeline_mode<synchronous>, transform_indices = @transform_5, window_bounds = array<i64: 16, 32>}, {pipeline_mode = #tpu.pipeline_mode<synchronous>, transform_indices = @transform_6, window_bounds = array<i64: 64, 32>}, {pipeline_mode = #tpu.pipeline_mode<synchronous>, transform_indices = @transform_7, window_bounds = array<i64: 64, 32>}, {pipeline_mode = #tpu.pipeline_mode<synchronous>, transform_indices = @transform_8, window_bounds = array<i64: 1, 32>}, {pipeline_mode = #tpu.pipeline_mode<synchronous>, transform_indices = @transform_9, window_bounds = array<i64: 1, 32>}, {transform_indices = @transform_10, window_bounds = array<i64: 1, 8, 32>}]} {
    %c0_i32 = arith.constant 0 : i32
    %0 = arith.cmpi eq, %arg2, %c0_i32 : i32
    %1 = arith.extui %0 : i1 to i32
    %c0_i32_0 = arith.constant 0 : i32
    %2 = arith.cmpi ne, %1, %c0_i32_0 : i32
    scf.if %2 {
      %cst = arith.constant -1.000000e+30 : f32
      %9 = vector.broadcast %cst : f32 to vector<4x8x1xf32>
      %c0 = arith.constant 0 : index
      %c0_3 = arith.constant 0 : index
      %c0_4 = arith.constant 0 : index
      %10 = vector.load %arg14[%c0, %c0_3, %c0_4] : memref<4x8x1xf32, #tpu.memory_space<vmem>>, vector<4x8x1xf32>
      tpu.vector_store %arg14[%c0, %c0_3, %c0_4], %9 {strides = array<i32>} : memref<4x8x1xf32, #tpu.memory_space<vmem>>, vector<4x8x1xf32>,
      %cst_5 = arith.constant 0.000000e+00 : f32
      %11 = vector.broadcast %cst_5 : f32 to vector<4x8x1xf32>
      %c0_6 = arith.constant 0 : index
      %c0_7 = arith.constant 0 : index
      %c0_8 = arith.constant 0 : index
      %12 = vector.load %arg15[%c0_6, %c0_7, %c0_8] : memref<4x8x1xf32, #tpu.memory_space<vmem>>, vector<4x8x1xf32>
      tpu.vector_store %arg15[%c0_6, %c0_7, %c0_8], %11 {strides = array<i32>} : memref<4x8x1xf32, #tpu.memory_space<vmem>>, vector<4x8x1xf32>,
      %cst_9 = arith.constant 0.000000e+00 : f32
      %13 = vector.broadcast %cst_9 : f32 to vector<8x32xf32>
      %c0_10 = arith.constant 0 : index
      %c0_11 = arith.constant 0 : index
      %14 = vector.load %arg16[%c0_10, %c0_11] : memref<8x32xf32, #tpu.memory_space<vmem>>, vector<8x32xf32>
      tpu.vector_store %arg16[%c0_10, %c0_11], %13 {strides = array<i32>} : memref<8x32xf32, #tpu.memory_space<vmem>>, vector<8x32xf32>,
    } else {
    }
    %3 = arith.cmpi slt, %arg2, %arg1 : i32
    %4 = arith.extui %3 : i1 to i32
    %c0_i32_1 = arith.constant 0 : i32
    %5 = arith.cmpi ne, %4, %c0_i32_1 : i32
    scf.if %5 {
      %c0 = arith.constant 0 : index
      %c0_3 = arith.constant 0 : index
      %c0_4 = arith.constant 0 : index
      %9 = vector.load %arg3[%c0, %c0_3, %c0_4] : memref<1x8x32xbf16, #tpu.memory_space<vmem>>, vector<1x8x32xbf16>
      %10 = vector.shape_cast %9 : vector<1x8x32xbf16> to vector<8x32xbf16>
      %c0_5 = arith.constant 0 : index
      %c0_6 = arith.constant 0 : index
      %c0_7 = arith.constant 0 : index
      %11 = vector.load %arg4[%c0_5, %c0_6, %c0_7] : memref<1x8x32xbf16, #tpu.memory_space<vmem>>, vector<1x8x32xbf16>
      %12 = vector.shape_cast %11 : vector<1x8x32xbf16> to vector<8x32xbf16>
      %c0_8 = arith.constant 0 : index
      %c0_9 = arith.constant 0 : index
      %c0_10 = arith.constant 0 : index
      %13 = vector.load %arg5[%c0_8, %c0_9, %c0_10] : memref<1x8x32xbf16, #tpu.memory_space<vmem>>, vector<1x8x32xbf16>
      %14 = vector.shape_cast %13 : vector<1x8x32xbf16> to vector<8x32xbf16>
      %15 = vector.extract_strided_slice %10 {offsets = [0, 0], sizes = [8, 8], strides = [1, 1]} : vector<8x32xbf16> to vector<8x8xbf16>
      %16 = vector.extract_strided_slice %12 {offsets = [0, 0], sizes = [8, 8], strides = [1, 1]} : vector<8x32xbf16> to vector<8x8xbf16>
      %cst = arith.constant dense<0.000000e+00> : vector<8x8xf32>
      %17 = tpu.matmul %15, %16, %cst {dimension_numbers = #tpu.dot_dimension_numbers<[1], [1], [0], [0], [0, 0, 1, 0], [], []>} : vector<8x8xbf16>, vector<8x8xbf16>, vector<8x8xf32> -> vector<8x8xf32>
      %cst_11 = arith.constant 0.353553385 : f32
      %18 = vector.broadcast %cst_11 : f32 to vector<8x8xf32>
      %19 = arith.mulf %17, %18 : vector<8x8xf32>
      %c0_12 = arith.constant 0 : index
      %c0_13 = arith.constant 0 : index
      %c0_14 = arith.constant 0 : index
      %20 = vector.load %arg14[%c0_12, %c0_13, %c0_14] : memref<4x8x1xf32, #tpu.memory_space<vmem>>, vector<1x8x1xf32>
      %21 = vector.shape_cast %20 : vector<1x8x1xf32> to vector<8x1xf32>
      %cst_15 = arith.constant dense<0xFF800000> : vector<8xf32>
      %22 = vector.multi_reduction <maximumf>, %19, %cst_15 [1] : vector<8x8xf32> to vector<8xf32>
      %23 = vector.shape_cast %22 : vector<8xf32> to vector<8x1xf32>
      %24 = arith.maximumf %21, %23 : vector<8x1xf32>
      %25 = arith.subf %21, %24 : vector<8x1xf32>
      %26 = math.exp %25 : vector<8x1xf32>
      %27 = vector.broadcast %24 : vector<8x1xf32> to vector<8x8xf32>
      %28 = arith.subf %19, %27 : vector<8x8xf32>
      %29 = math.exp %28 : vector<8x8xf32>
      %c0_16 = arith.constant 0 : index
      %c0_17 = arith.constant 0 : index
      %c0_18 = arith.constant 0 : index
      %30 = vector.load %arg15[%c0_16, %c0_17, %c0_18] : memref<4x8x1xf32, #tpu.memory_space<vmem>>, vector<1x8x1xf32>
      %31 = vector.shape_cast %30 : vector<1x8x1xf32> to vector<8x1xf32>
      %32 = arith.mulf %26, %31 : vector<8x1xf32>
      %cst_19 = arith.constant dense<0.000000e+00> : vector<8xf32>
      %33 = vector.multi_reduction <add>, %29, %cst_19 [1] : vector<8x8xf32> to vector<8xf32>
      %34 = vector.shape_cast %33 : vector<8xf32> to vector<8x1xf32>
      %35 = arith.addf %32, %34 : vector<8x1xf32>
      %c0_20 = arith.constant 0 : index
      %c0_21 = arith.constant 0 : index
      %c0_22 = arith.constant 0 : index
      %36 = vector.load %arg15[%c0_20, %c0_21, %c0_22] : memref<4x8x1xf32, #tpu.memory_space<vmem>>, vector<1x8x1xf32>
      %37 = vector.shape_cast %36 : vector<1x8x1xf32> to vector<8x1xf32>
      %38 = vector.shape_cast %35 : vector<8x1xf32> to vector<1x8x1xf32>
      tpu.vector_store %arg15[%c0_20, %c0_21, %c0_22], %38 {strides = array<i32>} : memref<4x8x1xf32, #tpu.memory_space<vmem>>, vector<1x8x1xf32>,
      %c0_23 = arith.constant 0 : index
      %c0_24 = arith.constant 0 : index
      %39 = vector.load %arg16[%c0_23, %c0_24] : memref<8x32xf32, #tpu.memory_space<vmem>>, vector<8x8xf32>
      %40 = vector.broadcast %26 : vector<8x1xf32> to vector<8x8xf32>
      %41 = arith.mulf %40, %39 : vector<8x8xf32>
      %42 = arith.truncf %29 : vector<8x8xf32> to vector<8x8xbf16>
      %43 = vector.extract_strided_slice %14 {offsets = [0, 0], sizes = [8, 8], strides = [1, 1]} : vector<8x32xbf16> to vector<8x8xbf16>
      %cst_25 = arith.constant dense<0.000000e+00> : vector<8x8xf32>
      %44 = tpu.matmul %42, %43, %cst_25 {dimension_numbers = #tpu.dot_dimension_numbers<[1], [0], [0], [1], [0, 0, 1, 1], [], []>} : vector<8x8xbf16>, vector<8x8xbf16>, vector<8x8xf32> -> vector<8x8xf32>
      %45 = arith.addf %41, %44 : vector<8x8xf32>
      %c0_26 = arith.constant 0 : index
      %c0_27 = arith.constant 0 : index
      %46 = vector.load %arg16[%c0_26, %c0_27] : memref<8x32xf32, #tpu.memory_space<vmem>>, vector<8x8xf32>
      tpu.vector_store %arg16[%c0_26, %c0_27], %45 {strides = array<i32>} : memref<8x32xf32, #tpu.memory_space<vmem>>, vector<8x8xf32>,
      %c0_28 = arith.constant 0 : index
      %c0_29 = arith.constant 0 : index
      %c0_30 = arith.constant 0 : index
      %47 = vector.load %arg14[%c0_28, %c0_29, %c0_30] : memref<4x8x1xf32, #tpu.memory_space<vmem>>, vector<1x8x1xf32>
      %48 = vector.shape_cast %47 : vector<1x8x1xf32> to vector<8x1xf32>
      %49 = vector.shape_cast %24 : vector<8x1xf32> to vector<1x8x1xf32>
      tpu.vector_store %arg14[%c0_28, %c0_29, %c0_30], %49 {strides = array<i32>} : memref<4x8x1xf32, #tpu.memory_space<vmem>>, vector<1x8x1xf32>,
      %50 = vector.extract_strided_slice %10 {offsets = [0, 8], sizes = [8, 8], strides = [1, 1]} : vector<8x32xbf16> to vector<8x8xbf16>
      %51 = vector.extract_strided_slice %12 {offsets = [0, 8], sizes = [8, 8], strides = [1, 1]} : vector<8x32xbf16> to vector<8x8xbf16>
      %cst_31 = arith.constant dense<0.000000e+00> : vector<8x8xf32>
      %52 = tpu.matmul %50, %51, %cst_31 {dimension_numbers = #tpu.dot_dimension_numbers<[1], [1], [0], [0], [0, 0, 1, 0], [], []>} : vector<8x8xbf16>, vector<8x8xbf16>, vector<8x8xf32> -> vector<8x8xf32>
      %cst_32 = arith.constant 0.353553385 : f32
      %53 = vector.broadcast %cst_32 : f32 to vector<8x8xf32>
      %54 = arith.mulf %52, %53 : vector<8x8xf32>
      %c1 = arith.constant 1 : index
      %c0_33 = arith.constant 0 : index
      %c0_34 = arith.constant 0 : index
      %55 = vector.load %arg14[%c1, %c0_33, %c0_34] : memref<4x8x1xf32, #tpu.memory_space<vmem>>, vector<1x8x1xf32>
      %56 = vector.shape_cast %55 : vector<1x8x1xf32> to vector<8x1xf32>
      %cst_35 = arith.constant dense<0xFF800000> : vector<8xf32>
      %57 = vector.multi_reduction <maximumf>, %54, %cst_35 [1] : vector<8x8xf32> to vector<8xf32>
      %58 = vector.shape_cast %57 : vector<8xf32> to vector<8x1xf32>
      %59 = arith.maximumf %56, %58 : vector<8x1xf32>
      %60 = arith.subf %56, %59 : vector<8x1xf32>
      %61 = math.exp %60 : vector<8x1xf32>
      %62 = vector.broadcast %59 : vector<8x1xf32> to vector<8x8xf32>
      %63 = arith.subf %54, %62 : vector<8x8xf32>
      %64 = math.exp %63 : vector<8x8xf32>
      %c1_36 = arith.constant 1 : index
      %c0_37 = arith.constant 0 : index
      %c0_38 = arith.constant 0 : index
      %65 = vector.load %arg15[%c1_36, %c0_37, %c0_38] : memref<4x8x1xf32, #tpu.memory_space<vmem>>, vector<1x8x1xf32>
      %66 = vector.shape_cast %65 : vector<1x8x1xf32> to vector<8x1xf32>
      %67 = arith.mulf %61, %66 : vector<8x1xf32>
      %cst_39 = arith.constant dense<0.000000e+00> : vector<8xf32>
      %68 = vector.multi_reduction <add>, %64, %cst_39 [1] : vector<8x8xf32> to vector<8xf32>
      %69 = vector.shape_cast %68 : vector<8xf32> to vector<8x1xf32>
      %70 = arith.addf %67, %69 : vector<8x1xf32>
      %c1_40 = arith.constant 1 : index
      %c0_41 = arith.constant 0 : index
      %c0_42 = arith.constant 0 : index
      %71 = vector.load %arg15[%c1_40, %c0_41, %c0_42] : memref<4x8x1xf32, #tpu.memory_space<vmem>>, vector<1x8x1xf32>
      %72 = vector.shape_cast %71 : vector<1x8x1xf32> to vector<8x1xf32>
      %73 = vector.shape_cast %70 : vector<8x1xf32> to vector<1x8x1xf32>
      tpu.vector_store %arg15[%c1_40, %c0_41, %c0_42], %73 {strides = array<i32>} : memref<4x8x1xf32, #tpu.memory_space<vmem>>, vector<1x8x1xf32>,
      %c0_43 = arith.constant 0 : index
      %c8 = arith.constant 8 : index
      %74 = vector.load %arg16[%c0_43, %c8] : memref<8x32xf32, #tpu.memory_space<vmem>>, vector<8x8xf32>
      %75 = vector.broadcast %61 : vector<8x1xf32> to vector<8x8xf32>
      %76 = arith.mulf %75, %74 : vector<8x8xf32>
      %77 = arith.truncf %64 : vector<8x8xf32> to vector<8x8xbf16>
      %78 = vector.extract_strided_slice %14 {offsets = [0, 8], sizes = [8, 8], strides = [1, 1]} : vector<8x32xbf16> to vector<8x8xbf16>
      %cst_44 = arith.constant dense<0.000000e+00> : vector<8x8xf32>
      %79 = tpu.matmul %77, %78, %cst_44 {dimension_numbers = #tpu.dot_dimension_numbers<[1], [0], [0], [1], [0, 0, 1, 1], [], []>} : vector<8x8xbf16>, vector<8x8xbf16>, vector<8x8xf32> -> vector<8x8xf32>
      %80 = arith.addf %76, %79 : vector<8x8xf32>
      %c0_45 = arith.constant 0 : index
      %c8_46 = arith.constant 8 : index
      %81 = vector.load %arg16[%c0_45, %c8_46] : memref<8x32xf32, #tpu.memory_space<vmem>>, vector<8x8xf32>
      tpu.vector_store %arg16[%c0_45, %c8_46], %80 {strides = array<i32>} : memref<8x32xf32, #tpu.memory_space<vmem>>, vector<8x8xf32>,
      %c1_47 = arith.constant 1 : index
      %c0_48 = arith.constant 0 : index
      %c0_49 = arith.constant 0 : index
      %82 = vector.load %arg14[%c1_47, %c0_48, %c0_49] : memref<4x8x1xf32, #tpu.memory_space<vmem>>, vector<1x8x1xf32>
      %83 = vector.shape_cast %82 : vector<1x8x1xf32> to vector<8x1xf32>
      %84 = vector.shape_cast %59 : vector<8x1xf32> to vector<1x8x1xf32>
      tpu.vector_store %arg14[%c1_47, %c0_48, %c0_49], %84 {strides = array<i32>} : memref<4x8x1xf32, #tpu.memory_space<vmem>>, vector<1x8x1xf32>,
      %85 = vector.extract_strided_slice %10 {offsets = [0, 16], sizes = [8, 8], strides = [1, 1]} : vector<8x32xbf16> to vector<8x8xbf16>
      %86 = vector.extract_strided_slice %12 {offsets = [0, 16], sizes = [8, 8], strides = [1, 1]} : vector<8x32xbf16> to vector<8x8xbf16>
      %cst_50 = arith.constant dense<0.000000e+00> : vector<8x8xf32>
      %87 = tpu.matmul %85, %86, %cst_50 {dimension_numbers = #tpu.dot_dimension_numbers<[1], [1], [0], [0], [0, 0, 1, 0], [], []>} : vector<8x8xbf16>, vector<8x8xbf16>, vector<8x8xf32> -> vector<8x8xf32>
      %cst_51 = arith.constant 0.353553385 : f32
      %88 = vector.broadcast %cst_51 : f32 to vector<8x8xf32>
      %89 = arith.mulf %87, %88 : vector<8x8xf32>
      %c2 = arith.constant 2 : index
      %c0_52 = arith.constant 0 : index
      %c0_53 = arith.constant 0 : index
      %90 = vector.load %arg14[%c2, %c0_52, %c0_53] : memref<4x8x1xf32, #tpu.memory_space<vmem>>, vector<1x8x1xf32>
      %91 = vector.shape_cast %90 : vector<1x8x1xf32> to vector<8x1xf32>
      %cst_54 = arith.constant dense<0xFF800000> : vector<8xf32>
      %92 = vector.multi_reduction <maximumf>, %89, %cst_54 [1] : vector<8x8xf32> to vector<8xf32>
      %93 = vector.shape_cast %92 : vector<8xf32> to vector<8x1xf32>
      %94 = arith.maximumf %91, %93 : vector<8x1xf32>
      %95 = arith.subf %91, %94 : vector<8x1xf32>
      %96 = math.exp %95 : vector<8x1xf32>
      %97 = vector.broadcast %94 : vector<8x1xf32> to vector<8x8xf32>
      %98 = arith.subf %89, %97 : vector<8x8xf32>
      %99 = math.exp %98 : vector<8x8xf32>
      %c2_55 = arith.constant 2 : index
      %c0_56 = arith.constant 0 : index
      %c0_57 = arith.constant 0 : index
      %100 = vector.load %arg15[%c2_55, %c0_56, %c0_57] : memref<4x8x1xf32, #tpu.memory_space<vmem>>, vector<1x8x1xf32>
      %101 = vector.shape_cast %100 : vector<1x8x1xf32> to vector<8x1xf32>
      %102 = arith.mulf %96, %101 : vector<8x1xf32>
      %cst_58 = arith.constant dense<0.000000e+00> : vector<8xf32>
      %103 = vector.multi_reduction <add>, %99, %cst_58 [1] : vector<8x8xf32> to vector<8xf32>
      %104 = vector.shape_cast %103 : vector<8xf32> to vector<8x1xf32>
      %105 = arith.addf %102, %104 : vector<8x1xf32>
      %c2_59 = arith.constant 2 : index
      %c0_60 = arith.constant 0 : index
      %c0_61 = arith.constant 0 : index
      %106 = vector.load %arg15[%c2_59, %c0_60, %c0_61] : memref<4x8x1xf32, #tpu.memory_space<vmem>>, vector<1x8x1xf32>
      %107 = vector.shape_cast %106 : vector<1x8x1xf32> to vector<8x1xf32>
      %108 = vector.shape_cast %105 : vector<8x1xf32> to vector<1x8x1xf32>
      tpu.vector_store %arg15[%c2_59, %c0_60, %c0_61], %108 {strides = array<i32>} : memref<4x8x1xf32, #tpu.memory_space<vmem>>, vector<1x8x1xf32>,
      %c0_62 = arith.constant 0 : index
      %c16 = arith.constant 16 : index
      %109 = vector.load %arg16[%c0_62, %c16] : memref<8x32xf32, #tpu.memory_space<vmem>>, vector<8x8xf32>
      %110 = vector.broadcast %96 : vector<8x1xf32> to vector<8x8xf32>
      %111 = arith.mulf %110, %109 : vector<8x8xf32>
      %112 = arith.truncf %99 : vector<8x8xf32> to vector<8x8xbf16>
      %113 = vector.extract_strided_slice %14 {offsets = [0, 16], sizes = [8, 8], strides = [1, 1]} : vector<8x32xbf16> to vector<8x8xbf16>
      %cst_63 = arith.constant dense<0.000000e+00> : vector<8x8xf32>
      %114 = tpu.matmul %112, %113, %cst_63 {dimension_numbers = #tpu.dot_dimension_numbers<[1], [0], [0], [1], [0, 0, 1, 1], [], []>} : vector<8x8xbf16>, vector<8x8xbf16>, vector<8x8xf32> -> vector<8x8xf32>
      %115 = arith.addf %111, %114 : vector<8x8xf32>
      %c0_64 = arith.constant 0 : index
      %c16_65 = arith.constant 16 : index
      %116 = vector.load %arg16[%c0_64, %c16_65] : memref<8x32xf32, #tpu.memory_space<vmem>>, vector<8x8xf32>
      tpu.vector_store %arg16[%c0_64, %c16_65], %115 {strides = array<i32>} : memref<8x32xf32, #tpu.memory_space<vmem>>, vector<8x8xf32>,
      %c2_66 = arith.constant 2 : index
      %c0_67 = arith.constant 0 : index
      %c0_68 = arith.constant 0 : index
      %117 = vector.load %arg14[%c2_66, %c0_67, %c0_68] : memref<4x8x1xf32, #tpu.memory_space<vmem>>, vector<1x8x1xf32>
      %118 = vector.shape_cast %117 : vector<1x8x1xf32> to vector<8x1xf32>
      %119 = vector.shape_cast %94 : vector<8x1xf32> to vector<1x8x1xf32>
      tpu.vector_store %arg14[%c2_66, %c0_67, %c0_68], %119 {strides = array<i32>} : memref<4x8x1xf32, #tpu.memory_space<vmem>>, vector<1x8x1xf32>,
      %120 = vector.extract_strided_slice %10 {offsets = [0, 24], sizes = [8, 8], strides = [1, 1]} : vector<8x32xbf16> to vector<8x8xbf16>
      %121 = vector.extract_strided_slice %12 {offsets = [0, 24], sizes = [8, 8], strides = [1, 1]} : vector<8x32xbf16> to vector<8x8xbf16>
      %cst_69 = arith.constant dense<0.000000e+00> : vector<8x8xf32>
      %122 = tpu.matmul %120, %121, %cst_69 {dimension_numbers = #tpu.dot_dimension_numbers<[1], [1], [0], [0], [0, 0, 1, 0], [], []>} : vector<8x8xbf16>, vector<8x8xbf16>, vector<8x8xf32> -> vector<8x8xf32>
      %cst_70 = arith.constant 0.353553385 : f32
      %123 = vector.broadcast %cst_70 : f32 to vector<8x8xf32>
      %124 = arith.mulf %122, %123 : vector<8x8xf32>
      %c3 = arith.constant 3 : index
      %c0_71 = arith.constant 0 : index
      %c0_72 = arith.constant 0 : index
      %125 = vector.load %arg14[%c3, %c0_71, %c0_72] : memref<4x8x1xf32, #tpu.memory_space<vmem>>, vector<1x8x1xf32>
      %126 = vector.shape_cast %125 : vector<1x8x1xf32> to vector<8x1xf32>
      %cst_73 = arith.constant dense<0xFF800000> : vector<8xf32>
      %127 = vector.multi_reduction <maximumf>, %124, %cst_73 [1] : vector<8x8xf32> to vector<8xf32>
      %128 = vector.shape_cast %127 : vector<8xf32> to vector<8x1xf32>
      %129 = arith.maximumf %126, %128 : vector<8x1xf32>
      %130 = arith.subf %126, %129 : vector<8x1xf32>
      %131 = math.exp %130 : vector<8x1xf32>
      %132 = vector.broadcast %129 : vector<8x1xf32> to vector<8x8xf32>
      %133 = arith.subf %124, %132 : vector<8x8xf32>
      %134 = math.exp %133 : vector<8x8xf32>
      %c3_74 = arith.constant 3 : index
      %c0_75 = arith.constant 0 : index
      %c0_76 = arith.constant 0 : index
      %135 = vector.load %arg15[%c3_74, %c0_75, %c0_76] : memref<4x8x1xf32, #tpu.memory_space<vmem>>, vector<1x8x1xf32>
      %136 = vector.shape_cast %135 : vector<1x8x1xf32> to vector<8x1xf32>
      %137 = arith.mulf %131, %136 : vector<8x1xf32>
      %cst_77 = arith.constant dense<0.000000e+00> : vector<8xf32>
      %138 = vector.multi_reduction <add>, %134, %cst_77 [1] : vector<8x8xf32> to vector<8xf32>
      %139 = vector.shape_cast %138 : vector<8xf32> to vector<8x1xf32>
      %140 = arith.addf %137, %139 : vector<8x1xf32>
      %c3_78 = arith.constant 3 : index
      %c0_79 = arith.constant 0 : index
      %c0_80 = arith.constant 0 : index
      %141 = vector.load %arg15[%c3_78, %c0_79, %c0_80] : memref<4x8x1xf32, #tpu.memory_space<vmem>>, vector<1x8x1xf32>
      %142 = vector.shape_cast %141 : vector<1x8x1xf32> to vector<8x1xf32>
      %143 = vector.shape_cast %140 : vector<8x1xf32> to vector<1x8x1xf32>
      tpu.vector_store %arg15[%c3_78, %c0_79, %c0_80], %143 {strides = array<i32>} : memref<4x8x1xf32, #tpu.memory_space<vmem>>, vector<1x8x1xf32>,
      %c0_81 = arith.constant 0 : index
      %c24 = arith.constant 24 : index
      %144 = vector.load %arg16[%c0_81, %c24] : memref<8x32xf32, #tpu.memory_space<vmem>>, vector<8x8xf32>
      %145 = vector.broadcast %131 : vector<8x1xf32> to vector<8x8xf32>
      %146 = arith.mulf %145, %144 : vector<8x8xf32>
      %147 = arith.truncf %134 : vector<8x8xf32> to vector<8x8xbf16>
      %148 = vector.extract_strided_slice %14 {offsets = [0, 24], sizes = [8, 8], strides = [1, 1]} : vector<8x32xbf16> to vector<8x8xbf16>
      %cst_82 = arith.constant dense<0.000000e+00> : vector<8x8xf32>
      %149 = tpu.matmul %147, %148, %cst_82 {dimension_numbers = #tpu.dot_dimension_numbers<[1], [0], [0], [1], [0, 0, 1, 1], [], []>} : vector<8x8xbf16>, vector<8x8xbf16>, vector<8x8xf32> -> vector<8x8xf32>
      %150 = arith.addf %146, %149 : vector<8x8xf32>
      %c0_83 = arith.constant 0 : index
      %c24_84 = arith.constant 24 : index
      %151 = vector.load %arg16[%c0_83, %c24_84] : memref<8x32xf32, #tpu.memory_space<vmem>>, vector<8x8xf32>
      tpu.vector_store %arg16[%c0_83, %c24_84], %150 {strides = array<i32>} : memref<8x32xf32, #tpu.memory_space<vmem>>, vector<8x8xf32>,
      %c3_85 = arith.constant 3 : index
      %c0_86 = arith.constant 0 : index
      %c0_87 = arith.constant 0 : index
      %152 = vector.load %arg14[%c3_85, %c0_86, %c0_87] : memref<4x8x1xf32, #tpu.memory_space<vmem>>, vector<1x8x1xf32>
      %153 = vector.shape_cast %152 : vector<1x8x1xf32> to vector<8x1xf32>
      %154 = vector.shape_cast %129 : vector<8x1xf32> to vector<1x8x1xf32>
      tpu.vector_store %arg14[%c3_85, %c0_86, %c0_87], %154 {strides = array<i32>} : memref<4x8x1xf32, #tpu.memory_space<vmem>>, vector<1x8x1xf32>,
    } else {
    }
    %6 = arith.cmpi eq, %arg2, %arg1 : i32
    %7 = arith.extui %6 : i1 to i32
    %c0_i32_2 = arith.constant 0 : i32
    %8 = arith.cmpi ne, %7, %c0_i32_2 : i32
    scf.if %8 {
      %c0 = arith.constant 0 : index
      %c0_3 = arith.constant 0 : index
      %c0_4 = arith.constant 0 : index
      %9 = vector.load %arg3[%c0, %c0_3, %c0_4] : memref<1x8x32xbf16, #tpu.memory_space<vmem>>, vector<1x8x32xbf16>
      %10 = vector.shape_cast %9 : vector<1x8x32xbf16> to vector<8x32xbf16>
      %c0_5 = arith.constant 0 : index
      %c0_6 = arith.constant 0 : index
      %c0_7 = arith.constant 0 : index
      %11 = vector.load %arg4[%c0_5, %c0_6, %c0_7] : memref<1x8x32xbf16, #tpu.memory_space<vmem>>, vector<1x8x32xbf16>
      %12 = vector.shape_cast %11 : vector<1x8x32xbf16> to vector<8x32xbf16>
      %c0_8 = arith.constant 0 : index
      %c0_9 = arith.constant 0 : index
      %c0_10 = arith.constant 0 : index
      %13 = vector.load %arg5[%c0_8, %c0_9, %c0_10] : memref<1x8x32xbf16, #tpu.memory_space<vmem>>, vector<1x8x32xbf16>
      %14 = vector.shape_cast %13 : vector<1x8x32xbf16> to vector<8x32xbf16>
      %c8_i32 = arith.constant 8 : i32
      %15 = arith.muli %arg1, %c8_i32 : i32
      %16 = tpu.iota {dimensions = array<i32: 0>} : vector<8x8xi32>
      %17 = vector.broadcast %15 : i32 to vector<8x8xi32>
      %18 = arith.addi %17, %16 : vector<8x8xi32>
      %c8_i32_11 = arith.constant 8 : i32
      %19 = arith.muli %arg2, %c8_i32_11 : i32
      %20 = tpu.iota {dimensions = array<i32: 1>} : vector<8x8xi32>
      %21 = vector.broadcast %19 : i32 to vector<8x8xi32>
      %22 = arith.addi %21, %20 : vector<8x8xi32>
      %23 = arith.cmpi sgt, %22, %18 : vector<8x8xi32>
      %cst = arith.constant -1.000000e+09 : f32
      %cst_12 = arith.constant 0.000000e+00 : f32
      %24 = vector.broadcast %cst : f32 to vector<8x8xf32>
      %25 = vector.broadcast %cst_12 : f32 to vector<8x8xf32>
      %26 = arith.select %23, %24, %25 : vector<8x8xi1>, vector<8x8xf32>
      %27 = vector.extract_strided_slice %10 {offsets = [0, 0], sizes = [8, 8], strides = [1, 1]} : vector<8x32xbf16> to vector<8x8xbf16>
      %28 = vector.extract_strided_slice %12 {offsets = [0, 0], sizes = [8, 8], strides = [1, 1]} : vector<8x32xbf16> to vector<8x8xbf16>
      %cst_13 = arith.constant dense<0.000000e+00> : vector<8x8xf32>
      %29 = tpu.matmul %27, %28, %cst_13 {dimension_numbers = #tpu.dot_dimension_numbers<[1], [1], [0], [0], [0, 0, 1, 0], [], []>} : vector<8x8xbf16>, vector<8x8xbf16>, vector<8x8xf32> -> vector<8x8xf32>
      %cst_14 = arith.constant 0.353553385 : f32
      %30 = vector.broadcast %cst_14 : f32 to vector<8x8xf32>
      %31 = arith.mulf %29, %30 : vector<8x8xf32>
      %32 = arith.addf %31, %26 : vector<8x8xf32>
      %c0_15 = arith.constant 0 : index
      %c0_16 = arith.constant 0 : index
      %c0_17 = arith.constant 0 : index
      %33 = vector.load %arg14[%c0_15, %c0_16, %c0_17] : memref<4x8x1xf32, #tpu.memory_space<vmem>>, vector<1x8x1xf32>
      %34 = vector.shape_cast %33 : vector<1x8x1xf32> to vector<8x1xf32>
      %cst_18 = arith.constant dense<0xFF800000> : vector<8xf32>
      %35 = vector.multi_reduction <maximumf>, %32, %cst_18 [1] : vector<8x8xf32> to vector<8xf32>
      %36 = vector.shape_cast %35 : vector<8xf32> to vector<8x1xf32>
      %37 = arith.maximumf %34, %36 : vector<8x1xf32>
      %38 = arith.subf %34, %37 : vector<8x1xf32>
      %39 = math.exp %38 : vector<8x1xf32>
      %40 = vector.broadcast %37 : vector<8x1xf32> to vector<8x8xf32>
      %41 = arith.subf %32, %40 : vector<8x8xf32>
      %42 = math.exp %41 : vector<8x8xf32>
      %c0_19 = arith.constant 0 : index
      %c0_20 = arith.constant 0 : index
      %c0_21 = arith.constant 0 : index
      %43 = vector.load %arg15[%c0_19, %c0_20, %c0_21] : memref<4x8x1xf32, #tpu.memory_space<vmem>>, vector<1x8x1xf32>
      %44 = vector.shape_cast %43 : vector<1x8x1xf32> to vector<8x1xf32>
      %45 = arith.mulf %39, %44 : vector<8x1xf32>
      %cst_22 = arith.constant dense<0.000000e+00> : vector<8xf32>
      %46 = vector.multi_reduction <add>, %42, %cst_22 [1] : vector<8x8xf32> to vector<8xf32>
      %47 = vector.shape_cast %46 : vector<8xf32> to vector<8x1xf32>
      %48 = arith.addf %45, %47 : vector<8x1xf32>
      %c0_23 = arith.constant 0 : index
      %c0_24 = arith.constant 0 : index
      %c0_25 = arith.constant 0 : index
      %49 = vector.load %arg15[%c0_23, %c0_24, %c0_25] : memref<4x8x1xf32, #tpu.memory_space<vmem>>, vector<1x8x1xf32>
      %50 = vector.shape_cast %49 : vector<1x8x1xf32> to vector<8x1xf32>
      %51 = vector.shape_cast %48 : vector<8x1xf32> to vector<1x8x1xf32>
      tpu.vector_store %arg15[%c0_23, %c0_24, %c0_25], %51 {strides = array<i32>} : memref<4x8x1xf32, #tpu.memory_space<vmem>>, vector<1x8x1xf32>,
      %c0_26 = arith.constant 0 : index
      %c0_27 = arith.constant 0 : index
      %52 = vector.load %arg16[%c0_26, %c0_27] : memref<8x32xf32, #tpu.memory_space<vmem>>, vector<8x8xf32>
      %53 = vector.broadcast %39 : vector<8x1xf32> to vector<8x8xf32>
      %54 = arith.mulf %53, %52 : vector<8x8xf32>
      %55 = arith.truncf %42 : vector<8x8xf32> to vector<8x8xbf16>
      %56 = vector.extract_strided_slice %14 {offsets = [0, 0], sizes = [8, 8], strides = [1, 1]} : vector<8x32xbf16> to vector<8x8xbf16>
      %cst_28 = arith.constant dense<0.000000e+00> : vector<8x8xf32>
      %57 = tpu.matmul %55, %56, %cst_28 {dimension_numbers = #tpu.dot_dimension_numbers<[1], [0], [0], [1], [0, 0, 1, 1], [], []>} : vector<8x8xbf16>, vector<8x8xbf16>, vector<8x8xf32> -> vector<8x8xf32>
      %58 = arith.addf %54, %57 : vector<8x8xf32>
      %c0_29 = arith.constant 0 : index
      %c0_30 = arith.constant 0 : index
      %59 = vector.load %arg16[%c0_29, %c0_30] : memref<8x32xf32, #tpu.memory_space<vmem>>, vector<8x8xf32>
      tpu.vector_store %arg16[%c0_29, %c0_30], %58 {strides = array<i32>} : memref<8x32xf32, #tpu.memory_space<vmem>>, vector<8x8xf32>,
      %c0_31 = arith.constant 0 : index
      %c0_32 = arith.constant 0 : index
      %c0_33 = arith.constant 0 : index
      %60 = vector.load %arg14[%c0_31, %c0_32, %c0_33] : memref<4x8x1xf32, #tpu.memory_space<vmem>>, vector<1x8x1xf32>
      %61 = vector.shape_cast %60 : vector<1x8x1xf32> to vector<8x1xf32>
      %62 = vector.shape_cast %37 : vector<8x1xf32> to vector<1x8x1xf32>
      tpu.vector_store %arg14[%c0_31, %c0_32, %c0_33], %62 {strides = array<i32>} : memref<4x8x1xf32, #tpu.memory_space<vmem>>, vector<1x8x1xf32>,
      %63 = vector.extract_strided_slice %10 {offsets = [0, 8], sizes = [8, 8], strides = [1, 1]} : vector<8x32xbf16> to vector<8x8xbf16>
      %64 = vector.extract_strided_slice %12 {offsets = [0, 8], sizes = [8, 8], strides = [1, 1]} : vector<8x32xbf16> to vector<8x8xbf16>
      %cst_34 = arith.constant dense<0.000000e+00> : vector<8x8xf32>
      %65 = tpu.matmul %63, %64, %cst_34 {dimension_numbers = #tpu.dot_dimension_numbers<[1], [1], [0], [0], [0, 0, 1, 0], [], []>} : vector<8x8xbf16>, vector<8x8xbf16>, vector<8x8xf32> -> vector<8x8xf32>
      %cst_35 = arith.constant 0.353553385 : f32
      %66 = vector.broadcast %cst_35 : f32 to vector<8x8xf32>
      %67 = arith.mulf %65, %66 : vector<8x8xf32>
      %68 = arith.addf %67, %26 : vector<8x8xf32>
      %c1 = arith.constant 1 : index
      %c0_36 = arith.constant 0 : index
      %c0_37 = arith.constant 0 : index
      %69 = vector.load %arg14[%c1, %c0_36, %c0_37] : memref<4x8x1xf32, #tpu.memory_space<vmem>>, vector<1x8x1xf32>
      %70 = vector.shape_cast %69 : vector<1x8x1xf32> to vector<8x1xf32>
      %cst_38 = arith.constant dense<0xFF800000> : vector<8xf32>
      %71 = vector.multi_reduction <maximumf>, %68, %cst_38 [1] : vector<8x8xf32> to vector<8xf32>
      %72 = vector.shape_cast %71 : vector<8xf32> to vector<8x1xf32>
      %73 = arith.maximumf %70, %72 : vector<8x1xf32>
      %74 = arith.subf %70, %73 : vector<8x1xf32>
      %75 = math.exp %74 : vector<8x1xf32>
      %76 = vector.broadcast %73 : vector<8x1xf32> to vector<8x8xf32>
      %77 = arith.subf %68, %76 : vector<8x8xf32>
      %78 = math.exp %77 : vector<8x8xf32>
      %c1_39 = arith.constant 1 : index
      %c0_40 = arith.constant 0 : index
      %c0_41 = arith.constant 0 : index
      %79 = vector.load %arg15[%c1_39, %c0_40, %c0_41] : memref<4x8x1xf32, #tpu.memory_space<vmem>>, vector<1x8x1xf32>
      %80 = vector.shape_cast %79 : vector<1x8x1xf32> to vector<8x1xf32>
      %81 = arith.mulf %75, %80 : vector<8x1xf32>
      %cst_42 = arith.constant dense<0.000000e+00> : vector<8xf32>
      %82 = vector.multi_reduction <add>, %78, %cst_42 [1] : vector<8x8xf32> to vector<8xf32>
      %83 = vector.shape_cast %82 : vector<8xf32> to vector<8x1xf32>
      %84 = arith.addf %81, %83 : vector<8x1xf32>
      %c1_43 = arith.constant 1 : index
      %c0_44 = arith.constant 0 : index
      %c0_45 = arith.constant 0 : index
      %85 = vector.load %arg15[%c1_43, %c0_44, %c0_45] : memref<4x8x1xf32, #tpu.memory_space<vmem>>, vector<1x8x1xf32>
      %86 = vector.shape_cast %85 : vector<1x8x1xf32> to vector<8x1xf32>
      %87 = vector.shape_cast %84 : vector<8x1xf32> to vector<1x8x1xf32>
      tpu.vector_store %arg15[%c1_43, %c0_44, %c0_45], %87 {strides = array<i32>} : memref<4x8x1xf32, #tpu.memory_space<vmem>>, vector<1x8x1xf32>,
      %c0_46 = arith.constant 0 : index
      %c8 = arith.constant 8 : index
      %88 = vector.load %arg16[%c0_46, %c8] : memref<8x32xf32, #tpu.memory_space<vmem>>, vector<8x8xf32>
      %89 = vector.broadcast %75 : vector<8x1xf32> to vector<8x8xf32>
      %90 = arith.mulf %89, %88 : vector<8x8xf32>
      %91 = arith.truncf %78 : vector<8x8xf32> to vector<8x8xbf16>
      %92 = vector.extract_strided_slice %14 {offsets = [0, 8], sizes = [8, 8], strides = [1, 1]} : vector<8x32xbf16> to vector<8x8xbf16>
      %cst_47 = arith.constant dense<0.000000e+00> : vector<8x8xf32>
      %93 = tpu.matmul %91, %92, %cst_47 {dimension_numbers = #tpu.dot_dimension_numbers<[1], [0], [0], [1], [0, 0, 1, 1], [], []>} : vector<8x8xbf16>, vector<8x8xbf16>, vector<8x8xf32> -> vector<8x8xf32>
      %94 = arith.addf %90, %93 : vector<8x8xf32>
      %c0_48 = arith.constant 0 : index
      %c8_49 = arith.constant 8 : index
      %95 = vector.load %arg16[%c0_48, %c8_49] : memref<8x32xf32, #tpu.memory_space<vmem>>, vector<8x8xf32>
      tpu.vector_store %arg16[%c0_48, %c8_49], %94 {strides = array<i32>} : memref<8x32xf32, #tpu.memory_space<vmem>>, vector<8x8xf32>,
      %c1_50 = arith.constant 1 : index
      %c0_51 = arith.constant 0 : index
      %c0_52 = arith.constant 0 : index
      %96 = vector.load %arg14[%c1_50, %c0_51, %c0_52] : memref<4x8x1xf32, #tpu.memory_space<vmem>>, vector<1x8x1xf32>
      %97 = vector.shape_cast %96 : vector<1x8x1xf32> to vector<8x1xf32>
      %98 = vector.shape_cast %73 : vector<8x1xf32> to vector<1x8x1xf32>
      tpu.vector_store %arg14[%c1_50, %c0_51, %c0_52], %98 {strides = array<i32>} : memref<4x8x1xf32, #tpu.memory_space<vmem>>, vector<1x8x1xf32>,
      %99 = vector.extract_strided_slice %10 {offsets = [0, 16], sizes = [8, 8], strides = [1, 1]} : vector<8x32xbf16> to vector<8x8xbf16>
      %100 = vector.extract_strided_slice %12 {offsets = [0, 16], sizes = [8, 8], strides = [1, 1]} : vector<8x32xbf16> to vector<8x8xbf16>
      %cst_53 = arith.constant dense<0.000000e+00> : vector<8x8xf32>
      %101 = tpu.matmul %99, %100, %cst_53 {dimension_numbers = #tpu.dot_dimension_numbers<[1], [1], [0], [0], [0, 0, 1, 0], [], []>} : vector<8x8xbf16>, vector<8x8xbf16>, vector<8x8xf32> -> vector<8x8xf32>
      %cst_54 = arith.constant 0.353553385 : f32
      %102 = vector.broadcast %cst_54 : f32 to vector<8x8xf32>
      %103 = arith.mulf %101, %102 : vector<8x8xf32>
      %104 = arith.addf %103, %26 : vector<8x8xf32>
      %c2 = arith.constant 2 : index
      %c0_55 = arith.constant 0 : index
      %c0_56 = arith.constant 0 : index
      %105 = vector.load %arg14[%c2, %c0_55, %c0_56] : memref<4x8x1xf32, #tpu.memory_space<vmem>>, vector<1x8x1xf32>
      %106 = vector.shape_cast %105 : vector<1x8x1xf32> to vector<8x1xf32>
      %cst_57 = arith.constant dense<0xFF800000> : vector<8xf32>
      %107 = vector.multi_reduction <maximumf>, %104, %cst_57 [1] : vector<8x8xf32> to vector<8xf32>
      %108 = vector.shape_cast %107 : vector<8xf32> to vector<8x1xf32>
      %109 = arith.maximumf %106, %108 : vector<8x1xf32>
      %110 = arith.subf %106, %109 : vector<8x1xf32>
      %111 = math.exp %110 : vector<8x1xf32>
      %112 = vector.broadcast %109 : vector<8x1xf32> to vector<8x8xf32>
      %113 = arith.subf %104, %112 : vector<8x8xf32>
      %114 = math.exp %113 : vector<8x8xf32>
      %c2_58 = arith.constant 2 : index
      %c0_59 = arith.constant 0 : index
      %c0_60 = arith.constant 0 : index
      %115 = vector.load %arg15[%c2_58, %c0_59, %c0_60] : memref<4x8x1xf32, #tpu.memory_space<vmem>>, vector<1x8x1xf32>
      %116 = vector.shape_cast %115 : vector<1x8x1xf32> to vector<8x1xf32>
      %117 = arith.mulf %111, %116 : vector<8x1xf32>
      %cst_61 = arith.constant dense<0.000000e+00> : vector<8xf32>
      %118 = vector.multi_reduction <add>, %114, %cst_61 [1] : vector<8x8xf32> to vector<8xf32>
      %119 = vector.shape_cast %118 : vector<8xf32> to vector<8x1xf32>
      %120 = arith.addf %117, %119 : vector<8x1xf32>
      %c2_62 = arith.constant 2 : index
      %c0_63 = arith.constant 0 : index
      %c0_64 = arith.constant 0 : index
      %121 = vector.load %arg15[%c2_62, %c0_63, %c0_64] : memref<4x8x1xf32, #tpu.memory_space<vmem>>, vector<1x8x1xf32>
      %122 = vector.shape_cast %121 : vector<1x8x1xf32> to vector<8x1xf32>
      %123 = vector.shape_cast %120 : vector<8x1xf32> to vector<1x8x1xf32>
      tpu.vector_store %arg15[%c2_62, %c0_63, %c0_64], %123 {strides = array<i32>} : memref<4x8x1xf32, #tpu.memory_space<vmem>>, vector<1x8x1xf32>,
      %c0_65 = arith.constant 0 : index
      %c16 = arith.constant 16 : index
      %124 = vector.load %arg16[%c0_65, %c16] : memref<8x32xf32, #tpu.memory_space<vmem>>, vector<8x8xf32>
      %125 = vector.broadcast %111 : vector<8x1xf32> to vector<8x8xf32>
      %126 = arith.mulf %125, %124 : vector<8x8xf32>
      %127 = arith.truncf %114 : vector<8x8xf32> to vector<8x8xbf16>
      %128 = vector.extract_strided_slice %14 {offsets = [0, 16], sizes = [8, 8], strides = [1, 1]} : vector<8x32xbf16> to vector<8x8xbf16>
      %cst_66 = arith.constant dense<0.000000e+00> : vector<8x8xf32>
      %129 = tpu.matmul %127, %128, %cst_66 {dimension_numbers = #tpu.dot_dimension_numbers<[1], [0], [0], [1], [0, 0, 1, 1], [], []>} : vector<8x8xbf16>, vector<8x8xbf16>, vector<8x8xf32> -> vector<8x8xf32>
      %130 = arith.addf %126, %129 : vector<8x8xf32>
      %c0_67 = arith.constant 0 : index
      %c16_68 = arith.constant 16 : index
      %131 = vector.load %arg16[%c0_67, %c16_68] : memref<8x32xf32, #tpu.memory_space<vmem>>, vector<8x8xf32>
      tpu.vector_store %arg16[%c0_67, %c16_68], %130 {strides = array<i32>} : memref<8x32xf32, #tpu.memory_space<vmem>>, vector<8x8xf32>,
      %c2_69 = arith.constant 2 : index
      %c0_70 = arith.constant 0 : index
      %c0_71 = arith.constant 0 : index
      %132 = vector.load %arg14[%c2_69, %c0_70, %c0_71] : memref<4x8x1xf32, #tpu.memory_space<vmem>>, vector<1x8x1xf32>
      %133 = vector.shape_cast %132 : vector<1x8x1xf32> to vector<8x1xf32>
      %134 = vector.shape_cast %109 : vector<8x1xf32> to vector<1x8x1xf32>
      tpu.vector_store %arg14[%c2_69, %c0_70, %c0_71], %134 {strides = array<i32>} : memref<4x8x1xf32, #tpu.memory_space<vmem>>, vector<1x8x1xf32>,
      %135 = vector.extract_strided_slice %10 {offsets = [0, 24], sizes = [8, 8], strides = [1, 1]} : vector<8x32xbf16> to vector<8x8xbf16>
      %136 = vector.extract_strided_slice %12 {offsets = [0, 24], sizes = [8, 8], strides = [1, 1]} : vector<8x32xbf16> to vector<8x8xbf16>
      %cst_72 = arith.constant dense<0.000000e+00> : vector<8x8xf32>
      %137 = tpu.matmul %135, %136, %cst_72 {dimension_numbers = #tpu.dot_dimension_numbers<[1], [1], [0], [0], [0, 0, 1, 0], [], []>} : vector<8x8xbf16>, vector<8x8xbf16>, vector<8x8xf32> -> vector<8x8xf32>
      %cst_73 = arith.constant 0.353553385 : f32
      %138 = vector.broadcast %cst_73 : f32 to vector<8x8xf32>
      %139 = arith.mulf %137, %138 : vector<8x8xf32>
      %140 = arith.addf %139, %26 : vector<8x8xf32>
      %c3 = arith.constant 3 : index
      %c0_74 = arith.constant 0 : index
      %c0_75 = arith.constant 0 : index
      %141 = vector.load %arg14[%c3, %c0_74, %c0_75] : memref<4x8x1xf32, #tpu.memory_space<vmem>>, vector<1x8x1xf32>
      %142 = vector.shape_cast %141 : vector<1x8x1xf32> to vector<8x1xf32>
      %cst_76 = arith.constant dense<0xFF800000> : vector<8xf32>
      %143 = vector.multi_reduction <maximumf>, %140, %cst_76 [1] : vector<8x8xf32> to vector<8xf32>
      %144 = vector.shape_cast %143 : vector<8xf32> to vector<8x1xf32>
      %145 = arith.maximumf %142, %144 : vector<8x1xf32>
      %146 = arith.subf %142, %145 : vector<8x1xf32>
      %147 = math.exp %146 : vector<8x1xf32>
      %148 = vector.broadcast %145 : vector<8x1xf32> to vector<8x8xf32>
      %149 = arith.subf %140, %148 : vector<8x8xf32>
      %150 = math.exp %149 : vector<8x8xf32>
      %c3_77 = arith.constant 3 : index
      %c0_78 = arith.constant 0 : index
      %c0_79 = arith.constant 0 : index
      %151 = vector.load %arg15[%c3_77, %c0_78, %c0_79] : memref<4x8x1xf32, #tpu.memory_space<vmem>>, vector<1x8x1xf32>
      %152 = vector.shape_cast %151 : vector<1x8x1xf32> to vector<8x1xf32>
      %153 = arith.mulf %147, %152 : vector<8x1xf32>
      %cst_80 = arith.constant dense<0.000000e+00> : vector<8xf32>
      %154 = vector.multi_reduction <add>, %150, %cst_80 [1] : vector<8x8xf32> to vector<8xf32>
      %155 = vector.shape_cast %154 : vector<8xf32> to vector<8x1xf32>
      %156 = arith.addf %153, %155 : vector<8x1xf32>
      %c3_81 = arith.constant 3 : index
      %c0_82 = arith.constant 0 : index
      %c0_83 = arith.constant 0 : index
      %157 = vector.load %arg15[%c3_81, %c0_82, %c0_83] : memref<4x8x1xf32, #tpu.memory_space<vmem>>, vector<1x8x1xf32>
      %158 = vector.shape_cast %157 : vector<1x8x1xf32> to vector<8x1xf32>
      %159 = vector.shape_cast %156 : vector<8x1xf32> to vector<1x8x1xf32>
      tpu.vector_store %arg15[%c3_81, %c0_82, %c0_83], %159 {strides = array<i32>} : memref<4x8x1xf32, #tpu.memory_space<vmem>>, vector<1x8x1xf32>,
      %c0_84 = arith.constant 0 : index
      %c24 = arith.constant 24 : index
      %160 = vector.load %arg16[%c0_84, %c24] : memref<8x32xf32, #tpu.memory_space<vmem>>, vector<8x8xf32>
      %161 = vector.broadcast %147 : vector<8x1xf32> to vector<8x8xf32>
      %162 = arith.mulf %161, %160 : vector<8x8xf32>
      %163 = arith.truncf %150 : vector<8x8xf32> to vector<8x8xbf16>
      %164 = vector.extract_strided_slice %14 {offsets = [0, 24], sizes = [8, 8], strides = [1, 1]} : vector<8x32xbf16> to vector<8x8xbf16>
      %cst_85 = arith.constant dense<0.000000e+00> : vector<8x8xf32>
      %165 = tpu.matmul %163, %164, %cst_85 {dimension_numbers = #tpu.dot_dimension_numbers<[1], [0], [0], [1], [0, 0, 1, 1], [], []>} : vector<8x8xbf16>, vector<8x8xbf16>, vector<8x8xf32> -> vector<8x8xf32>
      %166 = arith.addf %162, %165 : vector<8x8xf32>
      %c0_86 = arith.constant 0 : index
      %c24_87 = arith.constant 24 : index
      %167 = vector.load %arg16[%c0_86, %c24_87] : memref<8x32xf32, #tpu.memory_space<vmem>>, vector<8x8xf32>
      tpu.vector_store %arg16[%c0_86, %c24_87], %166 {strides = array<i32>} : memref<8x32xf32, #tpu.memory_space<vmem>>, vector<8x8xf32>,
      %c3_88 = arith.constant 3 : index
      %c0_89 = arith.constant 0 : index
      %c0_90 = arith.constant 0 : index
      %168 = vector.load %arg14[%c3_88, %c0_89, %c0_90] : memref<4x8x1xf32, #tpu.memory_space<vmem>>, vector<1x8x1xf32>
      %169 = vector.shape_cast %168 : vector<1x8x1xf32> to vector<8x1xf32>
      %170 = vector.shape_cast %145 : vector<8x1xf32> to vector<1x8x1xf32>
      tpu.vector_store %arg14[%c3_88, %c0_89, %c0_90], %170 {strides = array<i32>} : memref<4x8x1xf32, #tpu.memory_space<vmem>>, vector<1x8x1xf32>,
      %c0_91 = arith.constant 0 : index
      %c0_92 = arith.constant 0 : index
      %171 = vector.load %arg16[%c0_91, %c0_92] : memref<8x32xf32, #tpu.memory_space<vmem>>, vector<8x8xf32>
      %c0_93 = arith.constant 0 : index
      %c0_94 = arith.constant 0 : index
      %c0_95 = arith.constant 0 : index
      %172 = vector.load %arg15[%c0_93, %c0_94, %c0_95] : memref<4x8x1xf32, #tpu.memory_space<vmem>>, vector<1x8x1xf32>
      %173 = vector.shape_cast %172 : vector<1x8x1xf32> to vector<8x1xf32>
      %174 = tpu.reciprocal %173 {approx = true} : vector<8x1xf32> -> vector<8x1xf32>
      %175 = vector.broadcast %174 : vector<8x1xf32> to vector<8x8xf32>
      %176 = arith.mulf %171, %175 : vector<8x8xf32>
      %c0_96 = arith.constant 0 : index
      %c8_97 = arith.constant 8 : index
      %177 = vector.load %arg16[%c0_96, %c8_97] : memref<8x32xf32, #tpu.memory_space<vmem>>, vector<8x8xf32>
      %c1_98 = arith.constant 1 : index
      %c0_99 = arith.constant 0 : index
      %c0_100 = arith.constant 0 : index
      %178 = vector.load %arg15[%c1_98, %c0_99, %c0_100] : memref<4x8x1xf32, #tpu.memory_space<vmem>>, vector<1x8x1xf32>
      %179 = vector.shape_cast %178 : vector<1x8x1xf32> to vector<8x1xf32>
      %180 = tpu.reciprocal %179 {approx = true} : vector<8x1xf32> -> vector<8x1xf32>
      %181 = vector.broadcast %180 : vector<8x1xf32> to vector<8x8xf32>
      %182 = arith.mulf %177, %181 : vector<8x8xf32>
      %c0_101 = arith.constant 0 : index
      %c16_102 = arith.constant 16 : index
      %183 = vector.load %arg16[%c0_101, %c16_102] : memref<8x32xf32, #tpu.memory_space<vmem>>, vector<8x8xf32>
      %c2_103 = arith.constant 2 : index
      %c0_104 = arith.constant 0 : index
      %c0_105 = arith.constant 0 : index
      %184 = vector.load %arg15[%c2_103, %c0_104, %c0_105] : memref<4x8x1xf32, #tpu.memory_space<vmem>>, vector<1x8x1xf32>
      %185 = vector.shape_cast %184 : vector<1x8x1xf32> to vector<8x1xf32>
      %186 = tpu.reciprocal %185 {approx = true} : vector<8x1xf32> -> vector<8x1xf32>
      %187 = vector.broadcast %186 : vector<8x1xf32> to vector<8x8xf32>
      %188 = arith.mulf %183, %187 : vector<8x8xf32>
      %c0_106 = arith.constant 0 : index
      %c24_107 = arith.constant 24 : index
      %189 = vector.load %arg16[%c0_106, %c24_107] : memref<8x32xf32, #tpu.memory_space<vmem>>, vector<8x8xf32>
      %c3_108 = arith.constant 3 : index
      %c0_109 = arith.constant 0 : index
      %c0_110 = arith.constant 0 : index
      %190 = vector.load %arg15[%c3_108, %c0_109, %c0_110] : memref<4x8x1xf32, #tpu.memory_space<vmem>>, vector<1x8x1xf32>
      %191 = vector.shape_cast %190 : vector<1x8x1xf32> to vector<8x1xf32>
      %192 = tpu.reciprocal %191 {approx = true} : vector<8x1xf32> -> vector<8x1xf32>
      %193 = vector.broadcast %192 : vector<8x1xf32> to vector<8x8xf32>
      %194 = arith.mulf %189, %193 : vector<8x8xf32>
      %195 = tpu.concatenate %176, %182, %188, %194 in 1 : vector<8x8xf32>, vector<8x8xf32>, vector<8x8xf32>, vector<8x8xf32> -> vector<8x32xf32>
      %c0_111 = arith.constant 0 : index
      %c0_112 = arith.constant 0 : index
      %196 = vector.load %arg7[%c0_111, %c0_112] : memref<16x32xbf16, #tpu.memory_space<vmem>>, vector<16x32xbf16>
      %197 = arith.truncf %195 : vector<8x32xf32> to vector<8x32xbf16>
      %cst_113 = arith.constant dense<0.000000e+00> : vector<8x16xf32>
      %198 = tpu.matmul %197, %196, %cst_113 {dimension_numbers = #tpu.dot_dimension_numbers<[1], [1], [0], [0], [0, 0, 1, 0], [], []>} : vector<8x32xbf16>, vector<16x32xbf16>, vector<8x16xf32> -> vector<8x16xf32>
      %cst_114 = arith.constant 0.176776692 : f32
      %199 = vector.broadcast %cst_114 : f32 to vector<8x16xf32>
      %200 = arith.mulf %198, %199 : vector<8x16xf32>
      %c0_115 = arith.constant 0 : index
      %c0_116 = arith.constant 0 : index
      %201 = vector.load %arg8[%c0_115, %c0_116] : memref<16x32xbf16, #tpu.memory_space<vmem>>, vector<16x32xbf16>
      %202 = arith.mulf %200, %200 : vector<8x16xf32>
      %203 = arith.mulf %200, %202 : vector<8x16xf32>
      %cst_117 = arith.constant 4.471500e-02 : f32
      %204 = vector.broadcast %cst_117 : f32 to vector<8x16xf32>
      %205 = arith.mulf %204, %203 : vector<8x16xf32>
      %206 = arith.addf %200, %205 : vector<8x16xf32>
      %cst_118 = arith.constant 0.797884583 : f32
      %207 = vector.broadcast %cst_118 : f32 to vector<8x16xf32>
      %208 = arith.mulf %207, %206 : vector<8x16xf32>
      %209 = math.tanh %208 : vector<8x16xf32>
      %cst_119 = arith.constant 1.000000e+00 : f32
      %210 = vector.broadcast %cst_119 : f32 to vector<8x16xf32>
      %211 = arith.addf %210, %209 : vector<8x16xf32>
      %cst_120 = arith.constant 5.000000e-01 : f32
      %212 = vector.broadcast %cst_120 : f32 to vector<8x16xf32>
      %213 = arith.mulf %212, %211 : vector<8x16xf32>
      %214 = arith.mulf %200, %213 : vector<8x16xf32>
      %215 = arith.mulf %214, %214 : vector<8x16xf32>
      %cst_121 = arith.constant dense<0.000000e+00> : vector<8xf32>
      %216 = vector.multi_reduction <add>, %215, %cst_121 [1] : vector<8x16xf32> to vector<8xf32>
      %217 = vector.shape_cast %216 : vector<8xf32> to vector<8x1xf32>
      %cst_122 = arith.constant 9.99999996E-13 : f32
      %218 = vector.broadcast %cst_122 : f32 to vector<8x1xf32>
      %219 = arith.addf %217, %218 : vector<8x1xf32>
      %220 = math.rsqrt %219 : vector<8x1xf32>
      %221 = vector.broadcast %220 : vector<8x1xf32> to vector<8x16xf32>
      %222 = arith.mulf %214, %221 : vector<8x16xf32>
      %cst_123 = arith.constant 4.000000e+00 : f32
      %223 = vector.broadcast %cst_123 : f32 to vector<8x16xf32>
      %224 = arith.mulf %222, %223 : vector<8x16xf32>
      %225 = arith.truncf %224 : vector<8x16xf32> to vector<8x16xbf16>
      %cst_124 = arith.constant dense<0.000000e+00> : vector<8x32xf32>
      %226 = tpu.matmul %225, %201, %cst_124 {dimension_numbers = #tpu.dot_dimension_numbers<[1], [0], [0], [1], [0, 0, 1, 1], [], []>} : vector<8x16xbf16>, vector<16x32xbf16>, vector<8x32xf32> -> vector<8x32xf32>
      %c0_125 = arith.constant 0 : index
      %c0_126 = arith.constant 0 : index
      %c0_127 = arith.constant 0 : index
      %227 = vector.load %arg6[%c0_125, %c0_126, %c0_127] : memref<1x8x32xf32, #tpu.memory_space<vmem>>, vector<1x8x32xf32>
      %228 = vector.shape_cast %227 : vector<1x8x32xf32> to vector<8x32xf32>
      %229 = arith.addf %226, %228 : vector<8x32xf32>
      %c0_128 = arith.constant 0 : index
      %c0_129 = arith.constant 0 : index
      %230 = vector.load %arg11[%c0_128, %c0_129] : memref<1x32xf32, #tpu.memory_space<vmem>>, vector<1x32xf32>
      %c0_130 = arith.constant 0 : index
      %c0_131 = arith.constant 0 : index
      %231 = vector.load %arg12[%c0_130, %c0_131] : memref<1x32xf32, #tpu.memory_space<vmem>>, vector<1x32xf32>
      %cst_132 = arith.constant dense<0.000000e+00> : vector<8xf32>
      %232 = vector.multi_reduction <add>, %229, %cst_132 [1] : vector<8x32xf32> to vector<8xf32>
      %233 = vector.shape_cast %232 : vector<8xf32> to vector<8x1xf32>
      %cst_133 = arith.constant 3.200000e+01 : f32
      %234 = vector.broadcast %cst_133 : f32 to vector<8x1xf32>
      %235 = arith.divf %233, %234 : vector<8x1xf32>
      %236 = vector.broadcast %235 : vector<8x1xf32> to vector<8x32xf32>
      %237 = arith.subf %229, %236 : vector<8x32xf32>
      %238 = arith.mulf %237, %237 : vector<8x32xf32>
      %cst_134 = arith.constant dense<0.000000e+00> : vector<8xf32>
      %239 = vector.multi_reduction <add>, %238, %cst_134 [1] : vector<8x32xf32> to vector<8xf32>
      %240 = vector.shape_cast %239 : vector<8xf32> to vector<8x1xf32>
      %cst_135 = arith.constant 3.200000e+01 : f32
      %241 = vector.broadcast %cst_135 : f32 to vector<8x1xf32>
      %242 = arith.divf %240, %241 : vector<8x1xf32>
      %cst_136 = arith.constant 9.99999974E-6 : f32
      %243 = vector.broadcast %cst_136 : f32 to vector<8x1xf32>
      %244 = arith.addf %242, %243 : vector<8x1xf32>
      %245 = math.rsqrt %244 : vector<8x1xf32>
      %246 = vector.broadcast %245 : vector<8x1xf32> to vector<8x32xf32>
      %247 = arith.mulf %237, %246 : vector<8x32xf32>
      %248 = vector.broadcast %230 : vector<1x32xf32> to vector<8x32xf32>
      %249 = arith.mulf %247, %248 : vector<8x32xf32>
      %250 = vector.broadcast %231 : vector<1x32xf32> to vector<8x32xf32>
      %251 = arith.addf %249, %250 : vector<8x32xf32>
      %c0_137 = arith.constant 0 : index
      %c0_138 = arith.constant 0 : index
      %252 = vector.load %arg9[%c0_137, %c0_138] : memref<64x32xbf16, #tpu.memory_space<vmem>>, vector<64x32xbf16>
      %253 = arith.truncf %251 : vector<8x32xf32> to vector<8x32xbf16>
      %cst_139 = arith.constant dense<0.000000e+00> : vector<8x64xf32>
      %254 = tpu.matmul %253, %252, %cst_139 {dimension_numbers = #tpu.dot_dimension_numbers<[1], [1], [0], [0], [0, 0, 1, 0], [], []>} : vector<8x32xbf16>, vector<64x32xbf16>, vector<8x64xf32> -> vector<8x64xf32>
      %cst_140 = arith.constant 0.176776692 : f32
      %255 = vector.broadcast %cst_140 : f32 to vector<8x64xf32>
      %256 = arith.mulf %254, %255 : vector<8x64xf32>
      %c0_141 = arith.constant 0 : index
      %c0_142 = arith.constant 0 : index
      %257 = vector.load %arg10[%c0_141, %c0_142] : memref<64x32xbf16, #tpu.memory_space<vmem>>, vector<64x32xbf16>
      %258 = arith.mulf %256, %256 : vector<8x64xf32>
      %259 = arith.mulf %256, %258 : vector<8x64xf32>
      %cst_143 = arith.constant 4.471500e-02 : f32
      %260 = vector.broadcast %cst_143 : f32 to vector<8x64xf32>
      %261 = arith.mulf %260, %259 : vector<8x64xf32>
      %262 = arith.addf %256, %261 : vector<8x64xf32>
      %cst_144 = arith.constant 0.797884583 : f32
      %263 = vector.broadcast %cst_144 : f32 to vector<8x64xf32>
      %264 = arith.mulf %263, %262 : vector<8x64xf32>
      %265 = math.tanh %264 : vector<8x64xf32>
      %cst_145 = arith.constant 1.000000e+00 : f32
      %266 = vector.broadcast %cst_145 : f32 to vector<8x64xf32>
      %267 = arith.addf %266, %265 : vector<8x64xf32>
      %cst_146 = arith.constant 5.000000e-01 : f32
      %268 = vector.broadcast %cst_146 : f32 to vector<8x64xf32>
      %269 = arith.mulf %268, %267 : vector<8x64xf32>
      %270 = arith.mulf %256, %269 : vector<8x64xf32>
      %271 = arith.mulf %270, %270 : vector<8x64xf32>
      %cst_147 = arith.constant dense<0.000000e+00> : vector<8xf32>
      %272 = vector.multi_reduction <add>, %271, %cst_147 [1] : vector<8x64xf32> to vector<8xf32>
      %273 = vector.shape_cast %272 : vector<8xf32> to vector<8x1xf32>
      %cst_148 = arith.constant 9.99999996E-13 : f32
      %274 = vector.broadcast %cst_148 : f32 to vector<8x1xf32>
      %275 = arith.addf %273, %274 : vector<8x1xf32>
      %276 = math.rsqrt %275 : vector<8x1xf32>
      %277 = vector.broadcast %276 : vector<8x1xf32> to vector<8x64xf32>
      %278 = arith.mulf %270, %277 : vector<8x64xf32>
      %cst_149 = arith.constant 8.000000e+00 : f32
      %279 = vector.broadcast %cst_149 : f32 to vector<8x64xf32>
      %280 = arith.mulf %278, %279 : vector<8x64xf32>
      %281 = arith.truncf %280 : vector<8x64xf32> to vector<8x64xbf16>
      %cst_150 = arith.constant dense<0.000000e+00> : vector<8x32xf32>
      %282 = tpu.matmul %281, %257, %cst_150 {dimension_numbers = #tpu.dot_dimension_numbers<[1], [0], [0], [1], [0, 0, 1, 1], [], []>} : vector<8x64xbf16>, vector<64x32xbf16>, vector<8x32xf32> -> vector<8x32xf32>
      %283 = arith.addf %282, %229 : vector<8x32xf32>
      %c0_151 = arith.constant 0 : index
      %c0_152 = arith.constant 0 : index
      %c0_153 = arith.constant 0 : index
      %284 = vector.load %arg13[%c0_151, %c0_152, %c0_153] : memref<1x8x32xf32, #tpu.memory_space<vmem>>, vector<1x8x32xf32>
      %285 = vector.shape_cast %284 : vector<1x8x32xf32> to vector<8x32xf32>
      %286 = vector.shape_cast %283 : vector<8x32xf32> to vector<1x8x32xf32>
      tpu.vector_store %arg13[%c0_151, %c0_152, %c0_153], %286 {strides = array<i32>} : memref<1x8x32xf32, #tpu.memory_space<vmem>>, vector<1x8x32xf32>,
    } else {
    }
    return
  }
  func.func @transform_0(%arg0: i32, %arg1: i32, %arg2: i32) -> (i32, i32, i32) {
    %c0_i32 = arith.constant 0 : i32
    %c0_i32_0 = arith.constant 0 : i32
    return %arg0, %arg1, %c0_i32 : i32, i32, i32
  }
  func.func @transform_1(%arg0: i32, %arg1: i32, %arg2: i32) -> (i32, i32, i32) {
    %0 = arith.minsi %arg2, %arg1 : i32
    %c0_i32 = arith.constant 0 : i32
    %c0_i32_0 = arith.constant 0 : i32
    return %arg0, %0, %c0_i32 : i32, i32, i32
  }
  func.func @transform_2(%arg0: i32, %arg1: i32, %arg2: i32) -> (i32, i32, i32) {
    %0 = arith.minsi %arg2, %arg1 : i32
    %c0_i32 = arith.constant 0 : i32
    %c0_i32_0 = arith.constant 0 : i32
    return %arg0, %0, %c0_i32 : i32, i32, i32
  }
  func.func @transform_3(%arg0: i32, %arg1: i32, %arg2: i32) -> (i32, i32, i32) {
    %c0_i32 = arith.constant 0 : i32
    %c0_i32_0 = arith.constant 0 : i32
    return %arg0, %arg1, %c0_i32 : i32, i32, i32
  }
  func.func @transform_4(%arg0: i32, %arg1: i32, %arg2: i32) -> (i32, i32) {
    %c0_i32 = arith.constant 0 : i32
    %c0_i32_0 = arith.constant 0 : i32
    %c0_i32_1 = arith.constant 0 : i32
    return %c0_i32, %c0_i32_0 : i32, i32
  }
  func.func @transform_5(%arg0: i32, %arg1: i32, %arg2: i32) -> (i32, i32) {
    %c0_i32 = arith.constant 0 : i32
    %c0_i32_0 = arith.constant 0 : i32
    %c0_i32_1 = arith.constant 0 : i32
    return %c0_i32, %c0_i32_0 : i32, i32
  }
  func.func @transform_6(%arg0: i32, %arg1: i32, %arg2: i32) -> (i32, i32) {
    %c0_i32 = arith.constant 0 : i32
    %c0_i32_0 = arith.constant 0 : i32
    %c0_i32_1 = arith.constant 0 : i32
    return %c0_i32, %c0_i32_0 : i32, i32
  }
  func.func @transform_7(%arg0: i32, %arg1: i32, %arg2: i32) -> (i32, i32) {
    %c0_i32 = arith.constant 0 : i32
    %c0_i32_0 = arith.constant 0 : i32
    %c0_i32_1 = arith.constant 0 : i32
    return %c0_i32, %c0_i32_0 : i32, i32
  }
  func.func @transform_8(%arg0: i32, %arg1: i32, %arg2: i32) -> (i32, i32) {
    %c0_i32 = arith.constant 0 : i32
    %c0_i32_0 = arith.constant 0 : i32
    %c0_i32_1 = arith.constant 0 : i32
    return %c0_i32, %c0_i32_0 : i32, i32
  }
  func.func @transform_9(%arg0: i32, %arg1: i32, %arg2: i32) -> (i32, i32) {
    %c0_i32 = arith.constant 0 : i32
    %c0_i32_0 = arith.constant 0 : i32
    %c0_i32_1 = arith.constant 0 : i32
    return %c0_i32, %c0_i32_0 : i32, i32
  }
  func.func @transform_10(%arg0: i32, %arg1: i32, %arg2: i32) -> (i32, i32, i32) {
    %c0_i32 = arith.constant 0 : i32
    %c0_i32_0 = arith.constant 0 : i32
    return %arg0, %arg1, %c0_i32 : i32, i32, i32
  }
}

</mosaic_0001>

<llo_original>
// kernel: tile.14
$region0: #{tile.14}
  %s0 = inlined_call_operand.vmem [shape: f32[8,4,8], index: 0, kind: input, shape index: {}]
  %s1 = inlined_call_operand.vmem [shape: f32[8,32], index: 1, kind: output, shape index: {}]
  $region1: #{tile.14} parent=0
    #allocation0 [shape = 'u8[32768]{0}', space=vmem, size = 0x8000, scoped, tag = 'scoped mem for input reshape']
    %s3 = sshll.u32 1, 4
    %s4 = ssub.s32 %s3, 1
    %s5 = smul.addr 4, 7
    %s6 = scalar_lea.vmem %s0, %s5
    %v7 = vld [vmem:[%s6] sm:%s4]
    %s8 = scalar_lea.vmem [#allocation0], 56
    %9 = vst [vmem:[%s8] sm:%s4] %v7
    %s10 = smul.addr 4, 6
    %s11 = scalar_lea.vmem %s0, %s10
    %v12 = vld [vmem:[%s11] sm:%s4]
    %s13 = scalar_lea.vmem [#allocation0], 48
    %14 = vst [vmem:[%s13] sm:%s4] %v12
    %s15 = smul.addr 4, 5
    %s16 = scalar_lea.vmem %s0, %s15
    %v17 = vld [vmem:[%s16] sm:%s4]
    %s18 = scalar_lea.vmem [#allocation0], 40
    %19 = vst [vmem:[%s18] sm:%s4] %v17
    %s20 = smul.addr 4, 4
    %s21 = scalar_lea.vmem %s0, %s20
    %v22 = vld [vmem:[%s21] sm:%s4]
    %s23 = scalar_lea.vmem [#allocation0], 32
    %24 = vst [vmem:[%s23] sm:%s4] %v22
    %s25 = smul.addr 4, 3
    %s26 = scalar_lea.vmem %s0, %s25
    %v27 = vld [vmem:[%s26] sm:%s4]
    %s28 = scalar_lea.vmem [#allocation0], 24
    %29 = vst [vmem:[%s28] sm:%s4] %v27
    %s30 = smul.addr 4, 2
    %s31 = scalar_lea.vmem %s0, %s30
    %v32 = vld [vmem:[%s31] sm:%s4]
    %s33 = scalar_lea.vmem [#allocation0], 16
    %34 = vst [vmem:[%s33] sm:%s4] %v32
    %s35 = scalar_lea.vmem %s0, 4
    %v36 = vld [vmem:[%s35] sm:%s4]
    %s37 = scalar_lea.vmem [#allocation0], 8
    %38 = vst [vmem:[%s37] sm:%s4] %v36
    %v39 = vld [vmem:[%s0] sm:%s4]
    %40 = vst [vmem:[#allocation0] sm:%s4] %v39
    %v41 = vld [vmem:[#allocation0] ss:$8 sm:$0xf]
    %v42 = vld [vmem:[#allocation0] ss:$8 sm:$0xf0]
    %vm43 = vcmask 1047556
    %v44 = vsel %vm43, %v42, %v41
    %vm45 = vcmask 64512
    %46 = vst.msk [vmem:[%s1] sm:$0xff] %vm45, %v44
    %s47 = scalar_lea.vmem [#allocation0], 3
    %v48 = vld [vmem:[%s47] ss:$8 sm:$0xf]
    %s49 = scalar_lea.vmem [#allocation0], 3
    %v50 = vld [vmem:[%s49] ss:$8 sm:$0xf0]
    %vm51 = vcmask 1047556
    %v52 = vsel %vm51, %v50, %v48
    %53 = vrot.lane.b32.xlu0 %v52, 24
    %v54 = vpop.permute.xlu0 %53
    %vm55 = vcmask 261312
    %56 = vst.msk [vmem:[%s1] sm:$0xff] %vm55, %v54
    %s57 = scalar_lea.vmem [#allocation0], 2
    %v58 = vld [vmem:[%s57] ss:$8 sm:$0xf]
    %s59 = scalar_lea.vmem [#allocation0], 2
    %v60 = vld [vmem:[%s59] ss:$8 sm:$0xf0]
    %vm61 = vcmask 1047556
    %v62 = vsel %vm61, %v60, %v58
    %63 = vrot.lane.b32.xlu0 %v62, 16
    %v64 = vpop.permute.xlu0 %63
    %vm65 = vcmask 195712
    %66 = vst.msk [vmem:[%s1] sm:$0xff] %vm65, %v64
    %s67 = scalar_lea.vmem [#allocation0], 1
    %v68 = vld [vmem:[%s67] ss:$8 sm:$0xf]
    %s69 = scalar_lea.vmem [#allocation0], 1
    %v70 = vld [vmem:[%s69] ss:$8 sm:$0xf0]
    %vm71 = vcmask 1047556
    %v72 = vsel %vm71, %v70, %v68
    %73 = vrot.lane.b32.xlu0 %v72, 8
    %v74 = vpop.permute.xlu0 %73
    %vm75 = vcmask 130112
    %76 = vst.msk [vmem:[%s1] sm:$0xff] %vm75, %v74

// kernel: tokenformer_layer_forward.2
$region0: #{tokenformer_layer_forward.2}
  #allocation0 [shape = 'u32[]', space=smem, size = 0x4, offset = 0x4, fixed_abs, tag = 'smem constant byte address 0x4 - core index']
  #allocation1 [shape = 'u32[144,128]{1,0:T(1,128)}', space=vmem, size = 0x12000, scoped, tag = 'internal scratch']
  %s0 = inlined_call_operand.vmem [shape: f32[2,8,32], index: 0, kind: input, shape index: {}]
  %s1 = inlined_call_operand.vmem [shape: f32[1,32], index: 1, kind: input, shape index: {}]
  %s2 = inlined_call_operand.vmem [shape: f32[1,32], index: 2, kind: input, shape index: {}]
  %s3 = inlined_call_operand.vmem [shape: bf16[48,32], index: 3, kind: input, shape index: {}]
  %s4 = inlined_call_operand.vmem [shape: bf16[3,16,32], index: 4, kind: input, shape index: {}]
  %s5 = inlined_call_operand.vmem [shape: f32[8,32], index: 5, kind: input, shape index: {}]
  %s6 = inlined_call_operand.vmem [shape: f32[8,32], index: 6, kind: input, shape index: {}]
  %s7 = inlined_call_operand.vmem [shape: bf16[2,8,32], index: 7, kind: output, shape index: {0}]
  %s8 = inlined_call_operand.vmem [shape: bf16[2,8,32], index: 8, kind: output, shape index: {1}]
  %s9 = inlined_call_operand.vmem [shape: bf16[2,8,32], index: 9, kind: output, shape index: {2}]
  %10 = xla_tuple %s7, %s8, %s9
  %s11 = sld [smem:[#allocation0]]
  $region77: #{tokenformer_layer_forward.2} parent=0
    _
  %s13 = ssub.s32 1, %s11
  %s14 = scalar_select 0, %s13, %s11
  loop: start=0, step=1, limit=4
  $region2: #{tokenformer_layer_forward.2} parent=0 // loop_pre_header
    _
  $region3: #{tokenformer_layer_forward.2} parent=0 // loop_header
    %s16 = sphi 0, %s20
    %p17 = scmp.ge.s32.totalorder %s16, 4
    %s23 = sphi 0, %s35
    %s24 = sphi 0, %s31
    %s25 = sphi 0, %s23
    %s26 = sphi 0, %s24
    %s27 = sphi 0, %s25
    %s28 = sphi 0, %s26
    %s40 = sphi 0, %s42
    %s43 = sphi 0, %s40
    %s44 = sphi 0, %s43
    %s60 = sphi 0, %s44
    %s64 = sphi 0, %s64
    %s66 = sphi 0, %s64
    %s67 = sphi 0, %s66
    %s81 = sphi 0, %s67
    %s85 = sphi 0, %s85
    %s87 = sphi 0, %s85
    %s88 = sphi 0, %s87
    %s102 = sphi 0, %s88
    %s106 = sphi 0, %s106
    %s108 = sphi 0, %s106
    %s109 = sphi 0, %s108
    %s123 = sphi 0, %s109
    %s127 = sphi 0, %s127
    %s129 = sphi 0, %s127
    %s130 = sphi 0, %s129
    %s144 = sphi 0, %s130
    %s150 = sphi 0, %s152
    %s153 = sphi 0, %s150
    %s154 = sphi 0, %s153
    %s170 = sphi 0, %s154
    %s176 = sphi 0, %s178
    %s179 = sphi 0, %s176
    %s180 = sphi 0, %s179
    %s196 = sphi 0, %s180
    %s204 = sphi 0, %s206
    %s207 = sphi 0, %s204
    %s208 = sphi 0, %s207
    %s224 = sphi 0, %s208
    %s232 = sphi 0, %s234
    %s235 = sphi 0, %s232
    %s236 = sphi 0, %s235
    %s252 = sphi 0, %s236
    %s260 = sphi 0, %s262
    %s263 = sphi 0, %s260
    %s264 = sphi 0, %s263
    %s280 = sphi 0, %s264
  $region4: #{tokenformer_layer_forward.2} parent=0 // loop_header_branch
    %19 = sbr.rel (%p17) target = $region8
  $region5: #{tokenformer_layer_forward.2} parent=0 // loop_body
    %s21 = ssub.s32 %s16, 1
    %s22 = ssub.s32 %s16, 2
    %s29 = sadd.s32 1, %s24
    %p30 = scmp.ge.s32.totalorder %s29, 1
    %s31 = scalar_select %p30, 0, %s29
    %s32 = sadd.s32 1, %s23
    %s33 = scalar_select %p30, %s32, %s23
    %p34 = scmp.ge.s32.totalorder %s33, 2
    %s35 = scalar_select %p34, 0, %s33
    %s36 = ssub.s32 %s23, %s35
    %s37 = ssub.s32 %s24, %s31
    %s38 = sor.u32 %s36, %s37
    %p39 = scmp.eq.s32.totalorder %s38, 0
    %s41 = sadd.s32 %s40, 1
    %s42 = scalar_select %p39, %s40, %s41
    %p45 = pneg %p39
    %p46 = scmp.eq.s32.totalorder %s16, 1
    %p47 = por %p45, %p46
    %p48 = scmp.ne.s32.totalorder %s40, %s43
    %p49 = scmp.eq.s32.totalorder %s16, 0
    %p50 = por %p48, %p49
    %p51 = scmp.ne.s32.totalorder %s40, %s43
    %p52 = scmp.eq.s32.totalorder %s21, 1
    %p53 = por %p51, %p52
    %p54 = scmp.ne.s32.totalorder %s43, %s44
    %p55 = scmp.eq.s32.totalorder %s21, 0
    %p56 = por %p54, %p55
    %p57 = scmp.ne.s32.totalorder %s43, %s44
    %p58 = scmp.eq.s32.totalorder %s22, 1
    %p59 = por %p57, %p58
    %p61 = scmp.ne.s32.totalorder %s44, %s60
    %p62 = scmp.eq.s32.totalorder %s22, 0
    %p63 = por %p61, %p62
    %s65 = sadd.s32 %s64, 1
    %p68 = scmp.eq.s32.totalorder %s16, 1
    %p69 = scmp.ne.s32.totalorder %s64, %s66
    %p70 = scmp.eq.s32.totalorder %s16, 0
    %p71 = por %p69, %p70
    %p72 = scmp.ne.s32.totalorder %s64, %s66
    %p73 = scmp.eq.s32.totalorder %s21, 1
    %p74 = por %p72, %p73
    %p75 = scmp.ne.s32.totalorder %s66, %s67
    %p76 = scmp.eq.s32.totalorder %s21, 0
    %p77 = por %p75, %p76
    %p78 = scmp.ne.s32.totalorder %s66, %s67
    %p79 = scmp.eq.s32.totalorder %s22, 1
    %p80 = por %p78, %p79
    %p82 = scmp.ne.s32.totalorder %s67, %s81
    %p83 = scmp.eq.s32.totalorder %s22, 0
    %p84 = por %p82, %p83
    %s86 = sadd.s32 %s85, 1
    %p89 = scmp.eq.s32.totalorder %s16, 1
    %p90 = scmp.ne.s32.totalorder %s85, %s87
    %p91 = scmp.eq.s32.totalorder %s16, 0
    %p92 = por %p90, %p91
    %p93 = scmp.ne.s32.totalorder %s85, %s87
    %p94 = scmp.eq.s32.totalorder %s21, 1
    %p95 = por %p93, %p94
    %p96 = scmp.ne.s32.totalorder %s87, %s88
    %p97 = scmp.eq.s32.totalorder %s21, 0
    %p98 = por %p96, %p97
    %p99 = scmp.ne.s32.totalorder %s87, %s88
    %p100 = scmp.eq.s32.totalorder %s22, 1
    %p101 = por %p99, %p100
    %p103 = scmp.ne.s32.totalorder %s88, %s102
    %p104 = scmp.eq.s32.totalorder %s22, 0
    %p105 = por %p103, %p104
    %s107 = sadd.s32 %s106, 1
    %p110 = scmp.eq.s32.totalorder %s16, 1
    %p111 = scmp.ne.s32.totalorder %s106, %s108
    %p112 = scmp.eq.s32.totalorder %s16, 0
    %p113 = por %p111, %p112
    %p114 = scmp.ne.s32.totalorder %s106, %s108
    %p115 = scmp.eq.s32.totalorder %s21, 1
    %p116 = por %p114, %p115
    %p117 = scmp.ne.s32.totalorder %s108, %s109
    %p118 = scmp.eq.s32.totalorder %s21, 0
    %p119 = por %p117, %p118
    %p120 = scmp.ne.s32.totalorder %s108, %s109
    %p121 = scmp.eq.s32.totalorder %s22, 1
    %p122 = por %p120, %p121
    %p124 = scmp.ne.s32.totalorder %s109, %s123
    %p125 = scmp.eq.s32.totalorder %s22, 0
    %p126 = por %p124, %p125
    %s128 = sadd.s32 %s127, 1
    %p131 = scmp.eq.s32.totalorder %s16, 1
    %p132 = scmp.ne.s32.totalorder %s127, %s129
    %p133 = scmp.eq.s32.totalorder %s16, 0
    %p134 = por %p132, %p133
    %p135 = scmp.ne.s32.totalorder %s127, %s129
    %p136 = scmp.eq.s32.totalorder %s21, 1
    %p137 = por %p135, %p136
    %p138 = scmp.ne.s32.totalorder %s129, %s130
    %p139 = scmp.eq.s32.totalorder %s21, 0
    %p140 = por %p138, %p139
    %p141 = scmp.ne.s32.totalorder %s129, %s130
    %p142 = scmp.eq.s32.totalorder %s22, 1
    %p143 = por %p141, %p142
    %p145 = scmp.ne.s32.totalorder %s130, %s144
    %p146 = scmp.eq.s32.totalorder %s22, 0
    %p147 = por %p145, %p146
    %s148 = ssub.s32 %s24, %s31
    %p149 = scmp.eq.s32.totalorder %s148, 0
    %s151 = sadd.s32 %s150, 1
    %s152 = scalar_select %p149, %s150, %s151
    %p155 = pneg %p149
    %p156 = scmp.eq.s32.totalorder %s16, 1
    %p157 = por %p155, %p156
    %p158 = scmp.ne.s32.totalorder %s150, %s153
    %p159 = scmp.eq.s32.totalorder %s16, 0
    %p160 = por %p158, %p159
    %p161 = scmp.ne.s32.totalorder %s150, %s153
    %p162 = scmp.eq.s32.totalorder %s21, 1
    %p163 = por %p161, %p162
    %p164 = scmp.ne.s32.totalorder %s153, %s154
    %p165 = scmp.eq.s32.totalorder %s21, 0
    %p166 = por %p164, %p165
    %p167 = scmp.ne.s32.totalorder %s153, %s154
    %p168 = scmp.eq.s32.totalorder %s22, 1
    %p169 = por %p167, %p168
    %p171 = scmp.ne.s32.totalorder %s154, %s170
    %p172 = scmp.eq.s32.totalorder %s22, 0
    %p173 = por %p171, %p172
    %s174 = ssub.s32 %s24, %s31
    %p175 = scmp.eq.s32.totalorder %s174, 0
    %s177 = sadd.s32 %s176, 1
    %s178 = scalar_select %p175, %s176, %s177
    %p181 = pneg %p175
    %p182 = scmp.eq.s32.totalorder %s16, 1
    %p183 = por %p181, %p182
    %p184 = scmp.ne.s32.totalorder %s176, %s179
    %p185 = scmp.eq.s32.totalorder %s16, 0
    %p186 = por %p184, %p185
    %p187 = scmp.ne.s32.totalorder %s176, %s179
    %p188 = scmp.eq.s32.totalorder %s21, 1
    %p189 = por %p187, %p188
    %p190 = scmp.ne.s32.totalorder %s179, %s180
    %p191 = scmp.eq.s32.totalorder %s21, 0
    %p192 = por %p190, %p191
    %p193 = scmp.ne.s32.totalorder %s179, %s180
    %p194 = scmp.eq.s32.totalorder %s22, 1
    %p195 = por %p193, %p194
    %p197 = scmp.ne.s32.totalorder %s180, %s196
    %p198 = scmp.eq.s32.totalorder %s22, 0
    %p199 = por %p197, %p198
    %s200 = ssub.s32 %s23, %s35
    %s201 = ssub.s32 %s24, %s31
    %s202 = sor.u32 %s200, %s201
    %p203 = scmp.eq.s32.totalorder %s202, 0
    %s205 = sadd.s32 %s204, 1
    %s206 = scalar_select %p203, %s204, %s205
    %p209 = pneg %p203
    %p210 = scmp.eq.s32.totalorder %s16, 1
    %p211 = por %p209, %p210
    %p212 = scmp.ne.s32.totalorder %s204, %s207
    %p213 = scmp.eq.s32.totalorder %s16, 0
    %p214 = por %p212, %p213
    %p215 = scmp.ne.s32.totalorder %s204, %s207
    %p216 = scmp.eq.s32.totalorder %s21, 1
    %p217 = por %p215, %p216
    %p218 = scmp.ne.s32.totalorder %s207, %s208
    %p219 = scmp.eq.s32.totalorder %s21, 0
    %p220 = por %p218, %p219
    %p221 = scmp.ne.s32.totalorder %s207, %s208
    %p222 = scmp.eq.s32.totalorder %s22, 1
    %p223 = por %p221, %p222
    %p225 = scmp.ne.s32.totalorder %s208, %s224
    %p226 = scmp.eq.s32.totalorder %s22, 0
    %p227 = por %p225, %p226
    %s228 = ssub.s32 %s23, %s35
    %s229 = ssub.s32 %s24, %s31
    %s230 = sor.u32 %s228, %s229
    %p231 = scmp.eq.s32.totalorder %s230, 0
    %s233 = sadd.s32 %s232, 1
    %s234 = scalar_select %p231, %s232, %s233
    %p237 = pneg %p231
    %p238 = scmp.eq.s32.totalorder %s16, 1
    %p239 = por %p237, %p238
    %p240 = scmp.ne.s32.totalorder %s232, %s235
    %p241 = scmp.eq.s32.totalorder %s16, 0
    %p242 = por %p240, %p241
    %p243 = scmp.ne.s32.totalorder %s232, %s235
    %p244 = scmp.eq.s32.totalorder %s21, 1
    %p245 = por %p243, %p244
    %p246 = scmp.ne.s32.totalorder %s235, %s236
    %p247 = scmp.eq.s32.totalorder %s21, 0
    %p248 = por %p246, %p247
    %p249 = scmp.ne.s32.totalorder %s235, %s236
    %p250 = scmp.eq.s32.totalorder %s22, 1
    %p251 = por %p249, %p250
    %p253 = scmp.ne.s32.totalorder %s236, %s252
    %p254 = scmp.eq.s32.totalorder %s22, 0
    %p255 = por %p253, %p254
    %s256 = ssub.s32 %s23, %s35
    %s257 = ssub.s32 %s24, %s31
    %s258 = sor.u32 %s256, %s257
    %p259 = scmp.eq.s32.totalorder %s258, 0
    %s261 = sadd.s32 %s260, 1
    %s262 = scalar_select %p259, %s260, %s261
    %p265 = pneg %p259
    %p266 = scmp.eq.s32.totalorder %s16, 1
    %p267 = por %p265, %p266
    %p268 = scmp.ne.s32.totalorder %s260, %s263
    %p269 = scmp.eq.s32.totalorder %s16, 0
    %p270 = por %p268, %p269
    %p271 = scmp.ne.s32.totalorder %s260, %s263
    %p272 = scmp.eq.s32.totalorder %s21, 1
    %p273 = por %p271, %p272
    %p274 = scmp.ne.s32.totalorder %s263, %s264
    %p275 = scmp.eq.s32.totalorder %s21, 0
    %p276 = por %p274, %p275
    %p277 = scmp.ne.s32.totalorder %s263, %s264
    %p278 = scmp.eq.s32.totalorder %s22, 1
    %p279 = por %p277, %p278
    %p281 = scmp.ne.s32.totalorder %s264, %s280
    %p282 = scmp.eq.s32.totalorder %s22, 0
    %p283 = por %p281, %p282
    %p284 = scmp.le.s32.totalorder 1, %s16
    %p285 = scmp.lt.s32.totalorder %s16, 3
    %p286 = pnand %p284, %p285
    %p287 = pneg %p286
    // Predicated region
    $region9: #{tokenformer_layer_forward.2} parent=5 // pred_check
      _
    $region10: #{tokenformer_layer_forward.2} parent=5 // pred_check_branch
      %289 = sbr.rel (%p286) target = $region12
    $region11: #{tokenformer_layer_forward.2} parent=5 // pred_region
      %s290 = ssub.s32 %s16, 1
      // Predicated region
      $region13: #{tokenformer_layer_forward.2} parent=11 // pred_check
        %p291 = pneg %p77
      $region14: #{tokenformer_layer_forward.2} parent=11 // pred_check_branch
        %293 = sbr.rel (%p291) target = $region16
      $region15: #{tokenformer_layer_forward.2} parent=11 // pred_region
        _
      $region16: #{tokenformer_layer_forward.2} parent=11 // pred_fallthru
        _
      // Predicated region
      $region17: #{tokenformer_layer_forward.2} parent=11 // pred_check
        %p294 = pneg %p98
      $region18: #{tokenformer_layer_forward.2} parent=11 // pred_check_branch
        %296 = sbr.rel (%p294) target = $region20
      $region19: #{tokenformer_layer_forward.2} parent=11 // pred_region
        _
      $region20: #{tokenformer_layer_forward.2} parent=11 // pred_fallthru
        _
      // Predicated region
      $region21: #{tokenformer_layer_forward.2} parent=11 // pred_check
        %p297 = pneg %p119
      $region22: #{tokenformer_layer_forward.2} parent=11 // pred_check_branch
        %299 = sbr.rel (%p297) target = $region24
      $region23: #{tokenformer_layer_forward.2} parent=11 // pred_region
        _
      $region24: #{tokenformer_layer_forward.2} parent=11 // pred_fallthru
        _
      // Predicated region
      $region25: #{tokenformer_layer_forward.2} parent=11 // pred_check
        %p300 = pneg %p140
      $region26: #{tokenformer_layer_forward.2} parent=11 // pred_check_branch
        %302 = sbr.rel (%p300) target = $region28
      $region27: #{tokenformer_layer_forward.2} parent=11 // pred_region
        _
      $region28: #{tokenformer_layer_forward.2} parent=11 // pred_fallthru
        _
      // Predicated region
      $region29: #{tokenformer_layer_forward.2} parent=11 // pred_check
        %p303 = pneg %p166
      $region30: #{tokenformer_layer_forward.2} parent=11 // pred_check_branch
        %305 = sbr.rel (%p303) target = $region32
      $region31: #{tokenformer_layer_forward.2} parent=11 // pred_region
        %p306 = scmp.lt.s32.totalorder %s26, 0
        %s307 = scalar_select %p306, %s26, 0
        %s308 = smul.addr %s307, 8
        %s309 = scalar_lea.vmem %s5, %s308
      $region32: #{tokenformer_layer_forward.2} parent=11 // pred_fallthru
        _
      // Predicated region
      $region33: #{tokenformer_layer_forward.2} parent=11 // pred_check
        %p310 = pneg %p192
      $region34: #{tokenformer_layer_forward.2} parent=11 // pred_check_branch
        %312 = sbr.rel (%p310) target = $region36
      $region35: #{tokenformer_layer_forward.2} parent=11 // pred_region
        %p313 = scmp.lt.s32.totalorder %s26, 0
        %s314 = scalar_select %p313, %s26, 0
        %s315 = smul.addr %s314, 8
        %s316 = scalar_lea.vmem %s6, %s315
      $region36: #{tokenformer_layer_forward.2} parent=11 // pred_fallthru
        _
    $region12: #{tokenformer_layer_forward.2} parent=5 // pred_fallthru
      _
    %p317 = scmp.lt.s32.totalorder %s16, 2
    // Predicated region
    $region37: #{tokenformer_layer_forward.2} parent=5 // pred_check
      %p318 = pneg %p317
    $region38: #{tokenformer_layer_forward.2} parent=5 // pred_check_branch
      %320 = sbr.rel (%p318) target = $region40
    $region39: #{tokenformer_layer_forward.2} parent=5 // pred_region
      // Predicated region
      $region41: #{tokenformer_layer_forward.2} parent=39 // pred_check
        %p321 = pneg %p50
      $region42: #{tokenformer_layer_forward.2} parent=39 // pred_check_branch
        %323 = sbr.rel (%p321) target = $region44
      $region43: #{tokenformer_layer_forward.2} parent=39 // pred_region
        %p324 = scmp.lt.s32.totalorder %s23, 1
        %s325 = scalar_select %p324, %s23, 1
        %p326 = scmp.lt.s32.totalorder %s24, 0
        %s327 = scalar_select %p326, %s24, 0
        %s328 = sadd.s32 %s327, %s325
        %s329 = smul.addr %s328, 8
        %s330 = scalar_lea.vmem %s0, %s329
      $region44: #{tokenformer_layer_forward.2} parent=39 // pred_fallthru
        _
    $region40: #{tokenformer_layer_forward.2} parent=5 // pred_fallthru
      _
    %p331 = scmp.le.s32.totalorder 1, %s16
    %p332 = scmp.lt.s32.totalorder %s16, 3
    %p333 = pnand %p331, %p332
    %p334 = pneg %p333
    // Predicated region
    $region45: #{tokenformer_layer_forward.2} parent=5 // pred_check
      _
    $region46: #{tokenformer_layer_forward.2} parent=5 // pred_check_branch
      %336 = sbr.rel (%p333) target = $region48
    $region47: #{tokenformer_layer_forward.2} parent=5 // pred_region
      %s337 = ssub.s32 %s16, 1
      %p338 = scmp.lt.s32.totalorder %s25, 1
      %s339 = scalar_select %p338, %s25, 1
      %p340 = scmp.lt.s32.totalorder %s26, 0
      %s341 = scalar_select %p340, %s26, 0
      %s342 = sadd.s32 %s341, %s339
      %s343 = smul.addr %s342, 8
      %s344 = scalar_lea.vmem %s0, %s343
      %p345 = pneg %p56
      %p346 = pneg %p53
      %p347 = pneg %p77
      %p348 = pneg %p74
      %p349 = pneg %p98
      %p350 = pneg %p95
      %p351 = pneg %p119
      %p352 = pneg %p116
      %p353 = pneg %p140
      %p354 = pneg %p137
      %p355 = scmp.lt.s32.totalorder %s26, 0
      %s356 = scalar_select %p355, %s26, 0
      %s357 = smul.addr %s356, 8
      %s358 = scalar_lea.vmem %s5, %s357
      %p359 = pneg %p166
      %p360 = pneg %p163
      %p361 = scmp.lt.s32.totalorder %s26, 0
      %s362 = scalar_select %p361, %s26, 0
      %s363 = smul.addr %s362, 8
      %s364 = scalar_lea.vmem %s6, %s363
      %p365 = pneg %p192
      %p366 = pneg %p189
      %p367 = pneg %p220
      %p368 = pneg %p217
      %p369 = scmp.lt.s32.totalorder %s25, 1
      %s370 = scalar_select %p369, %s25, 1
      %p371 = scmp.lt.s32.totalorder %s26, 0
      %s372 = scalar_select %p371, %s26, 0
      %s373 = sadd.s32 %s372, %s370
      %s374 = smul.addr %s373, 4
      %s375 = scalar_lea.vmem %s7, %s374
      %p376 = pneg %p248
      %p377 = pneg %p245
      %p378 = scmp.lt.s32.totalorder %s25, 1
      %s379 = scalar_select %p378, %s25, 1
      %p380 = scmp.lt.s32.totalorder %s26, 0
      %s381 = scalar_select %p380, %s26, 0
      %s382 = sadd.s32 %s381, %s379
      %s383 = smul.addr %s382, 4
      %s384 = scalar_lea.vmem %s8, %s383
      %p385 = pneg %p276
      %p386 = pneg %p273
      %p387 = scmp.lt.s32.totalorder %s25, 1
      %s388 = scalar_select %p387, %s25, 1
      %p389 = scmp.lt.s32.totalorder %s26, 0
      %s390 = scalar_select %p389, %s26, 0
      %s391 = sadd.s32 %s390, %s388
      %s392 = smul.addr %s391, 4
      %s393 = scalar_lea.vmem %s9, %s392
      %p394 = scmp.lt.s32.totalorder %s25, 1
      %s395 = scalar_select %p394, %s25, 1
      %p396 = scmp.lt.s32.totalorder %s26, 0
      %s397 = scalar_select %p396, %s26, 0
      %s398 = sadd.s32 %s397, %s395
      %s399 = smul.addr %s398, 8
      %s400 = scalar_lea.vmem %s0, %s399
      %p401 = scmp.lt.s32.totalorder %s26, 0
      %s402 = scalar_select %p401, %s26, 0
      %s403 = smul.addr %s402, 8
      %s404 = scalar_lea.vmem %s5, %s403
      %p405 = scmp.lt.s32.totalorder %s26, 0
      %s406 = scalar_select %p405, %s26, 0
      %s407 = smul.addr %s406, 8
      %s408 = scalar_lea.vmem %s6, %s407
      %p409 = scmp.lt.s32.totalorder %s25, 1
      %s410 = scalar_select %p409, %s25, 1
      %p411 = scmp.lt.s32.totalorder %s26, 0
      %s412 = scalar_select %p411, %s26, 0
      %s413 = sadd.s32 %s412, %s410
      %s414 = smul.addr %s413, 4
      %s415 = scalar_lea.vmem %s7, %s414
      %p416 = scmp.lt.s32.totalorder %s25, 1
      %s417 = scalar_select %p416, %s25, 1
      %p418 = scmp.lt.s32.totalorder %s26, 0
      %s419 = scalar_select %p418, %s26, 0
      %s420 = sadd.s32 %s419, %s417
      %s421 = smul.addr %s420, 4
      %s422 = scalar_lea.vmem %s8, %s421
      %p423 = scmp.lt.s32.totalorder %s25, 1
      %s424 = scalar_select %p423, %s25, 1
      %p425 = scmp.lt.s32.totalorder %s26, 0
      %s426 = scalar_select %p425, %s26, 0
      %s427 = sadd.s32 %s426, %s424
      %s428 = smul.addr %s427, 4
      %s429 = scalar_lea.vmem %s9, %s428
      %v431 = vld [vmem:[%s400] sm:$0xff]
      %v432 = vld [vmem:[%s1] sm:$0x1]
      %v433 = vld [vmem:[%s2] sm:$0x1]
      %vm434 = vcmask 261120
      %v435 = vsel %vm434, %v431, 0.0
      %436 = vadd.xlane.f32.xlu0 %v435
      %v437 = vpop.xlane.xlu0 %436
      %v438 = vrcp.pop 32.0
      %v439 = vmul.f32 %v437, %v438
      %v440 = vsub.f32 %v431, %v439
      %v441 = vmul.f32 %v440, %v440
      %v442 = vsel %vm434, %v441, 0.0
      %443 = vadd.xlane.f32.xlu0 %v442
      %v444 = vpop.xlane.xlu0 %443
      %v445 = vmul.f32 %v444, %v438
      %v446 = vadd.f32 %v445, 1e-05
      %v447 = vrsqrt.pop %v446
      %v448 = vmul.f32 %v440, %v447
      %v450 = vlaneseq
      %v451 = vshrl.u32 %v450, 7
      %v452 = vsub.s32 0, %v451
      %v453 = vrot.slane %v432, %v452
      %v455 = vmul.f32 %v448, %v453
      %v457 = vlaneseq
      %v458 = vshrl.u32 %v457, 7
      %v459 = vsub.s32 0, %v458
      %v460 = vrot.slane %v433, %v459
      %v462 = vadd.f32 %v455, %v460
      %v463 = vld [vmem:[%s3] sm:$0xf]
      %v464 = vld [vmem:[%s3 + $0x4] sm:$0xf]
      %v465 = vld [vmem:[%s3 + $0x8] sm:$0xf]
      %v466 = vld [vmem:[%s3 + $0xc] sm:$0xf]
      %v467 = vld [vmem:[%s3 + $0x10] sm:$0xf]
      %v468 = vld [vmem:[%s3 + $0x14] sm:$0xf]
      %v469 = vpack.c.bf16 %v462, %v462
      %v476 = vunpack.c.l.b16 %v463
      %v477 = vunpack.c.l.b16 %v464
      %v478 = vunpack.c.l.b16 %v465
      %v479 = vunpack.c.l.b16 %v466
      %v480 = vunpack.c.l.b16 %v467
      %v481 = vunpack.c.l.b16 %v468
      %v482 = vpack.c.b16 %v477, %v476
      %v483 = vpack.c.b16 %v479, %v478
      %v484 = vpack.c.b16 %v481, %v480
      %v486 = vsel %vm434, %v469, 0
      %v489 = vsel %vm434, %v482, 0
      %v492 = vsel %vm434, %v483, 0
      %v495 = vsel %vm434, %v484, 0
      %497 = vmatprep.subr.bf16.mxu0 0
      %498 = vmatpush1.bf16.xpose.msra.mxu0 0
      %499 = vmatprep.subr.bf16.mxu0 0
      %500 = vmatpush1.bf16.xpose.msra.mxu0 0
      %501 = vmatprep.subr.bf16.mxu0 0
      %502 = vmatpush1.bf16.xpose.msra.mxu0 0
      %503 = vmatprep.subr.bf16.mxu0 0
      %504 = vmatpush1.bf16.xpose.msra.mxu0 0
      %505 = vmatprep.subr.bf16.mxu0 0
      %506 = vmatpush1.bf16.xpose.msra.mxu0 0
      %507 = vmatprep.subr.bf16.mxu0 0
      %508 = vmatpush1.bf16.xpose.msra.mxu0 %v495
      %509 = vmatprep.subr.bf16.mxu0 0
      %510 = vmatpush1.bf16.xpose.msra.mxu0 %v492
      %511 = vmatprep.subr.bf16.mxu0 0
      %512 = vmatpush1.bf16.xpose.msra.mxu0 %v489
      %513 = vmatprep.subr.bf16.mxu0 0
      %514 = vmatpush2.bf16.xpose.msra.mxu0 0
      %515 = vmatprep.subr.bf16.mxu0 0
      %516 = vmatpush2.bf16.xpose.msra.mxu0 0
      %517 = vmatprep.subr.bf16.mxu0 0
      %518 = vmatpush2.bf16.xpose.msra.mxu0 0
      %519 = vmatprep.subr.bf16.mxu0 0
      %520 = vmatpush2.bf16.xpose.msra.mxu0 0
      %521 = vmatprep.subr.bf16.mxu0 0
      %522 = vmatpush2.bf16.xpose.msra.mxu0 0
      %523 = vmatprep.subr.bf16.mxu0 0
      %524 = vmatpush2.bf16.xpose.msra.mxu0 0
      %525 = vmatprep.subr.bf16.mxu0 0
      %526 = vmatpush2.bf16.xpose.msra.mxu0 0
      %527 = vmatprep.subr.bf16.mxu0 0
      %528 = vmatpush2.bf16.xpose.msra.mxu0 0
      %529 = vmatprep.mubr.bf16.mxu0 0
      %530 = vmatmul.mubr.bf16.gmra.mxu0 %v486
      %v531 = vpop.f32.mrf.mxu0
      %v532 = vadd.f32 0.0, %v531
      %v533 = vpop.f32.mrf.mxu0
      %v534 = vpop.f32.mrf.mxu0
      %v535 = vpop.f32.mrf.mxu0
      %536 = vdwg.mxu0
      %v537 = vmul.f32 %v532, 0.17677669
      %v538 = vld [vmem:[%s404] sm:$0xff]
      %v539 = vld [vmem:[%s408] sm:$0xff]
      %v540 = vld [vmem:[%s4] sm:$0xf]
      %v541 = vld [vmem:[%s4 + $0x4] sm:$0xf]
      %v542 = vmul.f32 %v537, %v537
      %v543 = vmul.f32 %v537, %v542
      %v544 = vmul.f32 %v543, 0.044715
      %v545 = vadd.f32 %v537, %v544
      %v546 = vmul.f32 %v545, 0.7978846
      %v547 = vtanh.pop %v546
      %v548 = vadd.f32 %v547, 1.0
      %v549 = vmul.f32 %v548, 0.5
      %v550 = vmul.f32 %v537, %v549
      %v551 = vmul.f32 %v550, %v550
      %vm552 = vcmask 130048
      %v553 = vsel %vm552, %v551, 0.0
      %554 = vadd.xlane.f32.xlu0 %v553
      %v555 = vpop.xlane.xlu0 %554
      %v556 = vadd.f32 %v555, 1e-12
      %v557 = vrsqrt.pop %v556
      %v558 = vmul.f32 %v550, %v557
      %v559 = vmul.f32 %v558, 4.0
      %v560 = vpack.c.bf16 %v559, %v559
      %v563 = vunpack.c.l.b16 %v540
      %v564 = vunpack.c.l.b16 %v541
      %v565 = vpack.c.b16 %v564, %v563
      %v568 = vsel %vm552, %v560, 0
      %570 = vmatprep.subr.bf16.mxu0 0
      %571 = vmatpush1.bf16.msra.mxu0 0
      %572 = vmatprep.subr.bf16.mxu0 0
      %573 = vmatpush1.bf16.msra.mxu0 0
      %574 = vmatprep.subr.bf16.mxu0 0
      %575 = vmatpush1.bf16.msra.mxu0 0
      %576 = vmatprep.subr.bf16.mxu0 0
      %577 = vmatpush1.bf16.msra.mxu0 0
      %578 = vmatprep.subr.bf16.mxu0 0
      %579 = vmatpush1.bf16.msra.mxu0 0
      %580 = vmatprep.subr.bf16.mxu0 0
      %581 = vmatpush1.bf16.msra.mxu0 0
      %582 = vmatprep.subr.bf16.mxu0 0
      %583 = vmatpush1.bf16.msra.mxu0 0
      %584 = vmatprep.subr.bf16.mxu0 0
      %585 = vmatpush1.bf16.msra.mxu0 %v565
      %586 = vmatprep.subr.bf16.mxu0 0
      %587 = vmatpush2.bf16.msra.mxu0 0
      %588 = vmatprep.subr.bf16.mxu0 0
      %589 = vmatpush2.bf16.msra.mxu0 0
      %590 = vmatprep.subr.bf16.mxu0 0
      %591 = vmatpush2.bf16.msra.mxu0 0
      %592 = vmatprep.subr.bf16.mxu0 0
      %593 = vmatpush2.bf16.msra.mxu0 0
      %594 = vmatprep.subr.bf16.mxu0 0
      %595 = vmatpush2.bf16.msra.mxu0 0
      %596 = vmatprep.subr.bf16.mxu0 0
      %597 = vmatpush2.bf16.msra.mxu0 0
      %598 = vmatprep.subr.bf16.mxu0 0
      %599 = vmatpush2.bf16.msra.mxu0 0
      %600 = vmatprep.subr.bf16.mxu0 0
      %601 = vmatpush2.bf16.msra.mxu0 0
      %602 = vmatprep.mubr.bf16.mxu0 0
      %603 = vmatmul.mubr.bf16.gmra.mxu0 %v568
      %v604 = vpop.f32.mrf.mxu0
      %v605 = vadd.f32 0.0, %v604
      %v606 = vpop.f32.mrf.mxu0
      %v607 = vpop.f32.mrf.mxu0
      %v608 = vpop.f32.mrf.mxu0
      %609 = vdwg.mxu0
      %v610 = vmul.f32 %v605, %v538
      %612 = vrot.lane.b32.xlu0 %v605, 124
      %v613 = vpop.permute.xlu0 %612
      %615 = vrot.lane.b32.xlu0 %v605, 4
      %v616 = vpop.permute.xlu0 %615
      %vm618 = vcmask 31744
      %v619 = vsel %vm618, %v613, %v616
      %620 = vrot.lane.b32.xlu0 %v605, 116
      %v621 = vpop.permute.xlu0 %620
      %v623 = vsel %vm618, %v621, %v613
      %624 = vrot.lane.b32.xlu0 %v605, 108
      %v625 = vpop.permute.xlu0 %624
      %v627 = vsel %vm618, %v625, %v621
      %628 = vrot.lane.b32.xlu0 %v605, 100
      %v629 = vpop.permute.xlu0 %628
      %v631 = vsel %vm618, %v629, %v625
      %633 = vrot.lane.b32.xlu0 %v623, 8
      %v634 = vpop.permute.xlu0 %633
      %637 = vrot.lane.b32.xlu0 %v627, 16
      %v638 = vpop.permute.xlu0 %637
      %641 = vrot.lane.b32.xlu0 %v631, 24
      %v642 = vpop.permute.xlu0 %641
      %vm644 = vcmask 64512
      %v645 = vsel %vm644, %v619, %v634
      %v646 = vsel %vm552, %v645, %v638
      %vm647 = vcmask 195584
      %v648 = vsel %vm647, %v646, %v642
      %v649 = vmul.f32 %v648, %v539
      %v650 = vadd.f32 %v610, %v649
      %v651 = vpack.c.bf16 %v650, %v650
      %vm652 = vcmask 257024
      %653 = vst.msk [vmem:[%s415] sm:$0xf] %vm652, %v651
      %s654 = scalar_lea.vmem %s4, 8
      %v655 = vld [vmem:[%s654] sm:$0xf]
      %v656 = vld [vmem:[%s654 + $0x4] sm:$0xf]
      %658 = vrot.lane.b32.xlu0 %v551, 112
      %v659 = vpop.permute.xlu0 %658
      %v661 = vsel %vm552, %v659, 0.0
      %662 = vadd.xlane.f32.xlu0 %v661
      %v663 = vpop.xlane.xlu0 %662
      %v664 = vadd.f32 %v663, 1e-12
      %v665 = vrsqrt.pop %v664
      %v666 = vmul.f32 %v550, %v665
      %v667 = vmul.f32 %v666, 4.0
      %v668 = vpack.c.bf16 %v667, %v667
      %670 = vrot.lane.b32.xlu0 %v668, 112
      %v671 = vpop.permute.xlu0 %670
      %v674 = vunpack.c.l.b16 %v655
      %v675 = vunpack.c.l.b16 %v656
      %v676 = vpack.c.b16 %v675, %v674
      %v679 = vsel %vm552, %v671, 0
      %681 = vmatprep.subr.bf16.mxu0 0
      %682 = vmatpush1.bf16.msra.mxu0 0
      %683 = vmatprep.subr.bf16.mxu0 0
      %684 = vmatpush1.bf16.msra.mxu0 0
      %685 = vmatprep.subr.bf16.mxu0 0
      %686 = vmatpush1.bf16.msra.mxu0 0
      %687 = vmatprep.subr.bf16.mxu0 0
      %688 = vmatpush1.bf16.msra.mxu0 0
      %689 = vmatprep.subr.bf16.mxu0 0
      %690 = vmatpush1.bf16.msra.mxu0 0
      %691 = vmatprep.subr.bf16.mxu0 0
      %692 = vmatpush1.bf16.msra.mxu0 0
      %693 = vmatprep.subr.bf16.mxu0 0
      %694 = vmatpush1.bf16.msra.mxu0 0
      %695 = vmatprep.subr.bf16.mxu0 0
      %696 = vmatpush1.bf16.msra.mxu0 %v676
      %697 = vmatprep.subr.bf16.mxu0 0
      %698 = vmatpush2.bf16.msra.mxu0 0
      %699 = vmatprep.subr.bf16.mxu0 0
      %700 = vmatpush2.bf16.msra.mxu0 0
      %701 = vmatprep.subr.bf16.mxu0 0
      %702 = vmatpush2.bf16.msra.mxu0 0
      %703 = vmatprep.subr.bf16.mxu0 0
      %704 = vmatpush2.bf16.msra.mxu0 0
      %705 = vmatprep.subr.bf16.mxu0 0
      %706 = vmatpush2.bf16.msra.mxu0 0
      %707 = vmatprep.subr.bf16.mxu0 0
      %708 = vmatpush2.bf16.msra.mxu0 0
      %709 = vmatprep.subr.bf16.mxu0 0
      %710 = vmatpush2.bf16.msra.mxu0 0
      %711 = vmatprep.subr.bf16.mxu0 0
      %712 = vmatpush2.bf16.msra.mxu0 0
      %713 = vmatprep.mubr.bf16.mxu0 0
      %714 = vmatmul.mubr.bf16.gmra.mxu0 %v679
      %v715 = vpop.f32.mrf.mxu0
      %v716 = vadd.f32 0.0, %v715
      %v717 = vpop.f32.mrf.mxu0
      %v718 = vpop.f32.mrf.mxu0
      %v719 = vpop.f32.mrf.mxu0
      %720 = vdwg.mxu0
      %v721 = vmul.f32 %v716, %v538
      %723 = vrot.lane.b32.xlu0 %v716, 124
      %v724 = vpop.permute.xlu0 %723
      %726 = vrot.lane.b32.xlu0 %v716, 4
      %v727 = vpop.permute.xlu0 %726
      %v729 = vsel %vm618, %v724, %v727
      %730 = vrot.lane.b32.xlu0 %v716, 116
      %v731 = vpop.permute.xlu0 %730
      %v733 = vsel %vm618, %v731, %v724
      %734 = vrot.lane.b32.xlu0 %v716, 108
      %v735 = vpop.permute.xlu0 %734
      %v737 = vsel %vm618, %v735, %v731
      %738 = vrot.lane.b32.xlu0 %v716, 100
      %v739 = vpop.permute.xlu0 %738
      %v741 = vsel %vm618, %v739, %v735
      %743 = vrot.lane.b32.xlu0 %v733, 8
      %v744 = vpop.permute.xlu0 %743
      %747 = vrot.lane.b32.xlu0 %v737, 16
      %v748 = vpop.permute.xlu0 %747
      %751 = vrot.lane.b32.xlu0 %v741, 24
      %v752 = vpop.permute.xlu0 %751
      %v754 = vsel %vm644, %v729, %v744
      %v755 = vsel %vm552, %v754, %v748
      %v756 = vsel %vm647, %v755, %v752
      %v757 = vmul.f32 %v756, %v539
      %v758 = vadd.f32 %v721, %v757
      %v759 = vpack.c.bf16 %v758, %v758
      %760 = vst.msk [vmem:[%s422] sm:$0xf] %vm652, %v759
      %s761 = scalar_lea.vmem %s4, 16
      %v762 = vld [vmem:[%s761] sm:$0xf]
      %v763 = vld [vmem:[%s761 + $0x4] sm:$0xf]
      %764 = vrot.lane.b32.xlu0 %v551, 96
      %v765 = vpop.permute.xlu0 %764
      %v767 = vsel %vm552, %v765, 0.0
      %768 = vadd.xlane.f32.xlu0 %v767
      %v769 = vpop.xlane.xlu0 %768
      %v770 = vadd.f32 %v769, 1e-12
      %v771 = vrsqrt.pop %v770
      %v772 = vmul.f32 %v550, %v771
      %v773 = vmul.f32 %v772, 4.0
      %v774 = vpack.c.bf16 %v773, %v773
      %776 = vrot.lane.b32.xlu0 %v774, 96
      %v777 = vpop.permute.xlu0 %776
      %v780 = vunpack.c.l.b16 %v762
      %v781 = vunpack.c.l.b16 %v763
      %v782 = vpack.c.b16 %v781, %v780
      %v785 = vsel %vm552, %v777, 0
      %787 = vmatprep.subr.bf16.mxu0 0
      %788 = vmatpush1.bf16.msra.mxu0 0
      %789 = vmatprep.subr.bf16.mxu0 0
      %790 = vmatpush1.bf16.msra.mxu0 0
      %791 = vmatprep.subr.bf16.mxu0 0
      %792 = vmatpush1.bf16.msra.mxu0 0
      %793 = vmatprep.subr.bf16.mxu0 0
      %794 = vmatpush1.bf16.msra.mxu0 0
      %795 = vmatprep.subr.bf16.mxu0 0
      %796 = vmatpush1.bf16.msra.mxu0 0
      %797 = vmatprep.subr.bf16.mxu0 0
      %798 = vmatpush1.bf16.msra.mxu0 0
      %799 = vmatprep.subr.bf16.mxu0 0
      %800 = vmatpush1.bf16.msra.mxu0 0
      %801 = vmatprep.subr.bf16.mxu0 0
      %802 = vmatpush1.bf16.msra.mxu0 %v782
      %803 = vmatprep.subr.bf16.mxu0 0
      %804 = vmatpush2.bf16.msra.mxu0 0
      %805 = vmatprep.subr.bf16.mxu0 0
      %806 = vmatpush2.bf16.msra.mxu0 0
      %807 = vmatprep.subr.bf16.mxu0 0
      %808 = vmatpush2.bf16.msra.mxu0 0
      %809 = vmatprep.subr.bf16.mxu0 0
      %810 = vmatpush2.bf16.msra.mxu0 0
      %811 = vmatprep.subr.bf16.mxu0 0
      %812 = vmatpush2.bf16.msra.mxu0 0
      %813 = vmatprep.subr.bf16.mxu0 0
      %814 = vmatpush2.bf16.msra.mxu0 0
      %815 = vmatprep.subr.bf16.mxu0 0
      %816 = vmatpush2.bf16.msra.mxu0 0
      %817 = vmatprep.subr.bf16.mxu0 0
      %818 = vmatpush2.bf16.msra.mxu0 0
      %819 = vmatprep.mubr.bf16.mxu0 0
      %820 = vmatmul.mubr.bf16.gmra.mxu0 %v785
      %v821 = vpop.f32.mrf.mxu0
      %v822 = vadd.f32 0.0, %v821
      %v823 = vpop.f32.mrf.mxu0
      %v824 = vpop.f32.mrf.mxu0
      %v825 = vpop.f32.mrf.mxu0
      %826 = vdwg.mxu0
      %v827 = vpack.c.bf16 %v822, %v822
      %828 = vst.msk [vmem:[%s429] sm:$0xf] %vm652, %v827
      %p829 = scmp.lt.s32.totalorder %s25, 1
      %s830 = scalar_select %p829, %s25, 1
      %p831 = scmp.lt.s32.totalorder %s26, 0
      %s832 = scalar_select %p831, %s26, 0
      %s833 = sadd.s32 %s832, %s830
      %s834 = smul.addr %s833, 4
      %s835 = scalar_lea.vmem %s7, %s834
      %p836 = scmp.lt.s32.totalorder %s25, 1
      %s837 = scalar_select %p836, %s25, 1
      %p838 = scmp.lt.s32.totalorder %s26, 0
      %s839 = scalar_select %p838, %s26, 0
      %s840 = sadd.s32 %s839, %s837
      %s841 = smul.addr %s840, 4
      %s842 = scalar_lea.vmem %s8, %s841
      %p843 = scmp.lt.s32.totalorder %s25, 1
      %s844 = scalar_select %p843, %s25, 1
      %p845 = scmp.lt.s32.totalorder %s26, 0
      %s846 = scalar_select %p845, %s26, 0
      %s847 = sadd.s32 %s846, %s844
      %s848 = smul.addr %s847, 4
      %s849 = scalar_lea.vmem %s9, %s848
      // Predicated region
      $region49: #{tokenformer_layer_forward.2} parent=47 // pred_check
        %p850 = pneg %p217
      $region50: #{tokenformer_layer_forward.2} parent=47 // pred_check_branch
        %852 = sbr.rel (%p850) target = $region52
      $region51: #{tokenformer_layer_forward.2} parent=47 // pred_region
        _
      $region52: #{tokenformer_layer_forward.2} parent=47 // pred_fallthru
        _
      // Predicated region
      $region53: #{tokenformer_layer_forward.2} parent=47 // pred_check
        %p853 = pneg %p245
      $region54: #{tokenformer_layer_forward.2} parent=47 // pred_check_branch
        %855 = sbr.rel (%p853) target = $region56
      $region55: #{tokenformer_layer_forward.2} parent=47 // pred_region
        _
      $region56: #{tokenformer_layer_forward.2} parent=47 // pred_fallthru
        _
      // Predicated region
      $region57: #{tokenformer_layer_forward.2} parent=47 // pred_check
        %p856 = pneg %p273
      $region58: #{tokenformer_layer_forward.2} parent=47 // pred_check_branch
        %858 = sbr.rel (%p856) target = $region60
      $region59: #{tokenformer_layer_forward.2} parent=47 // pred_region
        _
      $region60: #{tokenformer_layer_forward.2} parent=47 // pred_fallthru
        _
    $region48: #{tokenformer_layer_forward.2} parent=5 // pred_fallthru
      _
    %p859 = scmp.le.s32.totalorder 2, %s16
    // Predicated region
    $region61: #{tokenformer_layer_forward.2} parent=5 // pred_check
      %p860 = pneg %p859
    $region62: #{tokenformer_layer_forward.2} parent=5 // pred_check_branch
      %862 = sbr.rel (%p860) target = $region64
    $region63: #{tokenformer_layer_forward.2} parent=5 // pred_region
      %s863 = ssub.s32 %s16, 2
      // Predicated region
      $region65: #{tokenformer_layer_forward.2} parent=63 // pred_check
        %p864 = pneg %p223
      $region66: #{tokenformer_layer_forward.2} parent=63 // pred_check_branch
        %866 = sbr.rel (%p864) target = $region68
      $region67: #{tokenformer_layer_forward.2} parent=63 // pred_region
        %p867 = scmp.lt.s32.totalorder %s27, 1
        %s868 = scalar_select %p867, %s27, 1
        %p869 = scmp.lt.s32.totalorder %s28, 0
        %s870 = scalar_select %p869, %s28, 0
        %s871 = sadd.s32 %s870, %s868
        %s872 = smul.addr %s871, 4
        %s873 = scalar_lea.vmem %s7, %s872
      $region68: #{tokenformer_layer_forward.2} parent=63 // pred_fallthru
        _
      // Predicated region
      $region69: #{tokenformer_layer_forward.2} parent=63 // pred_check
        %p874 = pneg %p251
      $region70: #{tokenformer_layer_forward.2} parent=63 // pred_check_branch
        %876 = sbr.rel (%p874) target = $region72
      $region71: #{tokenformer_layer_forward.2} parent=63 // pred_region
        %p877 = scmp.lt.s32.totalorder %s27, 1
        %s878 = scalar_select %p877, %s27, 1
        %p879 = scmp.lt.s32.totalorder %s28, 0
        %s880 = scalar_select %p879, %s28, 0
        %s881 = sadd.s32 %s880, %s878
        %s882 = smul.addr %s881, 4
        %s883 = scalar_lea.vmem %s8, %s882
      $region72: #{tokenformer_layer_forward.2} parent=63 // pred_fallthru
        _
      // Predicated region
      $region73: #{tokenformer_layer_forward.2} parent=63 // pred_check
        %p884 = pneg %p279
      $region74: #{tokenformer_layer_forward.2} parent=63 // pred_check_branch
        %886 = sbr.rel (%p884) target = $region76
      $region75: #{tokenformer_layer_forward.2} parent=63 // pred_region
        %p887 = scmp.lt.s32.totalorder %s27, 1
        %s888 = scalar_select %p887, %s27, 1
        %p889 = scmp.lt.s32.totalorder %s28, 0
        %s890 = scalar_select %p889, %s28, 0
        %s891 = sadd.s32 %s890, %s888
        %s892 = smul.addr %s891, 4
        %s893 = scalar_lea.vmem %s9, %s892
      $region76: #{tokenformer_layer_forward.2} parent=63 // pred_fallthru
        _
    $region64: #{tokenformer_layer_forward.2} parent=5 // pred_fallthru
      _
  $region6: #{tokenformer_layer_forward.2} parent=0 // loop_footer
    %s20 = sadd.s32 1, %s16
  $region7: #{tokenformer_layer_forward.2} parent=0 // loop_footer_branch
    %15 = sbr.rel target = $region3
  $region8: #{tokenformer_layer_forward.2} parent=0 // loop_exit
    _

// kernel: tokenformer_layer_forward.3
$region0: #{tokenformer_layer_forward.3}
  #allocation0 [shape = 'u32[]', space=smem, size = 0x4, offset = 0x4, fixed_abs, tag = 'smem constant byte address 0x4 - core index']
  #allocation1 [shape = 'u32[144,128]{1,0:T(1,128)}', space=vmem, size = 0x12000, scoped, tag = 'internal scratch']
  #allocation2 [shape = 'f32[4,8,1]{2,1,0:T(8,128)}', space=vmem, size = 0x4000, scoped, tag = 'scratch operand']
  #allocation3 [shape = 'f32[4,8,1]{2,1,0:T(8,128)}', space=vmem, size = 0x4000, scoped, tag = 'scratch operand']
  #allocation4 [shape = 'f32[8,32]{1,0:T(8,128)}', space=vmem, size = 0x1000, scoped, tag = 'scratch operand']
  %s0 = inlined_call_operand.vmem [shape: bf16[2,8,32], index: 0, kind: input, shape index: {}]
  %s1 = inlined_call_operand.vmem [shape: bf16[2,8,32], index: 1, kind: input, shape index: {}]
  %s2 = inlined_call_operand.vmem [shape: bf16[2,8,32], index: 2, kind: input, shape index: {}]
  %s3 = inlined_call_operand.vmem [shape: f32[2,8,32], index: 3, kind: input, shape index: {}]
  %s4 = inlined_call_operand.vmem [shape: bf16[16,32], index: 4, kind: input, shape index: {}]
  %s5 = inlined_call_operand.vmem [shape: bf16[16,32], index: 5, kind: input, shape index: {}]
  %s6 = inlined_call_operand.vmem [shape: bf16[64,32], index: 6, kind: input, shape index: {}]
  %s7 = inlined_call_operand.vmem [shape: bf16[64,32], index: 7, kind: input, shape index: {}]
  %s8 = inlined_call_operand.vmem [shape: f32[1,32], index: 8, kind: input, shape index: {}]
  %s9 = inlined_call_operand.vmem [shape: f32[1,32], index: 9, kind: input, shape index: {}]
  %s10 = inlined_call_operand.hbm [shape: f32[2,8,32], index: 10, kind: output, shape index: {}]
  %s11 = sld [smem:[#allocation0]]
  $region85: #{tokenformer_layer_forward.3} parent=0
    _
  %s13 = ssub.s32 1, %s11
  %s14 = scalar_select 0, %s13, %s11
  $region1: #{tokenformer_layer_forward.3} parent=0
    #allocation5 [shape = 'u8[8192]{0}', space=vmem, size = 0x2000, scoped, tag = 'output window, operand 0']
    #allocation6 [shape = 's32[2]{0}', space=sflag, size = 0x8, scoped, tag = 'scoped memory for tokenformer_layer_forward.3']
    %15 = vsyncpa [#allocation6], 0
    %s16 = scalar_lea.sflag [#allocation6], 1
    %17 = vsyncpa %s16, 0
    loop: start=0, step=1, limit=4
    $region2: #{tokenformer_layer_forward.3} parent=1 // loop_pre_header
      _
    $region3: #{tokenformer_layer_forward.3} parent=1 // loop_header
      %s19 = sphi 0, %s23
      %p20 = scmp.ge.s32.totalorder %s19, 4
      %s26 = sphi 0, %s45
      %s27 = sphi 0, %s41
      %s28 = sphi 0, %s37
      %s29 = sphi 0, %s26
      %s30 = sphi 0, %s27
      %s31 = sphi 0, %s28
      %s32 = sphi 0, %s29
      %s33 = sphi 0, %s30
      %s34 = sphi 0, %s31
      %s50 = sphi 0, %s52
      %s53 = sphi 0, %s50
      %s54 = sphi 0, %s53
      %s70 = sphi 0, %s54
      %s82 = sphi 0, %s84
      %s85 = sphi 0, %s82
      %s86 = sphi 0, %s85
      %s102 = sphi 0, %s86
      %s114 = sphi 0, %s116
      %s117 = sphi 0, %s114
      %s118 = sphi 0, %s117
      %s134 = sphi 0, %s118
      %s142 = sphi 0, %s144
      %s145 = sphi 0, %s142
      %s146 = sphi 0, %s145
      %s162 = sphi 0, %s146
      %s166 = sphi 0, %s166
      %s168 = sphi 0, %s166
      %s169 = sphi 0, %s168
      %s183 = sphi 0, %s169
      %s187 = sphi 0, %s187
      %s189 = sphi 0, %s187
      %s190 = sphi 0, %s189
      %s204 = sphi 0, %s190
      %s208 = sphi 0, %s208
      %s210 = sphi 0, %s208
      %s211 = sphi 0, %s210
      %s225 = sphi 0, %s211
      %s229 = sphi 0, %s229
      %s231 = sphi 0, %s229
      %s232 = sphi 0, %s231
      %s246 = sphi 0, %s232
      %s250 = sphi 0, %s250
      %s252 = sphi 0, %s250
      %s253 = sphi 0, %s252
      %s267 = sphi 0, %s253
      %s271 = sphi 0, %s271
      %s273 = sphi 0, %s271
      %s274 = sphi 0, %s273
      %s288 = sphi 0, %s274
      %s296 = sphi 0, %s298
      %s299 = sphi 0, %s296
      %s300 = sphi 0, %s299
      %s316 = sphi 0, %s300
    $region4: #{tokenformer_layer_forward.3} parent=1 // loop_header_branch
      %22 = sbr.rel (%p20) target = $region8
    $region5: #{tokenformer_layer_forward.3} parent=1 // loop_body
      %s24 = ssub.s32 %s19, 1
      %s25 = ssub.s32 %s19, 2
      %s35 = sadd.s32 1, %s28
      %p36 = scmp.ge.s32.totalorder %s35, 1
      %s37 = scalar_select %p36, 0, %s35
      %s38 = sadd.s32 1, %s27
      %s39 = scalar_select %p36, %s38, %s27
      %p40 = scmp.ge.s32.totalorder %s39, 1
      %s41 = scalar_select %p40, 0, %s39
      %s42 = sadd.s32 1, %s26
      %s43 = scalar_select %p40, %s42, %s26
      %p44 = scmp.ge.s32.totalorder %s43, 2
      %s45 = scalar_select %p44, 0, %s43
      %s46 = ssub.s32 %s26, %s45
      %s47 = ssub.s32 %s27, %s41
      %s48 = sor.u32 %s46, %s47
      %p49 = scmp.eq.s32.totalorder %s48, 0
      %s51 = sadd.s32 %s50, 1
      %s52 = scalar_select %p49, %s50, %s51
      %p55 = pneg %p49
      %p56 = scmp.eq.s32.totalorder %s19, 1
      %p57 = por %p55, %p56
      %p58 = scmp.ne.s32.totalorder %s50, %s53
      %p59 = scmp.eq.s32.totalorder %s19, 0
      %p60 = por %p58, %p59
      %p61 = scmp.ne.s32.totalorder %s50, %s53
      %p62 = scmp.eq.s32.totalorder %s24, 1
      %p63 = por %p61, %p62
      %p64 = scmp.ne.s32.totalorder %s53, %s54
      %p65 = scmp.eq.s32.totalorder %s24, 0
      %p66 = por %p64, %p65
      %p67 = scmp.ne.s32.totalorder %s53, %s54
      %p68 = scmp.eq.s32.totalorder %s25, 1
      %p69 = por %p67, %p68
      %p71 = scmp.ne.s32.totalorder %s54, %s70
      %p72 = scmp.eq.s32.totalorder %s25, 0
      %p73 = por %p71, %p72
      %p74 = scmp.lt.s32.totalorder %s28, %s27
      %s75 = scalar_select %p74, %s28, %s27
      %p76 = scmp.lt.s32.totalorder %s37, %s41
      %s77 = scalar_select %p76, %s37, %s41
      %s78 = ssub.s32 %s26, %s45
      %s79 = ssub.s32 %s75, %s77
      %s80 = sor.u32 %s78, %s79
      %p81 = scmp.eq.s32.totalorder %s80, 0
      %s83 = sadd.s32 %s82, 1
      %s84 = scalar_select %p81, %s82, %s83
      %p87 = pneg %p81
      %p88 = scmp.eq.s32.totalorder %s19, 1
      %p89 = por %p87, %p88
      %p90 = scmp.ne.s32.totalorder %s82, %s85
      %p91 = scmp.eq.s32.totalorder %s19, 0
      %p92 = por %p90, %p91
      %p93 = scmp.ne.s32.totalorder %s82, %s85
      %p94 = scmp.eq.s32.totalorder %s24, 1
      %p95 = por %p93, %p94
      %p96 = scmp.ne.s32.totalorder %s85, %s86
      %p97 = scmp.eq.s32.totalorder %s24, 0
      %p98 = por %p96, %p97
      %p99 = scmp.ne.s32.totalorder %s85, %s86
      %p100 = scmp.eq.s32.totalorder %s25, 1
      %p101 = por %p99, %p100
      %p103 = scmp.ne.s32.totalorder %s86, %s102
      %p104 = scmp.eq.s32.totalorder %s25, 0
      %p105 = por %p103, %p104
      %p106 = scmp.lt.s32.totalorder %s28, %s27
      %s107 = scalar_select %p106, %s28, %s27
      %p108 = scmp.lt.s32.totalorder %s37, %s41
      %s109 = scalar_select %p108, %s37, %s41
      %s110 = ssub.s32 %s26, %s45
      %s111 = ssub.s32 %s107, %s109
      %s112 = sor.u32 %s110, %s111
      %p113 = scmp.eq.s32.totalorder %s112, 0
      %s115 = sadd.s32 %s114, 1
      %s116 = scalar_select %p113, %s114, %s115
      %p119 = pneg %p113
      %p120 = scmp.eq.s32.totalorder %s19, 1
      %p121 = por %p119, %p120
      %p122 = scmp.ne.s32.totalorder %s114, %s117
      %p123 = scmp.eq.s32.totalorder %s19, 0
      %p124 = por %p122, %p123
      %p125 = scmp.ne.s32.totalorder %s114, %s117
      %p126 = scmp.eq.s32.totalorder %s24, 1
      %p127 = por %p125, %p126
      %p128 = scmp.ne.s32.totalorder %s117, %s118
      %p129 = scmp.eq.s32.totalorder %s24, 0
      %p130 = por %p128, %p129
      %p131 = scmp.ne.s32.totalorder %s117, %s118
      %p132 = scmp.eq.s32.totalorder %s25, 1
      %p133 = por %p131, %p132
      %p135 = scmp.ne.s32.totalorder %s118, %s134
      %p136 = scmp.eq.s32.totalorder %s25, 0
      %p137 = por %p135, %p136
      %s138 = ssub.s32 %s26, %s45
      %s139 = ssub.s32 %s27, %s41
      %s140 = sor.u32 %s138, %s139
      %p141 = scmp.eq.s32.totalorder %s140, 0
      %s143 = sadd.s32 %s142, 1
      %s144 = scalar_select %p141, %s142, %s143
      %p147 = pneg %p141
      %p148 = scmp.eq.s32.totalorder %s19, 1
      %p149 = por %p147, %p148
      %p150 = scmp.ne.s32.totalorder %s142, %s145
      %p151 = scmp.eq.s32.totalorder %s19, 0
      %p152 = por %p150, %p151
      %p153 = scmp.ne.s32.totalorder %s142, %s145
      %p154 = scmp.eq.s32.totalorder %s24, 1
      %p155 = por %p153, %p154
      %p156 = scmp.ne.s32.totalorder %s145, %s146
      %p157 = scmp.eq.s32.totalorder %s24, 0
      %p158 = por %p156, %p157
      %p159 = scmp.ne.s32.totalorder %s145, %s146
      %p160 = scmp.eq.s32.totalorder %s25, 1
      %p161 = por %p159, %p160
      %p163 = scmp.ne.s32.totalorder %s146, %s162
      %p164 = scmp.eq.s32.totalorder %s25, 0
      %p165 = por %p163, %p164
      %s167 = sadd.s32 %s166, 1
      %p170 = scmp.eq.s32.totalorder %s19, 1
      %p171 = scmp.ne.s32.totalorder %s166, %s168
      %p172 = scmp.eq.s32.totalorder %s19, 0
      %p173 = por %p171, %p172
      %p174 = scmp.ne.s32.totalorder %s166, %s168
      %p175 = scmp.eq.s32.totalorder %s24, 1
      %p176 = por %p174, %p175
      %p177 = scmp.ne.s32.totalorder %s168, %s169
      %p178 = scmp.eq.s32.totalorder %s24, 0
      %p179 = por %p177, %p178
      %p180 = scmp.ne.s32.totalorder %s168, %s169
      %p181 = scmp.eq.s32.totalorder %s25, 1
      %p182 = por %p180, %p181
      %p184 = scmp.ne.s32.totalorder %s169, %s183
      %p185 = scmp.eq.s32.totalorder %s25, 0
      %p186 = por %p184, %p185
      %s188 = sadd.s32 %s187, 1
      %p191 = scmp.eq.s32.totalorder %s19, 1
      %p192 = scmp.ne.s32.totalorder %s187, %s189
      %p193 = scmp.eq.s32.totalorder %s19, 0
      %p194 = por %p192, %p193
      %p195 = scmp.ne.s32.totalorder %s187, %s189
      %p196 = scmp.eq.s32.totalorder %s24, 1
      %p197 = por %p195, %p196
      %p198 = scmp.ne.s32.totalorder %s189, %s190
      %p199 = scmp.eq.s32.totalorder %s24, 0
      %p200 = por %p198, %p199
      %p201 = scmp.ne.s32.totalorder %s189, %s190
      %p202 = scmp.eq.s32.totalorder %s25, 1
      %p203 = por %p201, %p202
      %p205 = scmp.ne.s32.totalorder %s190, %s204
      %p206 = scmp.eq.s32.totalorder %s25, 0
      %p207 = por %p205, %p206
      %s209 = sadd.s32 %s208, 1
      %p212 = scmp.eq.s32.totalorder %s19, 1
      %p213 = scmp.ne.s32.totalorder %s208, %s210
      %p214 = scmp.eq.s32.totalorder %s19, 0
      %p215 = por %p213, %p214
      %p216 = scmp.ne.s32.totalorder %s208, %s210
      %p217 = scmp.eq.s32.totalorder %s24, 1
      %p218 = por %p216, %p217
      %p219 = scmp.ne.s32.totalorder %s210, %s211
      %p220 = scmp.eq.s32.totalorder %s24, 0
      %p221 = por %p219, %p220
      %p222 = scmp.ne.s32.totalorder %s210, %s211
      %p223 = scmp.eq.s32.totalorder %s25, 1
      %p224 = por %p222, %p223
      %p226 = scmp.ne.s32.totalorder %s211, %s225
      %p227 = scmp.eq.s32.totalorder %s25, 0
      %p228 = por %p226, %p227
      %s230 = sadd.s32 %s229, 1
      %p233 = scmp.eq.s32.totalorder %s19, 1
      %p234 = scmp.ne.s32.totalorder %s229, %s231
      %p235 = scmp.eq.s32.totalorder %s19, 0
      %p236 = por %p234, %p235
      %p237 = scmp.ne.s32.totalorder %s229, %s231
      %p238 = scmp.eq.s32.totalorder %s24, 1
      %p239 = por %p237, %p238
      %p240 = scmp.ne.s32.totalorder %s231, %s232
      %p241 = scmp.eq.s32.totalorder %s24, 0
      %p242 = por %p240, %p241
      %p243 = scmp.ne.s32.totalorder %s231, %s232
      %p244 = scmp.eq.s32.totalorder %s25, 1
      %p245 = por %p243, %p244
      %p247 = scmp.ne.s32.totalorder %s232, %s246
      %p248 = scmp.eq.s32.totalorder %s25, 0
      %p249 = por %p247, %p248
      %s251 = sadd.s32 %s250, 1
      %p254 = scmp.eq.s32.totalorder %s19, 1
      %p255 = scmp.ne.s32.totalorder %s250, %s252
      %p256 = scmp.eq.s32.totalorder %s19, 0
      %p257 = por %p255, %p256
      %p258 = scmp.ne.s32.totalorder %s250, %s252
      %p259 = scmp.eq.s32.totalorder %s24, 1
      %p260 = por %p258, %p259
      %p261 = scmp.ne.s32.totalorder %s252, %s253
      %p262 = scmp.eq.s32.totalorder %s24, 0
      %p263 = por %p261, %p262
      %p264 = scmp.ne.s32.totalorder %s252, %s253
      %p265 = scmp.eq.s32.totalorder %s25, 1
      %p266 = por %p264, %p265
      %p268 = scmp.ne.s32.totalorder %s253, %s267
      %p269 = scmp.eq.s32.totalorder %s25, 0
      %p270 = por %p268, %p269
      %s272 = sadd.s32 %s271, 1
      %p275 = scmp.eq.s32.totalorder %s19, 1
      %p276 = scmp.ne.s32.totalorder %s271, %s273
      %p277 = scmp.eq.s32.totalorder %s19, 0
      %p278 = por %p276, %p277
      %p279 = scmp.ne.s32.totalorder %s271, %s273
      %p280 = scmp.eq.s32.totalorder %s24, 1
      %p281 = por %p279, %p280
      %p282 = scmp.ne.s32.totalorder %s273, %s274
      %p283 = scmp.eq.s32.totalorder %s24, 0
      %p284 = por %p282, %p283
      %p285 = scmp.ne.s32.totalorder %s273, %s274
      %p286 = scmp.eq.s32.totalorder %s25, 1
      %p287 = por %p285, %p286
      %p289 = scmp.ne.s32.totalorder %s274, %s288
      %p290 = scmp.eq.s32.totalorder %s25, 0
      %p291 = por %p289, %p290
      %s292 = ssub.s32 %s26, %s45
      %s293 = ssub.s32 %s27, %s41
      %s294 = sor.u32 %s292, %s293
      %p295 = scmp.eq.s32.totalorder %s294, 0
      %s297 = sadd.s32 %s296, 1
      %s298 = scalar_select %p295, %s296, %s297
      %p301 = pneg %p295
      %p302 = scmp.eq.s32.totalorder %s19, 1
      %p303 = por %p301, %p302
      %p304 = scmp.ne.s32.totalorder %s296, %s299
      %p305 = scmp.eq.s32.totalorder %s19, 0
      %p306 = por %p304, %p305
      %p307 = scmp.ne.s32.totalorder %s296, %s299
      %p308 = scmp.eq.s32.totalorder %s24, 1
      %p309 = por %p307, %p308
      %p310 = scmp.ne.s32.totalorder %s299, %s300
      %p311 = scmp.eq.s32.totalorder %s24, 0
      %p312 = por %p310, %p311
      %p313 = scmp.ne.s32.totalorder %s299, %s300
      %p314 = scmp.eq.s32.totalorder %s25, 1
      %p315 = por %p313, %p314
      %p317 = scmp.ne.s32.totalorder %s300, %s316
      %p318 = scmp.eq.s32.totalorder %s25, 0
      %p319 = por %p317, %p318
      %p320 = scmp.le.s32.totalorder 1, %s19
      %p321 = scmp.lt.s32.totalorder %s19, 3
      %p322 = pnand %p320, %p321
      %p323 = pneg %p322
      // Predicated region
      $region9: #{tokenformer_layer_forward.3} parent=5 // pred_check
        _
      $region10: #{tokenformer_layer_forward.3} parent=5 // pred_check_branch
        %325 = sbr.rel (%p322) target = $region12
      $region11: #{tokenformer_layer_forward.3} parent=5 // pred_region
        %s326 = ssub.s32 %s19, 1
        // Predicated region
        $region13: #{tokenformer_layer_forward.3} parent=11 // pred_check
          %p327 = pneg %p179
        $region14: #{tokenformer_layer_forward.3} parent=11 // pred_check_branch
          %329 = sbr.rel (%p327) target = $region16
        $region15: #{tokenformer_layer_forward.3} parent=11 // pred_region
          _
        $region16: #{tokenformer_layer_forward.3} parent=11 // pred_fallthru
          _
        // Predicated region
        $region17: #{tokenformer_layer_forward.3} parent=11 // pred_check
          %p330 = pneg %p200
        $region18: #{tokenformer_layer_forward.3} parent=11 // pred_check_branch
          %332 = sbr.rel (%p330) target = $region20
        $region19: #{tokenformer_layer_forward.3} parent=11 // pred_region
          _
        $region20: #{tokenformer_layer_forward.3} parent=11 // pred_fallthru
          _
        // Predicated region
        $region21: #{tokenformer_layer_forward.3} parent=11 // pred_check
          %p333 = pneg %p221
        $region22: #{tokenformer_layer_forward.3} parent=11 // pred_check_branch
          %335 = sbr.rel (%p333) target = $region24
        $region23: #{tokenformer_layer_forward.3} parent=11 // pred_region
          _
        $region24: #{tokenformer_layer_forward.3} parent=11 // pred_fallthru
          _
        // Predicated region
        $region25: #{tokenformer_layer_forward.3} parent=11 // pred_check
          %p336 = pneg %p242
        $region26: #{tokenformer_layer_forward.3} parent=11 // pred_check_branch
          %338 = sbr.rel (%p336) target = $region28
        $region27: #{tokenformer_layer_forward.3} parent=11 // pred_region
          _
        $region28: #{tokenformer_layer_forward.3} parent=11 // pred_fallthru
          _
        // Predicated region
        $region29: #{tokenformer_layer_forward.3} parent=11 // pred_check
          %p339 = pneg %p263
        $region30: #{tokenformer_layer_forward.3} parent=11 // pred_check_branch
          %341 = sbr.rel (%p339) target = $region32
        $region31: #{tokenformer_layer_forward.3} parent=11 // pred_region
          _
        $region32: #{tokenformer_layer_forward.3} parent=11 // pred_fallthru
          _
        // Predicated region
        $region33: #{tokenformer_layer_forward.3} parent=11 // pred_check
          %p342 = pneg %p284
        $region34: #{tokenformer_layer_forward.3} parent=11 // pred_check_branch
          %344 = sbr.rel (%p342) target = $region36
        $region35: #{tokenformer_layer_forward.3} parent=11 // pred_region
          _
        $region36: #{tokenformer_layer_forward.3} parent=11 // pred_fallthru
          _
      $region12: #{tokenformer_layer_forward.3} parent=5 // pred_fallthru
        _
      %p345 = scmp.lt.s32.totalorder %s19, 2
      // Predicated region
      $region37: #{tokenformer_layer_forward.3} parent=5 // pred_check
        %p346 = pneg %p345
      $region38: #{tokenformer_layer_forward.3} parent=5 // pred_check_branch
        %348 = sbr.rel (%p346) target = $region40
      $region39: #{tokenformer_layer_forward.3} parent=5 // pred_region
        // Predicated region
        $region41: #{tokenformer_layer_forward.3} parent=39 // pred_check
          %p349 = pneg %p60
        $region42: #{tokenformer_layer_forward.3} parent=39 // pred_check_branch
          %351 = sbr.rel (%p349) target = $region44
        $region43: #{tokenformer_layer_forward.3} parent=39 // pred_region
          %p352 = scmp.lt.s32.totalorder %s26, 1
          %s353 = scalar_select %p352, %s26, 1
          %p354 = scmp.lt.s32.totalorder %s27, 0
          %s355 = scalar_select %p354, %s27, 0
          %s356 = sadd.s32 %s355, %s353
          %s357 = smul.addr %s356, 4
          %s358 = scalar_lea.vmem %s0, %s357
        $region44: #{tokenformer_layer_forward.3} parent=39 // pred_fallthru
          _
        // Predicated region
        $region45: #{tokenformer_layer_forward.3} parent=39 // pred_check
          %p359 = pneg %p92
        $region46: #{tokenformer_layer_forward.3} parent=39 // pred_check_branch
          %361 = sbr.rel (%p359) target = $region48
        $region47: #{tokenformer_layer_forward.3} parent=39 // pred_region
          %p362 = scmp.lt.s32.totalorder %s28, %s27
          %s363 = scalar_select %p362, %s28, %s27
          %p364 = scmp.lt.s32.totalorder %s26, 1
          %s365 = scalar_select %p364, %s26, 1
          %p366 = scmp.lt.s32.totalorder %s363, 0
          %s367 = scalar_select %p366, %s363, 0
          %s368 = sadd.s32 %s367, %s365
          %s369 = smul.addr %s368, 4
          %s370 = scalar_lea.vmem %s1, %s369
          %p371 = scmp.lt.s32.totalorder %s28, %s27
          %s372 = scalar_select %p371, %s28, %s27
        $region48: #{tokenformer_layer_forward.3} parent=39 // pred_fallthru
          _
        // Predicated region
        $region49: #{tokenformer_layer_forward.3} parent=39 // pred_check
          %p373 = pneg %p124
        $region50: #{tokenformer_layer_forward.3} parent=39 // pred_check_branch
          %375 = sbr.rel (%p373) target = $region52
        $region51: #{tokenformer_layer_forward.3} parent=39 // pred_region
          %p376 = scmp.lt.s32.totalorder %s28, %s27
          %s377 = scalar_select %p376, %s28, %s27
          %p378 = scmp.lt.s32.totalorder %s26, 1
          %s379 = scalar_select %p378, %s26, 1
          %p380 = scmp.lt.s32.totalorder %s377, 0
          %s381 = scalar_select %p380, %s377, 0
          %s382 = sadd.s32 %s381, %s379
          %s383 = smul.addr %s382, 4
          %s384 = scalar_lea.vmem %s2, %s383
          %p385 = scmp.lt.s32.totalorder %s28, %s27
          %s386 = scalar_select %p385, %s28, %s27
        $region52: #{tokenformer_layer_forward.3} parent=39 // pred_fallthru
          _
        // Predicated region
        $region53: #{tokenformer_layer_forward.3} parent=39 // pred_check
          %p387 = pneg %p152
        $region54: #{tokenformer_layer_forward.3} parent=39 // pred_check_branch
          %389 = sbr.rel (%p387) target = $region56
        $region55: #{tokenformer_layer_forward.3} parent=39 // pred_region
          %p390 = scmp.lt.s32.totalorder %s26, 1
          %s391 = scalar_select %p390, %s26, 1
          %p392 = scmp.lt.s32.totalorder %s27, 0
          %s393 = scalar_select %p392, %s27, 0
          %s394 = sadd.s32 %s393, %s391
          %s395 = smul.addr %s394, 8
          %s396 = scalar_lea.vmem %s3, %s395
        $region56: #{tokenformer_layer_forward.3} parent=39 // pred_fallthru
          _
      $region40: #{tokenformer_layer_forward.3} parent=5 // pred_fallthru
        _
      %p397 = scmp.le.s32.totalorder 1, %s19
      %p398 = scmp.lt.s32.totalorder %s19, 3
      %p399 = pnand %p397, %p398
      %p400 = pneg %p399
      // Predicated region
      $region57: #{tokenformer_layer_forward.3} parent=5 // pred_check
        _
      $region58: #{tokenformer_layer_forward.3} parent=5 // pred_check_branch
        %402 = sbr.rel (%p399) target = $region60
      $region59: #{tokenformer_layer_forward.3} parent=5 // pred_region
        %s403 = ssub.s32 %s19, 1
        %p404 = scmp.lt.s32.totalorder %s29, 1
        %s405 = scalar_select %p404, %s29, 1
        %p406 = scmp.lt.s32.totalorder %s30, 0
        %s407 = scalar_select %p406, %s30, 0
        %s408 = sadd.s32 %s407, %s405
        %s409 = smul.addr %s408, 4
        %s410 = scalar_lea.vmem %s0, %s409
        %p411 = pneg %p66
        %p412 = pneg %p63
        %p413 = scmp.lt.s32.totalorder %s31, %s30
        %s414 = scalar_select %p413, %s31, %s30
        %p415 = scmp.lt.s32.totalorder %s29, 1
        %s416 = scalar_select %p415, %s29, 1
        %p417 = scmp.lt.s32.totalorder %s414, 0
        %s418 = scalar_select %p417, %s414, 0
        %s419 = sadd.s32 %s418, %s416
        %s420 = smul.addr %s419, 4
        %s421 = scalar_lea.vmem %s1, %s420
        %p422 = pneg %p98
        %p423 = pneg %p95
        %p424 = scmp.lt.s32.totalorder %s31, %s30
        %s425 = scalar_select %p424, %s31, %s30
        %p426 = scmp.lt.s32.totalorder %s29, 1
        %s427 = scalar_select %p426, %s29, 1
        %p428 = scmp.lt.s32.totalorder %s425, 0
        %s429 = scalar_select %p428, %s425, 0
        %s430 = sadd.s32 %s429, %s427
        %s431 = smul.addr %s430, 4
        %s432 = scalar_lea.vmem %s2, %s431
        %p433 = pneg %p130
        %p434 = pneg %p127
        %p435 = scmp.lt.s32.totalorder %s29, 1
        %s436 = scalar_select %p435, %s29, 1
        %p437 = scmp.lt.s32.totalorder %s30, 0
        %s438 = scalar_select %p437, %s30, 0
        %s439 = sadd.s32 %s438, %s436
        %s440 = smul.addr %s439, 8
        %s441 = scalar_lea.vmem %s3, %s440
        %p442 = pneg %p158
        %p443 = pneg %p155
        %p444 = pneg %p179
        %p445 = pneg %p176
        %p446 = pneg %p200
        %p447 = pneg %p197
        %p448 = pneg %p221
        %p449 = pneg %p218
        %p450 = pneg %p242
        %p451 = pneg %p239
        %p452 = pneg %p263
        %p453 = pneg %p260
        %p454 = pneg %p284
        %p455 = pneg %p281
        %p456 = pneg %p312
        %p457 = pneg %p309
        %s458 = sand.u32 %s299, 1
        %s459 = scalar_lea.sflag [#allocation6], %s458
        %s460 = sand.u32 %s299, 1
        %s461 = smul.addr %s460, 8
        %s462 = scalar_lea.vmem [#allocation5], %s461
        %p463 = scmp.lt.s32.totalorder %s29, 1
        %s464 = scalar_select %p463, %s29, 1
        %p465 = scmp.lt.s32.totalorder %s30, 0
        %s466 = scalar_select %p465, %s30, 0
        %s467 = sadd.s32 %s466, %s464
        %s468 = smul.addr %s467, 4
        %s469 = scalar_lea.vmem %s0, %s468
        %p470 = scmp.lt.s32.totalorder %s31, %s30
        %s471 = scalar_select %p470, %s31, %s30
        %p472 = scmp.lt.s32.totalorder %s29, 1
        %s473 = scalar_select %p472, %s29, 1
        %p474 = scmp.lt.s32.totalorder %s471, 0
        %s475 = scalar_select %p474, %s471, 0
        %s476 = sadd.s32 %s475, %s473
        %s477 = smul.addr %s476, 4
        %s478 = scalar_lea.vmem %s1, %s477
        %p479 = scmp.lt.s32.totalorder %s31, %s30
        %s480 = scalar_select %p479, %s31, %s30
        %p481 = scmp.lt.s32.totalorder %s31, %s30
        %s482 = scalar_select %p481, %s31, %s30
        %p483 = scmp.lt.s32.totalorder %s29, 1
        %s484 = scalar_select %p483, %s29, 1
        %p485 = scmp.lt.s32.totalorder %s482, 0
        %s486 = scalar_select %p485, %s482, 0
        %s487 = sadd.s32 %s486, %s484
        %s488 = smul.addr %s487, 4
        %s489 = scalar_lea.vmem %s2, %s488
        %p490 = scmp.lt.s32.totalorder %s31, %s30
        %s491 = scalar_select %p490, %s31, %s30
        %p492 = scmp.lt.s32.totalorder %s29, 1
        %s493 = scalar_select %p492, %s29, 1
        %p494 = scmp.lt.s32.totalorder %s30, 0
        %s495 = scalar_select %p494, %s30, 0
        %s496 = sadd.s32 %s495, %s493
        %s497 = smul.addr %s496, 8
        %s498 = scalar_lea.vmem %s3, %s497
        %p500 = scmp.eq.s32.totalorder %s31, 0
        // Predicated region
        $region61: #{tokenformer_layer_forward.3} parent=59 // pred_check
          %p501 = pneg %p500
        $region62: #{tokenformer_layer_forward.3} parent=59 // pred_check_branch
          %503 = sbr.rel (%p501) target = $region64
        $region63: #{tokenformer_layer_forward.3} parent=59 // pred_region
          %vm504 = vcmask 7168
          %505 = vst.msk [vmem:[#allocation2] sm:$0xff] %vm504, -1e+30
          %506 = vst.msk [vmem:[#allocation2 + $0x8] sm:$0xff] %vm504, -1e+30
          %507 = vst.msk [vmem:[#allocation2 + $0x10] sm:$0xff] %vm504, -1e+30
          %508 = vst.msk [vmem:[#allocation2 + $0x18] sm:$0xff] %vm504, -1e+30
          %509 = vst.msk [vmem:[#allocation3] sm:$0xff] %vm504, 0.0
          %510 = vst.msk [vmem:[#allocation3 + $0x8] sm:$0xff] %vm504, 0.0
          %511 = vst.msk [vmem:[#allocation3 + $0x10] sm:$0xff] %vm504, 0.0
          %512 = vst.msk [vmem:[#allocation3 + $0x18] sm:$0xff] %vm504, 0.0
          %vm513 = vcmask 261120
          %514 = vst.msk [vmem:[#allocation4] sm:$0xff] %vm513, 0.0
        $region64: #{tokenformer_layer_forward.3} parent=59 // pred_fallthru
          _
        %p515 = scmp.lt.s32.totalorder %s31, %s30
        // Predicated region
        $region65: #{tokenformer_layer_forward.3} parent=59 // pred_check
          %p516 = pneg %p515
        $region66: #{tokenformer_layer_forward.3} parent=59 // pred_check_branch
          %518 = sbr.rel (%p516) target = $region68
        $region67: #{tokenformer_layer_forward.3} parent=59 // pred_region
          %v519 = vld [vmem:[%s469] sm:$0xf]
          %v520 = vld [vmem:[%s478] sm:$0xf]
          %v521 = vld [vmem:[%s489] sm:$0xf]
          %vm522 = vcmask 64512
          %v524 = vsel %vm522, %v519, 0
          %v527 = vsel %vm522, %v520, 0
          %529 = vmatprep.subr.bf16.mxu0 0
          %530 = vmatpush1.bf16.xpose.msra.mxu0 0
          %531 = vmatprep.subr.bf16.mxu0 0
          %532 = vmatpush1.bf16.xpose.msra.mxu0 0
          %533 = vmatprep.subr.bf16.mxu0 0
          %534 = vmatpush1.bf16.xpose.msra.mxu0 0
          %535 = vmatprep.subr.bf16.mxu0 0
          %536 = vmatpush1.bf16.xpose.msra.mxu0 0
          %537 = vmatprep.subr.bf16.mxu0 0
          %538 = vmatpush1.bf16.xpose.msra.mxu0 0
          %539 = vmatprep.subr.bf16.mxu0 0
          %540 = vmatpush1.bf16.xpose.msra.mxu0 0
          %541 = vmatprep.subr.bf16.mxu0 0
          %542 = vmatpush1.bf16.xpose.msra.mxu0 0
          %543 = vmatprep.subr.bf16.mxu0 0
          %544 = vmatpush1.bf16.xpose.msra.mxu0 %v527
          %545 = vmatprep.subr.bf16.mxu0 0
          %546 = vmatpush2.bf16.xpose.msra.mxu0 0
          %547 = vmatprep.subr.bf16.mxu0 0
          %548 = vmatpush2.bf16.xpose.msra.mxu0 0
          %549 = vmatprep.subr.bf16.mxu0 0
          %550 = vmatpush2.bf16.xpose.msra.mxu0 0
          %551 = vmatprep.subr.bf16.mxu0 0
          %552 = vmatpush2.bf16.xpose.msra.mxu0 0
          %553 = vmatprep.subr.bf16.mxu0 0
          %554 = vmatpush2.bf16.xpose.msra.mxu0 0
          %555 = vmatprep.subr.bf16.mxu0 0
          %556 = vmatpush2.bf16.xpose.msra.mxu0 0
          %557 = vmatprep.subr.bf16.mxu0 0
          %558 = vmatpush2.bf16.xpose.msra.mxu0 0
          %559 = vmatprep.subr.bf16.mxu0 0
          %560 = vmatpush2.bf16.xpose.msra.mxu0 0
          %561 = vmatprep.mubr.bf16.mxu0 0
          %562 = vmatmul.mubr.bf16.gmra.mxu0 %v524
          %v563 = vpop.f32.mrf.mxu0
          %v564 = vadd.f32 0.0, %v563
          %v565 = vpop.f32.mrf.mxu0
          %v566 = vpop.f32.mrf.mxu0
          %v567 = vpop.f32.mrf.mxu0
          %568 = vdwg.mxu0
          %v569 = vmul.f32 %v564, 0.35355338
          %v570 = vld [vmem:[#allocation2] sm:$0xff]
          %v571 = vsel %vm522, %v569, -inf
          %572 = vmax.xlane.f32.xlu0 %v571
          %v573 = vpop.xlane.xlu0 %572
          %v574 = vmax.f32 %v570, %v573
          %v575 = vsub.f32 %v570, %v574
          %v576 = vmul.f32 %v575, 1.442695
          %v577 = vpow.pop %v576
          %579 = vset.pattern.permute.xlu0 0
          %580 = vperm.xlu0 %579, %v574
          %v581 = vpop.permute.xlu0 %580
          %v583 = vsub.f32 %v569, %v581
          %v584 = vmul.f32 %v583, 1.442695
          %v585 = vpow.pop %v584
          %v586 = vld [vmem:[#allocation3] sm:$0xff]
          %v587 = vmul.f32 %v577, %v586
          %v588 = vsel %vm522, %v585, 0.0
          %589 = vadd.xlane.f32.xlu0 %v588
          %v590 = vpop.xlane.xlu0 %589
          %v591 = vadd.f32 %v587, %v590
          %vm592 = vcmask 7168
          %593 = vst.msk [vmem:[#allocation3] sm:$0xff] %vm592, %v591
          %v594 = vld [vmem:[#allocation4] sm:$0xff]
          %596 = vset.pattern.permute.xlu0 0
          %597 = vperm.xlu0 %596, %v577
          %v598 = vpop.permute.xlu0 %597
          %v600 = vmul.f32 %v598, %v594
          %v601 = vpack.c.bf16 %v585, %v585
          %v603 = vsel %vm522, %v601, 0
          %vm605 = vcmask 1043456
          %v607 = vsel %vm605, %v521, 0
          %609 = vmatprep.subr.bf16.mxu0 0
          %610 = vmatpush1.bf16.msra.mxu0 0
          %611 = vmatprep.subr.bf16.mxu0 0
          %612 = vmatpush1.bf16.msra.mxu0 0
          %613 = vmatprep.subr.bf16.mxu0 0
          %614 = vmatpush1.bf16.msra.mxu0 0
          %615 = vmatprep.subr.bf16.mxu0 0
          %616 = vmatpush1.bf16.msra.mxu0 0
          %617 = vmatprep.subr.bf16.mxu0 0
          %618 = vmatpush1.bf16.msra.mxu0 0
          %619 = vmatprep.subr.bf16.mxu0 0
          %620 = vmatpush1.bf16.msra.mxu0 0
          %621 = vmatprep.subr.bf16.mxu0 0
          %622 = vmatpush1.bf16.msra.mxu0 0
          %623 = vmatprep.subr.bf16.mxu0 0
          %624 = vmatpush1.bf16.msra.mxu0 %v607
          %625 = vmatprep.subr.bf16.mxu0 0
          %626 = vmatpush2.bf16.msra.mxu0 0
          %627 = vmatprep.subr.bf16.mxu0 0
          %628 = vmatpush2.bf16.msra.mxu0 0
          %629 = vmatprep.subr.bf16.mxu0 0
          %630 = vmatpush2.bf16.msra.mxu0 0
          %631 = vmatprep.subr.bf16.mxu0 0
          %632 = vmatpush2.bf16.msra.mxu0 0
          %633 = vmatprep.subr.bf16.mxu0 0
          %634 = vmatpush2.bf16.msra.mxu0 0
          %635 = vmatprep.subr.bf16.mxu0 0
          %636 = vmatpush2.bf16.msra.mxu0 0
          %637 = vmatprep.subr.bf16.mxu0 0
          %638 = vmatpush2.bf16.msra.mxu0 0
          %639 = vmatprep.subr.bf16.mxu0 0
          %640 = vmatpush2.bf16.msra.mxu0 0
          %641 = vmatprep.mubr.bf16.mxu0 0
          %642 = vmatmul.mubr.bf16.gmra.mxu0 %v603
          %v643 = vpop.f32.mrf.mxu0
          %v644 = vadd.f32 0.0, %v643
          %v645 = vpop.f32.mrf.mxu0
          %v646 = vpop.f32.mrf.mxu0
          %v647 = vpop.f32.mrf.mxu0
          %648 = vdwg.mxu0
          %v649 = vadd.f32 %v600, %v644
          %650 = vst.msk [vmem:[#allocation4] sm:$0xff] %vm522, %v649
          %651 = vst.msk [vmem:[#allocation2] sm:$0xff] %vm592, %v574
          %v653 = vunpack.c.l.b16 %v519
          %v654 = vpack.c.b16 %v653, %v653
          %655 = vrot.lane.b32.xlu0 %v654, 120
          %v656 = vpop.permute.xlu0 %655
          %v658 = vunpack.c.l.b16 %v520
          %v659 = vpack.c.b16 %v658, %v658
          %660 = vrot.lane.b32.xlu0 %v659, 120
          %v661 = vpop.permute.xlu0 %660
          %v663 = vsel %vm522, %v656, 0
          %v666 = vsel %vm522, %v661, 0
          %668 = vmatprep.subr.bf16.mxu0 0
          %669 = vmatpush1.bf16.xpose.msra.mxu0 0
          %670 = vmatprep.subr.bf16.mxu0 0
          %671 = vmatpush1.bf16.xpose.msra.mxu0 0
          %672 = vmatprep.subr.bf16.mxu0 0
          %673 = vmatpush1.bf16.xpose.msra.mxu0 0
          %674 = vmatprep.subr.bf16.mxu0 0
          %675 = vmatpush1.bf16.xpose.msra.mxu0 0
          %676 = vmatprep.subr.bf16.mxu0 0
          %677 = vmatpush1.bf16.xpose.msra.mxu0 0
          %678 = vmatprep.subr.bf16.mxu0 0
          %679 = vmatpush1.bf16.xpose.msra.mxu0 0
          %680 = vmatprep.subr.bf16.mxu0 0
          %681 = vmatpush1.bf16.xpose.msra.mxu0 0
          %682 = vmatprep.subr.bf16.mxu0 0
          %683 = vmatpush1.bf16.xpose.msra.mxu0 %v666
          %684 = vmatprep.subr.bf16.mxu0 0
          %685 = vmatpush2.bf16.xpose.msra.mxu0 0
          %686 = vmatprep.subr.bf16.mxu0 0
          %687 = vmatpush2.bf16.xpose.msra.mxu0 0
          %688 = vmatprep.subr.bf16.mxu0 0
          %689 = vmatpush2.bf16.xpose.msra.mxu0 0
          %690 = vmatprep.subr.bf16.mxu0 0
          %691 = vmatpush2.bf16.xpose.msra.mxu0 0
          %692 = vmatprep.subr.bf16.mxu0 0
          %693 = vmatpush2.bf16.xpose.msra.mxu0 0
          %694 = vmatprep.subr.bf16.mxu0 0
          %695 = vmatpush2.bf16.xpose.msra.mxu0 0
          %696 = vmatprep.subr.bf16.mxu0 0
          %697 = vmatpush2.bf16.xpose.msra.mxu0 0
          %698 = vmatprep.subr.bf16.mxu0 0
          %699 = vmatpush2.bf16.xpose.msra.mxu0 0
          %700 = vmatprep.mubr.bf16.mxu0 0
          %701 = vmatmul.mubr.bf16.gmra.mxu0 %v663
          %v702 = vpop.f32.mrf.mxu0
          %v703 = vadd.f32 0.0, %v702
          %v704 = vpop.f32.mrf.mxu0
          %v705 = vpop.f32.mrf.mxu0
          %v706 = vpop.f32.mrf.mxu0
          %707 = vdwg.mxu0
          %v708 = vmul.f32 %v703, 0.35355338
          %s709 = scalar_lea.vmem [#allocation2], 8
          %v710 = vld [vmem:[%s709] sm:$0xff]
          %v711 = vsel %vm522, %v708, -inf
          %712 = vmax.xlane.f32.xlu0 %v711
          %v713 = vpop.xlane.xlu0 %712
          %v714 = vmax.f32 %v710, %v713
          %v715 = vsub.f32 %v710, %v714
          %v716 = vmul.f32 %v715, 1.442695
          %v717 = vpow.pop %v716
          %719 = vset.pattern.permute.xlu0 0
          %720 = vperm.xlu0 %719, %v714
          %v721 = vpop.permute.xlu0 %720
          %v723 = vsub.f32 %v708, %v721
          %v724 = vmul.f32 %v723, 1.442695
          %v725 = vpow.pop %v724
          %s726 = scalar_lea.vmem [#allocation3], 8
          %v727 = vld [vmem:[%s726] sm:$0xff]
          %v728 = vmul.f32 %v717, %v727
          %v729 = vsel %vm522, %v725, 0.0
          %730 = vadd.xlane.f32.xlu0 %v729
          %v731 = vpop.xlane.xlu0 %730
          %v732 = vadd.f32 %v728, %v731
          %733 = vst.msk [vmem:[%s726] sm:$0xff] %vm592, %v732
          %v734 = vld [vmem:[#allocation4] sm:$0xff]
          %736 = vset.pattern.permute.xlu0 0
          %737 = vperm.xlu0 %736, %v717
          %v738 = vpop.permute.xlu0 %737
          %v740 = vmul.f32 %v738, %v734
          %v741 = vpack.c.bf16 %v725, %v725
          %v743 = vunpack.c.l.b16 %v521
          %v744 = vpack.c.b16 %v743, %v743
          %745 = vrot.lane.b32.xlu0 %v744, 120
          %v746 = vpop.permute.xlu0 %745
          %v748 = vsel %vm522, %v741, 0
          %v751 = vsel %vm605, %v746, 0
          %753 = vmatprep.subr.bf16.mxu0 0
          %754 = vmatpush1.bf16.msra.mxu0 0
          %755 = vmatprep.subr.bf16.mxu0 0
          %756 = vmatpush1.bf16.msra.mxu0 0
          %757 = vmatprep.subr.bf16.mxu0 0
          %758 = vmatpush1.bf16.msra.mxu0 0
          %759 = vmatprep.subr.bf16.mxu0 0
          %760 = vmatpush1.bf16.msra.mxu0 0
          %761 = vmatprep.subr.bf16.mxu0 0
          %762 = vmatpush1.bf16.msra.mxu0 0
          %763 = vmatprep.subr.bf16.mxu0 0
          %764 = vmatpush1.bf16.msra.mxu0 0
          %765 = vmatprep.subr.bf16.mxu0 0
          %766 = vmatpush1.bf16.msra.mxu0 0
          %767 = vmatprep.subr.bf16.mxu0 0
          %768 = vmatpush1.bf16.msra.mxu0 %v751
          %769 = vmatprep.subr.bf16.mxu0 0
          %770 = vmatpush2.bf16.msra.mxu0 0
          %771 = vmatprep.subr.bf16.mxu0 0
          %772 = vmatpush2.bf16.msra.mxu0 0
          %773 = vmatprep.subr.bf16.mxu0 0
          %774 = vmatpush2.bf16.msra.mxu0 0
          %775 = vmatprep.subr.bf16.mxu0 0
          %776 = vmatpush2.bf16.msra.mxu0 0
          %777 = vmatprep.subr.bf16.mxu0 0
          %778 = vmatpush2.bf16.msra.mxu0 0
          %779 = vmatprep.subr.bf16.mxu0 0
          %780 = vmatpush2.bf16.msra.mxu0 0
          %781 = vmatprep.subr.bf16.mxu0 0
          %782 = vmatpush2.bf16.msra.mxu0 0
          %783 = vmatprep.subr.bf16.mxu0 0
          %784 = vmatpush2.bf16.msra.mxu0 0
          %785 = vmatprep.mubr.bf16.mxu0 0
          %786 = vmatmul.mubr.bf16.gmra.mxu0 %v748
          %v787 = vpop.f32.mrf.mxu0
          %v788 = vadd.f32 0.0, %v787
          %v789 = vpop.f32.mrf.mxu0
          %v790 = vpop.f32.mrf.mxu0
          %v791 = vpop.f32.mrf.mxu0
          %792 = vdwg.mxu0
          %794 = vrot.lane.b32.xlu0 %v788, 8
          %v795 = vpop.permute.xlu0 %794
          %v797 = vadd.f32 %v740, %v795
          %vm798 = vcmask 130112
          %799 = vst.msk [vmem:[#allocation4] sm:$0xff] %vm798, %v797
          %800 = vst.msk [vmem:[%s709] sm:$0xff] %vm592, %v714
          %801 = vrot.lane.b32.xlu0 %v654, 112
          %v802 = vpop.permute.xlu0 %801
          %803 = vrot.lane.b32.xlu0 %v659, 112
          %v804 = vpop.permute.xlu0 %803
          %v806 = vsel %vm522, %v802, 0
          %v809 = vsel %vm522, %v804, 0
          %811 = vmatprep.subr.bf16.mxu0 0
          %812 = vmatpush1.bf16.xpose.msra.mxu0 0
          %813 = vmatprep.subr.bf16.mxu0 0
          %814 = vmatpush1.bf16.xpose.msra.mxu0 0
          %815 = vmatprep.subr.bf16.mxu0 0
          %816 = vmatpush1.bf16.xpose.msra.mxu0 0
          %817 = vmatprep.subr.bf16.mxu0 0
          %818 = vmatpush1.bf16.xpose.msra.mxu0 0
          %819 = vmatprep.subr.bf16.mxu0 0
          %820 = vmatpush1.bf16.xpose.msra.mxu0 0
          %821 = vmatprep.subr.bf16.mxu0 0
          %822 = vmatpush1.bf16.xpose.msra.mxu0 0
          %823 = vmatprep.subr.bf16.mxu0 0
          %824 = vmatpush1.bf16.xpose.msra.mxu0 0
          %825 = vmatprep.subr.bf16.mxu0 0
          %826 = vmatpush1.bf16.xpose.msra.mxu0 %v809
          %827 = vmatprep.subr.bf16.mxu0 0
          %828 = vmatpush2.bf16.xpose.msra.mxu0 0
          %829 = vmatprep.subr.bf16.mxu0 0
          %830 = vmatpush2.bf16.xpose.msra.mxu0 0
          %831 = vmatprep.subr.bf16.mxu0 0
          %832 = vmatpush2.bf16.xpose.msra.mxu0 0
          %833 = vmatprep.subr.bf16.mxu0 0
          %834 = vmatpush2.bf16.xpose.msra.mxu0 0
          %835 = vmatprep.subr.bf16.mxu0 0
          %836 = vmatpush2.bf16.xpose.msra.mxu0 0
          %837 = vmatprep.subr.bf16.mxu0 0
          %838 = vmatpush2.bf16.xpose.msra.mxu0 0
          %839 = vmatprep.subr.bf16.mxu0 0
          %840 = vmatpush2.bf16.xpose.msra.mxu0 0
          %841 = vmatprep.subr.bf16.mxu0 0
          %842 = vmatpush2.bf16.xpose.msra.mxu0 0
          %843 = vmatprep.mubr.bf16.mxu0 0
          %844 = vmatmul.mubr.bf16.gmra.mxu0 %v806
          %v845 = vpop.f32.mrf.mxu0
          %v846 = vadd.f32 0.0, %v845
          %v847 = vpop.f32.mrf.mxu0
          %v848 = vpop.f32.mrf.mxu0
          %v849 = vpop.f32.mrf.mxu0
          %850 = vdwg.mxu0
          %v851 = vmul.f32 %v846, 0.35355338
          %s852 = scalar_lea.vmem [#allocation2], 16
          %v853 = vld [vmem:[%s852] sm:$0xff]
          %v854 = vsel %vm522, %v851, -inf
          %855 = vmax.xlane.f32.xlu0 %v854
          %v856 = vpop.xlane.xlu0 %855
          %v857 = vmax.f32 %v853, %v856
          %v858 = vsub.f32 %v853, %v857
          %v859 = vmul.f32 %v858, 1.442695
          %v860 = vpow.pop %v859
          %862 = vset.pattern.permute.xlu0 0
          %863 = vperm.xlu0 %862, %v857
          %v864 = vpop.permute.xlu0 %863
          %v866 = vsub.f32 %v851, %v864
          %v867 = vmul.f32 %v866, 1.442695
          %v868 = vpow.pop %v867
          %s869 = scalar_lea.vmem [#allocation3], 16
          %v870 = vld [vmem:[%s869] sm:$0xff]
          %v871 = vmul.f32 %v860, %v870
          %v872 = vsel %vm522, %v868, 0.0
          %873 = vadd.xlane.f32.xlu0 %v872
          %v874 = vpop.xlane.xlu0 %873
          %v875 = vadd.f32 %v871, %v874
          %876 = vst.msk [vmem:[%s869] sm:$0xff] %vm592, %v875
          %v877 = vld [vmem:[#allocation4] sm:$0xff]
          %879 = vset.pattern.permute.xlu0 0
          %880 = vperm.xlu0 %879, %v860
          %v881 = vpop.permute.xlu0 %880
          %v883 = vmul.f32 %v881, %v877
          %v884 = vpack.c.bf16 %v868, %v868
          %885 = vrot.lane.b32.xlu0 %v744, 112
          %v886 = vpop.permute.xlu0 %885
          %v888 = vsel %vm522, %v884, 0
          %v891 = vsel %vm605, %v886, 0
          %893 = vmatprep.subr.bf16.mxu0 0
          %894 = vmatpush1.bf16.msra.mxu0 0
          %895 = vmatprep.subr.bf16.mxu0 0
          %896 = vmatpush1.bf16.msra.mxu0 0
          %897 = vmatprep.subr.bf16.mxu0 0
          %898 = vmatpush1.bf16.msra.mxu0 0
          %899 = vmatprep.subr.bf16.mxu0 0
          %900 = vmatpush1.bf16.msra.mxu0 0
          %901 = vmatprep.subr.bf16.mxu0 0
          %902 = vmatpush1.bf16.msra.mxu0 0
          %903 = vmatprep.subr.bf16.mxu0 0
          %904 = vmatpush1.bf16.msra.mxu0 0
          %905 = vmatprep.subr.bf16.mxu0 0
          %906 = vmatpush1.bf16.msra.mxu0 0
          %907 = vmatprep.subr.bf16.mxu0 0
          %908 = vmatpush1.bf16.msra.mxu0 %v891
          %909 = vmatprep.subr.bf16.mxu0 0
          %910 = vmatpush2.bf16.msra.mxu0 0
          %911 = vmatprep.subr.bf16.mxu0 0
          %912 = vmatpush2.bf16.msra.mxu0 0
          %913 = vmatprep.subr.bf16.mxu0 0
          %914 = vmatpush2.bf16.msra.mxu0 0
          %915 = vmatprep.subr.bf16.mxu0 0
          %916 = vmatpush2.bf16.msra.mxu0 0
          %917 = vmatprep.subr.bf16.mxu0 0
          %918 = vmatpush2.bf16.msra.mxu0 0
          %919 = vmatprep.subr.bf16.mxu0 0
          %920 = vmatpush2.bf16.msra.mxu0 0
          %921 = vmatprep.subr.bf16.mxu0 0
          %922 = vmatpush2.bf16.msra.mxu0 0
          %923 = vmatprep.subr.bf16.mxu0 0
          %924 = vmatpush2.bf16.msra.mxu0 0
          %925 = vmatprep.mubr.bf16.mxu0 0
          %926 = vmatmul.mubr.bf16.gmra.mxu0 %v888
          %v927 = vpop.f32.mrf.mxu0
          %v928 = vadd.f32 0.0, %v927
          %v929 = vpop.f32.mrf.mxu0
          %v930 = vpop.f32.mrf.mxu0
          %v931 = vpop.f32.mrf.mxu0
          %932 = vdwg.mxu0
          %934 = vrot.lane.b32.xlu0 %v928, 16
          %v935 = vpop.permute.xlu0 %934
          %v937 = vadd.f32 %v883, %v935
          %vm938 = vcmask 195712
          %939 = vst.msk [vmem:[#allocation4] sm:$0xff] %vm938, %v937
          %940 = vst.msk [vmem:[%s852] sm:$0xff] %vm592, %v857
          %941 = vrot.lane.b32.xlu0 %v654, 104
          %v942 = vpop.permute.xlu0 %941
          %943 = vrot.lane.b32.xlu0 %v659, 104
          %v944 = vpop.permute.xlu0 %943
          %v946 = vsel %vm522, %v942, 0
          %v949 = vsel %vm522, %v944, 0
          %951 = vmatprep.subr.bf16.mxu0 0
          %952 = vmatpush1.bf16.xpose.msra.mxu0 0
          %953 = vmatprep.subr.bf16.mxu0 0
          %954 = vmatpush1.bf16.xpose.msra.mxu0 0
          %955 = vmatprep.subr.bf16.mxu0 0
          %956 = vmatpush1.bf16.xpose.msra.mxu0 0
          %957 = vmatprep.subr.bf16.mxu0 0
          %958 = vmatpush1.bf16.xpose.msra.mxu0 0
          %959 = vmatprep.subr.bf16.mxu0 0
          %960 = vmatpush1.bf16.xpose.msra.mxu0 0
          %961 = vmatprep.subr.bf16.mxu0 0
          %962 = vmatpush1.bf16.xpose.msra.mxu0 0
          %963 = vmatprep.subr.bf16.mxu0 0
          %964 = vmatpush1.bf16.xpose.msra.mxu0 0
          %965 = vmatprep.subr.bf16.mxu0 0
          %966 = vmatpush1.bf16.xpose.msra.mxu0 %v949
          %967 = vmatprep.subr.bf16.mxu0 0
          %968 = vmatpush2.bf16.xpose.msra.mxu0 0
          %969 = vmatprep.subr.bf16.mxu0 0
          %970 = vmatpush2.bf16.xpose.msra.mxu0 0
          %971 = vmatprep.subr.bf16.mxu0 0
          %972 = vmatpush2.bf16.xpose.msra.mxu0 0
          %973 = vmatprep.subr.bf16.mxu0 0
          %974 = vmatpush2.bf16.xpose.msra.mxu0 0
          %975 = vmatprep.subr.bf16.mxu0 0
          %976 = vmatpush2.bf16.xpose.msra.mxu0 0
          %977 = vmatprep.subr.bf16.mxu0 0
          %978 = vmatpush2.bf16.xpose.msra.mxu0 0
          %979 = vmatprep.subr.bf16.mxu0 0
          %980 = vmatpush2.bf16.xpose.msra.mxu0 0
          %981 = vmatprep.subr.bf16.mxu0 0
          %982 = vmatpush2.bf16.xpose.msra.mxu0 0
          %983 = vmatprep.mubr.bf16.mxu0 0
          %984 = vmatmul.mubr.bf16.gmra.mxu0 %v946
          %v985 = vpop.f32.mrf.mxu0
          %v986 = vadd.f32 0.0, %v985
          %v987 = vpop.f32.mrf.mxu0
          %v988 = vpop.f32.mrf.mxu0
          %v989 = vpop.f32.mrf.mxu0
          %990 = vdwg.mxu0
          %v991 = vmul.f32 %v986, 0.35355338
          %s992 = scalar_lea.vmem [#allocation2], 24
          %v993 = vld [vmem:[%s992] sm:$0xff]
          %v994 = vsel %vm522, %v991, -inf
          %995 = vmax.xlane.f32.xlu0 %v994
          %v996 = vpop.xlane.xlu0 %995
          %v997 = vmax.f32 %v993, %v996
          %v998 = vsub.f32 %v993, %v997
          %v999 = vmul.f32 %v998, 1.442695
          %v1000 = vpow.pop %v999
          %1002 = vset.pattern.permute.xlu0 0
          %1003 = vperm.xlu0 %1002, %v997
          %v1004 = vpop.permute.xlu0 %1003
          %v1006 = vsub.f32 %v991, %v1004
          %v1007 = vmul.f32 %v1006, 1.442695
          %v1008 = vpow.pop %v1007
          %s1009 = scalar_lea.vmem [#allocation3], 24
          %v1010 = vld [vmem:[%s1009] sm:$0xff]
          %v1011 = vmul.f32 %v1000, %v1010
          %v1012 = vsel %vm522, %v1008, 0.0
          %1013 = vadd.xlane.f32.xlu0 %v1012
          %v1014 = vpop.xlane.xlu0 %1013
          %v1015 = vadd.f32 %v1011, %v1014
          %1016 = vst.msk [vmem:[%s1009] sm:$0xff] %vm592, %v1015
          %v1017 = vld [vmem:[#allocation4] sm:$0xff]
          %1019 = vset.pattern.permute.xlu0 0
          %1020 = vperm.xlu0 %1019, %v1000
          %v1021 = vpop.permute.xlu0 %1020
          %v1023 = vmul.f32 %v1021, %v1017
          %v1024 = vpack.c.bf16 %v1008, %v1008
          %1025 = vrot.lane.b32.xlu0 %v744, 104
          %v1026 = vpop.permute.xlu0 %1025
          %v1028 = vsel %vm522, %v1024, 0
          %v1031 = vsel %vm605, %v1026, 0
          %1033 = vmatprep.subr.bf16.mxu0 0
          %1034 = vmatpush1.bf16.msra.mxu0 0
          %1035 = vmatprep.subr.bf16.mxu0 0
          %1036 = vmatpush1.bf16.msra.mxu0 0
          %1037 = vmatprep.subr.bf16.mxu0 0
          %1038 = vmatpush1.bf16.msra.mxu0 0
          %1039 = vmatprep.subr.bf16.mxu0 0
          %1040 = vmatpush1.bf16.msra.mxu0 0
          %1041 = vmatprep.subr.bf16.mxu0 0
          %1042 = vmatpush1.bf16.msra.mxu0 0
          %1043 = vmatprep.subr.bf16.mxu0 0
          %1044 = vmatpush1.bf16.msra.mxu0 0
          %1045 = vmatprep.subr.bf16.mxu0 0
          %1046 = vmatpush1.bf16.msra.mxu0 0
          %1047 = vmatprep.subr.bf16.mxu0 0
          %1048 = vmatpush1.bf16.msra.mxu0 %v1031
          %1049 = vmatprep.subr.bf16.mxu0 0
          %1050 = vmatpush2.bf16.msra.mxu0 0
          %1051 = vmatprep.subr.bf16.mxu0 0
          %1052 = vmatpush2.bf16.msra.mxu0 0
          %1053 = vmatprep.subr.bf16.mxu0 0
          %1054 = vmatpush2.bf16.msra.mxu0 0
          %1055 = vmatprep.subr.bf16.mxu0 0
          %1056 = vmatpush2.bf16.msra.mxu0 0
          %1057 = vmatprep.subr.bf16.mxu0 0
          %1058 = vmatpush2.bf16.msra.mxu0 0
          %1059 = vmatprep.subr.bf16.mxu0 0
          %1060 = vmatpush2.bf16.msra.mxu0 0
          %1061 = vmatprep.subr.bf16.mxu0 0
          %1062 = vmatpush2.bf16.msra.mxu0 0
          %1063 = vmatprep.subr.bf16.mxu0 0
          %1064 = vmatpush2.bf16.msra.mxu0 0
          %1065 = vmatprep.mubr.bf16.mxu0 0
          %1066 = vmatmul.mubr.bf16.gmra.mxu0 %v1028
          %v1067 = vpop.f32.mrf.mxu0
          %v1068 = vadd.f32 0.0, %v1067
          %v1069 = vpop.f32.mrf.mxu0
          %v1070 = vpop.f32.mrf.mxu0
          %v1071 = vpop.f32.mrf.mxu0
          %1072 = vdwg.mxu0
          %1074 = vrot.lane.b32.xlu0 %v1068, 24
          %v1075 = vpop.permute.xlu0 %1074
          %v1077 = vadd.f32 %v1023, %v1075
          %vm1078 = vcmask 261312
          %1079 = vst.msk [vmem:[#allocation4] sm:$0xff] %vm1078, %v1077
          %1080 = vst.msk [vmem:[%s992] sm:$0xff] %vm592, %v997
        $region68: #{tokenformer_layer_forward.3} parent=59 // pred_fallthru
          _
        %p1081 = scmp.eq.s32.totalorder %s31, %s30
        // Predicated region
        $region69: #{tokenformer_layer_forward.3} parent=59 // pred_check
          %p1082 = pneg %p1081
        $region70: #{tokenformer_layer_forward.3} parent=59 // pred_check_branch
          %1084 = sbr.rel (%p1082) target = $region72
        $region71: #{tokenformer_layer_forward.3} parent=59 // pred_region
          %v1085 = vld [vmem:[%s469] sm:$0xf]
          %v1086 = vld [vmem:[%s478] sm:$0xf]
          %v1087 = vld [vmem:[%s489] sm:$0xf]
          %s1088 = smul.u32 %s30, 8
          %v1089 = vlaneseq
          %v1090 = vshrl.u32 %v1089, 7
          %v1091 = vstv %s1088
          %v1092 = vadd.s32 %v1091, %v1090
          %s1093 = smul.u32 %s31, 8
          %v1094 = vlaneseq
          %v1095 = vand.u32 %v1094, 127
          %v1096 = vstv %s1093
          %v1097 = vadd.s32 %v1096, %v1095
          %vm1098 = vcmp.gt.s32.totalorder %v1097, %v1092
          %v1099 = vsel %vm1098, -1e+09, 0.0
          %vm1100 = vcmask 64512
          %v1102 = vsel %vm1100, %v1085, 0
          %v1105 = vsel %vm1100, %v1086, 0
          %1107 = vmatprep.subr.bf16.mxu0 0
          %1108 = vmatpush1.bf16.xpose.msra.mxu0 0
          %1109 = vmatprep.subr.bf16.mxu0 0
          %1110 = vmatpush1.bf16.xpose.msra.mxu0 0
          %1111 = vmatprep.subr.bf16.mxu0 0
          %1112 = vmatpush1.bf16.xpose.msra.mxu0 0
          %1113 = vmatprep.subr.bf16.mxu0 0
          %1114 = vmatpush1.bf16.xpose.msra.mxu0 0
          %1115 = vmatprep.subr.bf16.mxu0 0
          %1116 = vmatpush1.bf16.xpose.msra.mxu0 0
          %1117 = vmatprep.subr.bf16.mxu0 0
          %1118 = vmatpush1.bf16.xpose.msra.mxu0 0
          %1119 = vmatprep.subr.bf16.mxu0 0
          %1120 = vmatpush1.bf16.xpose.msra.mxu0 0
          %1121 = vmatprep.subr.bf16.mxu0 0
          %1122 = vmatpush1.bf16.xpose.msra.mxu0 %v1105
          %1123 = vmatprep.subr.bf16.mxu0 0
          %1124 = vmatpush2.bf16.xpose.msra.mxu0 0
          %1125 = vmatprep.subr.bf16.mxu0 0
          %1126 = vmatpush2.bf16.xpose.msra.mxu0 0
          %1127 = vmatprep.subr.bf16.mxu0 0
          %1128 = vmatpush2.bf16.xpose.msra.mxu0 0
          %1129 = vmatprep.subr.bf16.mxu0 0
          %1130 = vmatpush2.bf16.xpose.msra.mxu0 0
          %1131 = vmatprep.subr.bf16.mxu0 0
          %1132 = vmatpush2.bf16.xpose.msra.mxu0 0
          %1133 = vmatprep.subr.bf16.mxu0 0
          %1134 = vmatpush2.bf16.xpose.msra.mxu0 0
          %1135 = vmatprep.subr.bf16.mxu0 0
          %1136 = vmatpush2.bf16.xpose.msra.mxu0 0
          %1137 = vmatprep.subr.bf16.mxu0 0
          %1138 = vmatpush2.bf16.xpose.msra.mxu0 0
          %1139 = vmatprep.mubr.bf16.mxu0 0
          %1140 = vmatmul.mubr.bf16.gmra.mxu0 %v1102
          %v1141 = vpop.f32.mrf.mxu0
          %v1142 = vadd.f32 0.0, %v1141
          %v1143 = vpop.f32.mrf.mxu0
          %v1144 = vpop.f32.mrf.mxu0
          %v1145 = vpop.f32.mrf.mxu0
          %1146 = vdwg.mxu0
          %v1147 = vmul.f32 %v1142, 0.35355338
          %v1148 = vadd.f32 %v1147, %v1099
          %v1149 = vld [vmem:[#allocation2] sm:$0xff]
          %v1150 = vsel %vm1100, %v1148, -inf
          %1151 = vmax.xlane.f32.xlu0 %v1150
          %v1152 = vpop.xlane.xlu0 %1151
          %v1153 = vmax.f32 %v1149, %v1152
          %v1154 = vsub.f32 %v1149, %v1153
          %v1155 = vmul.f32 %v1154, 1.442695
          %v1156 = vpow.pop %v1155
          %1158 = vset.pattern.permute.xlu0 0
          %1159 = vperm.xlu0 %1158, %v1153
          %v1160 = vpop.permute.xlu0 %1159
          %v1162 = vsub.f32 %v1148, %v1160
          %v1163 = vmul.f32 %v1162, 1.442695
          %v1164 = vpow.pop %v1163
          %v1165 = vld [vmem:[#allocation3] sm:$0xff]
          %v1166 = vmul.f32 %v1156, %v1165
          %v1167 = vsel %vm1100, %v1164, 0.0
          %1168 = vadd.xlane.f32.xlu0 %v1167
          %v1169 = vpop.xlane.xlu0 %1168
          %v1170 = vadd.f32 %v1166, %v1169
          %vm1171 = vcmask 7168
          %1172 = vst.msk [vmem:[#allocation3] sm:$0xff] %vm1171, %v1170
          %v1173 = vld [vmem:[#allocation4] sm:$0xff]
          %1175 = vset.pattern.permute.xlu0 0
          %1176 = vperm.xlu0 %1175, %v1156
          %v1177 = vpop.permute.xlu0 %1176
          %v1179 = vmul.f32 %v1177, %v1173
          %v1180 = vpack.c.bf16 %v1164, %v1164
          %v1182 = vsel %vm1100, %v1180, 0
          %vm1184 = vcmask 1043456
          %v1186 = vsel %vm1184, %v1087, 0
          %1188 = vmatprep.subr.bf16.mxu0 0
          %1189 = vmatpush1.bf16.msra.mxu0 0
          %1190 = vmatprep.subr.bf16.mxu0 0
          %1191 = vmatpush1.bf16.msra.mxu0 0
          %1192 = vmatprep.subr.bf16.mxu0 0
          %1193 = vmatpush1.bf16.msra.mxu0 0
          %1194 = vmatprep.subr.bf16.mxu0 0
          %1195 = vmatpush1.bf16.msra.mxu0 0
          %1196 = vmatprep.subr.bf16.mxu0 0
          %1197 = vmatpush1.bf16.msra.mxu0 0
          %1198 = vmatprep.subr.bf16.mxu0 0
          %1199 = vmatpush1.bf16.msra.mxu0 0
          %1200 = vmatprep.subr.bf16.mxu0 0
          %1201 = vmatpush1.bf16.msra.mxu0 0
          %1202 = vmatprep.subr.bf16.mxu0 0
          %1203 = vmatpush1.bf16.msra.mxu0 %v1186
          %1204 = vmatprep.subr.bf16.mxu0 0
          %1205 = vmatpush2.bf16.msra.mxu0 0
          %1206 = vmatprep.subr.bf16.mxu0 0
          %1207 = vmatpush2.bf16.msra.mxu0 0
          %1208 = vmatprep.subr.bf16.mxu0 0
          %1209 = vmatpush2.bf16.msra.mxu0 0
          %1210 = vmatprep.subr.bf16.mxu0 0
          %1211 = vmatpush2.bf16.msra.mxu0 0
          %1212 = vmatprep.subr.bf16.mxu0 0
          %1213 = vmatpush2.bf16.msra.mxu0 0
          %1214 = vmatprep.subr.bf16.mxu0 0
          %1215 = vmatpush2.bf16.msra.mxu0 0
          %1216 = vmatprep.subr.bf16.mxu0 0
          %1217 = vmatpush2.bf16.msra.mxu0 0
          %1218 = vmatprep.subr.bf16.mxu0 0
          %1219 = vmatpush2.bf16.msra.mxu0 0
          %1220 = vmatprep.mubr.bf16.mxu0 0
          %1221 = vmatmul.mubr.bf16.gmra.mxu0 %v1182
          %v1222 = vpop.f32.mrf.mxu0
          %v1223 = vadd.f32 0.0, %v1222
          %v1224 = vpop.f32.mrf.mxu0
          %v1225 = vpop.f32.mrf.mxu0
          %v1226 = vpop.f32.mrf.mxu0
          %1227 = vdwg.mxu0
          %v1228 = vadd.f32 %v1179, %v1223
          %1229 = vst.msk [vmem:[#allocation4] sm:$0xff] %vm1100, %v1228
          %1230 = vst.msk [vmem:[#allocation2] sm:$0xff] %vm1171, %v1153
          %v1232 = vunpack.c.l.b16 %v1085
          %v1233 = vpack.c.b16 %v1232, %v1232
          %1234 = vrot.lane.b32.xlu0 %v1233, 120
          %v1235 = vpop.permute.xlu0 %1234
          %v1237 = vunpack.c.l.b16 %v1086
          %v1238 = vpack.c.b16 %v1237, %v1237
          %1239 = vrot.lane.b32.xlu0 %v1238, 120
          %v1240 = vpop.permute.xlu0 %1239
          %v1242 = vsel %vm1100, %v1235, 0
          %v1245 = vsel %vm1100, %v1240, 0
          %1247 = vmatprep.subr.bf16.mxu0 0
          %1248 = vmatpush1.bf16.xpose.msra.mxu0 0
          %1249 = vmatprep.subr.bf16.mxu0 0
          %1250 = vmatpush1.bf16.xpose.msra.mxu0 0
          %1251 = vmatprep.subr.bf16.mxu0 0
          %1252 = vmatpush1.bf16.xpose.msra.mxu0 0
          %1253 = vmatprep.subr.bf16.mxu0 0
          %1254 = vmatpush1.bf16.xpose.msra.mxu0 0
          %1255 = vmatprep.subr.bf16.mxu0 0
          %1256 = vmatpush1.bf16.xpose.msra.mxu0 0
          %1257 = vmatprep.subr.bf16.mxu0 0
          %1258 = vmatpush1.bf16.xpose.msra.mxu0 0
          %1259 = vmatprep.subr.bf16.mxu0 0
          %1260 = vmatpush1.bf16.xpose.msra.mxu0 0
          %1261 = vmatprep.subr.bf16.mxu0 0
          %1262 = vmatpush1.bf16.xpose.msra.mxu0 %v1245
          %1263 = vmatprep.subr.bf16.mxu0 0
          %1264 = vmatpush2.bf16.xpose.msra.mxu0 0
          %1265 = vmatprep.subr.bf16.mxu0 0
          %1266 = vmatpush2.bf16.xpose.msra.mxu0 0
          %1267 = vmatprep.subr.bf16.mxu0 0
          %1268 = vmatpush2.bf16.xpose.msra.mxu0 0
          %1269 = vmatprep.subr.bf16.mxu0 0
          %1270 = vmatpush2.bf16.xpose.msra.mxu0 0
          %1271 = vmatprep.subr.bf16.mxu0 0
          %1272 = vmatpush2.bf16.xpose.msra.mxu0 0
          %1273 = vmatprep.subr.bf16.mxu0 0
          %1274 = vmatpush2.bf16.xpose.msra.mxu0 0
          %1275 = vmatprep.subr.bf16.mxu0 0
          %1276 = vmatpush2.bf16.xpose.msra.mxu0 0
          %1277 = vmatprep.subr.bf16.mxu0 0
          %1278 = vmatpush2.bf16.xpose.msra.mxu0 0
          %1279 = vmatprep.mubr.bf16.mxu0 0
          %1280 = vmatmul.mubr.bf16.gmra.mxu0 %v1242
          %v1281 = vpop.f32.mrf.mxu0
          %v1282 = vadd.f32 0.0, %v1281
          %v1283 = vpop.f32.mrf.mxu0
          %v1284 = vpop.f32.mrf.mxu0
          %v1285 = vpop.f32.mrf.mxu0
          %1286 = vdwg.mxu0
          %v1287 = vmul.f32 %v1282, 0.35355338
          %v1288 = vadd.f32 %v1287, %v1099
          %s1289 = scalar_lea.vmem [#allocation2], 8
          %v1290 = vld [vmem:[%s1289] sm:$0xff]
          %v1291 = vsel %vm1100, %v1288, -inf
          %1292 = vmax.xlane.f32.xlu0 %v1291
          %v1293 = vpop.xlane.xlu0 %1292
          %v1294 = vmax.f32 %v1290, %v1293
          %v1295 = vsub.f32 %v1290, %v1294
          %v1296 = vmul.f32 %v1295, 1.442695
          %v1297 = vpow.pop %v1296
          %1299 = vset.pattern.permute.xlu0 0
          %1300 = vperm.xlu0 %1299, %v1294
          %v1301 = vpop.permute.xlu0 %1300
          %v1303 = vsub.f32 %v1288, %v1301
          %v1304 = vmul.f32 %v1303, 1.442695
          %v1305 = vpow.pop %v1304
          %s1306 = scalar_lea.vmem [#allocation3], 8
          %v1307 = vld [vmem:[%s1306] sm:$0xff]
          %v1308 = vmul.f32 %v1297, %v1307
          %v1309 = vsel %vm1100, %v1305, 0.0
          %1310 = vadd.xlane.f32.xlu0 %v1309
          %v1311 = vpop.xlane.xlu0 %1310
          %v1312 = vadd.f32 %v1308, %v1311
          %1313 = vst.msk [vmem:[%s1306] sm:$0xff] %vm1171, %v1312
          %v1314 = vld [vmem:[#allocation4] sm:$0xff]
          %1316 = vset.pattern.permute.xlu0 0
          %1317 = vperm.xlu0 %1316, %v1297
          %v1318 = vpop.permute.xlu0 %1317
          %v1320 = vmul.f32 %v1318, %v1314
          %v1321 = vpack.c.bf16 %v1305, %v1305
          %v1323 = vunpack.c.l.b16 %v1087
          %v1324 = vpack.c.b16 %v1323, %v1323
          %1325 = vrot.lane.b32.xlu0 %v1324, 120
          %v1326 = vpop.permute.xlu0 %1325
          %v1328 = vsel %vm1100, %v1321, 0
          %v1331 = vsel %vm1184, %v1326, 0
          %1333 = vmatprep.subr.bf16.mxu0 0
          %1334 = vmatpush1.bf16.msra.mxu0 0
          %1335 = vmatprep.subr.bf16.mxu0 0
          %1336 = vmatpush1.bf16.msra.mxu0 0
          %1337 = vmatprep.subr.bf16.mxu0 0
          %1338 = vmatpush1.bf16.msra.mxu0 0
          %1339 = vmatprep.subr.bf16.mxu0 0
          %1340 = vmatpush1.bf16.msra.mxu0 0
          %1341 = vmatprep.subr.bf16.mxu0 0
          %1342 = vmatpush1.bf16.msra.mxu0 0
          %1343 = vmatprep.subr.bf16.mxu0 0
          %1344 = vmatpush1.bf16.msra.mxu0 0
          %1345 = vmatprep.subr.bf16.mxu0 0
          %1346 = vmatpush1.bf16.msra.mxu0 0
          %1347 = vmatprep.subr.bf16.mxu0 0
          %1348 = vmatpush1.bf16.msra.mxu0 %v1331
          %1349 = vmatprep.subr.bf16.mxu0 0
          %1350 = vmatpush2.bf16.msra.mxu0 0
          %1351 = vmatprep.subr.bf16.mxu0 0
          %1352 = vmatpush2.bf16.msra.mxu0 0
          %1353 = vmatprep.subr.bf16.mxu0 0
          %1354 = vmatpush2.bf16.msra.mxu0 0
          %1355 = vmatprep.subr.bf16.mxu0 0
          %1356 = vmatpush2.bf16.msra.mxu0 0
          %1357 = vmatprep.subr.bf16.mxu0 0
          %1358 = vmatpush2.bf16.msra.mxu0 0
          %1359 = vmatprep.subr.bf16.mxu0 0
          %1360 = vmatpush2.bf16.msra.mxu0 0
          %1361 = vmatprep.subr.bf16.mxu0 0
          %1362 = vmatpush2.bf16.msra.mxu0 0
          %1363 = vmatprep.subr.bf16.mxu0 0
          %1364 = vmatpush2.bf16.msra.mxu0 0
          %1365 = vmatprep.mubr.bf16.mxu0 0
          %1366 = vmatmul.mubr.bf16.gmra.mxu0 %v1328
          %v1367 = vpop.f32.mrf.mxu0
          %v1368 = vadd.f32 0.0, %v1367
          %v1369 = vpop.f32.mrf.mxu0
          %v1370 = vpop.f32.mrf.mxu0
          %v1371 = vpop.f32.mrf.mxu0
          %1372 = vdwg.mxu0
          %1374 = vrot.lane.b32.xlu0 %v1368, 8
          %v1375 = vpop.permute.xlu0 %1374
          %v1377 = vadd.f32 %v1320, %v1375
          %vm1378 = vcmask 130112
          %1379 = vst.msk [vmem:[#allocation4] sm:$0xff] %vm1378, %v1377
          %1380 = vst.msk [vmem:[%s1289] sm:$0xff] %vm1171, %v1294
          %1381 = vrot.lane.b32.xlu0 %v1233, 112
          %v1382 = vpop.permute.xlu0 %1381
          %1383 = vrot.lane.b32.xlu0 %v1238, 112
          %v1384 = vpop.permute.xlu0 %1383
          %v1386 = vsel %vm1100, %v1382, 0
          %v1389 = vsel %vm1100, %v1384, 0
          %1391 = vmatprep.subr.bf16.mxu0 0
          %1392 = vmatpush1.bf16.xpose.msra.mxu0 0
          %1393 = vmatprep.subr.bf16.mxu0 0
          %1394 = vmatpush1.bf16.xpose.msra.mxu0 0
          %1395 = vmatprep.subr.bf16.mxu0 0
          %1396 = vmatpush1.bf16.xpose.msra.mxu0 0
          %1397 = vmatprep.subr.bf16.mxu0 0
          %1398 = vmatpush1.bf16.xpose.msra.mxu0 0
          %1399 = vmatprep.subr.bf16.mxu0 0
          %1400 = vmatpush1.bf16.xpose.msra.mxu0 0
          %1401 = vmatprep.subr.bf16.mxu0 0
          %1402 = vmatpush1.bf16.xpose.msra.mxu0 0
          %1403 = vmatprep.subr.bf16.mxu0 0
          %1404 = vmatpush1.bf16.xpose.msra.mxu0 0
          %1405 = vmatprep.subr.bf16.mxu0 0
          %1406 = vmatpush1.bf16.xpose.msra.mxu0 %v1389
          %1407 = vmatprep.subr.bf16.mxu0 0
          %1408 = vmatpush2.bf16.xpose.msra.mxu0 0
          %1409 = vmatprep.subr.bf16.mxu0 0
          %1410 = vmatpush2.bf16.xpose.msra.mxu0 0
          %1411 = vmatprep.subr.bf16.mxu0 0
          %1412 = vmatpush2.bf16.xpose.msra.mxu0 0
          %1413 = vmatprep.subr.bf16.mxu0 0
          %1414 = vmatpush2.bf16.xpose.msra.mxu0 0
          %1415 = vmatprep.subr.bf16.mxu0 0
          %1416 = vmatpush2.bf16.xpose.msra.mxu0 0
          %1417 = vmatprep.subr.bf16.mxu0 0
          %1418 = vmatpush2.bf16.xpose.msra.mxu0 0
          %1419 = vmatprep.subr.bf16.mxu0 0
          %1420 = vmatpush2.bf16.xpose.msra.mxu0 0
          %1421 = vmatprep.subr.bf16.mxu0 0
          %1422 = vmatpush2.bf16.xpose.msra.mxu0 0
          %1423 = vmatprep.mubr.bf16.mxu0 0
          %1424 = vmatmul.mubr.bf16.gmra.mxu0 %v1386
          %v1425 = vpop.f32.mrf.mxu0
          %v1426 = vadd.f32 0.0, %v1425
          %v1427 = vpop.f32.mrf.mxu0
          %v1428 = vpop.f32.mrf.mxu0
          %v1429 = vpop.f32.mrf.mxu0
          %1430 = vdwg.mxu0
          %v1431 = vmul.f32 %v1426, 0.35355338
          %v1432 = vadd.f32 %v1431, %v1099
          %s1433 = scalar_lea.vmem [#allocation2], 16
          %v1434 = vld [vmem:[%s1433] sm:$0xff]
          %v1435 = vsel %vm1100, %v1432, -inf
          %1436 = vmax.xlane.f32.xlu0 %v1435
          %v1437 = vpop.xlane.xlu0 %1436
          %v1438 = vmax.f32 %v1434, %v1437
          %v1439 = vsub.f32 %v1434, %v1438
          %v1440 = vmul.f32 %v1439, 1.442695
          %v1441 = vpow.pop %v1440
          %1443 = vset.pattern.permute.xlu0 0
          %1444 = vperm.xlu0 %1443, %v1438
          %v1445 = vpop.permute.xlu0 %1444
          %v1447 = vsub.f32 %v1432, %v1445
          %v1448 = vmul.f32 %v1447, 1.442695
          %v1449 = vpow.pop %v1448
          %s1450 = scalar_lea.vmem [#allocation3], 16
          %v1451 = vld [vmem:[%s1450] sm:$0xff]
          %v1452 = vmul.f32 %v1441, %v1451
          %v1453 = vsel %vm1100, %v1449, 0.0
          %1454 = vadd.xlane.f32.xlu0 %v1453
          %v1455 = vpop.xlane.xlu0 %1454
          %v1456 = vadd.f32 %v1452, %v1455
          %1457 = vst.msk [vmem:[%s1450] sm:$0xff] %vm1171, %v1456
          %v1458 = vld [vmem:[#allocation4] sm:$0xff]
          %1460 = vset.pattern.permute.xlu0 0
          %1461 = vperm.xlu0 %1460, %v1441
          %v1462 = vpop.permute.xlu0 %1461
          %v1464 = vmul.f32 %v1462, %v1458
          %v1465 = vpack.c.bf16 %v1449, %v1449
          %1466 = vrot.lane.b32.xlu0 %v1324, 112
          %v1467 = vpop.permute.xlu0 %1466
          %v1469 = vsel %vm1100, %v1465, 0
          %v1472 = vsel %vm1184, %v1467, 0
          %1474 = vmatprep.subr.bf16.mxu0 0
          %1475 = vmatpush1.bf16.msra.mxu0 0
          %1476 = vmatprep.subr.bf16.mxu0 0
          %1477 = vmatpush1.bf16.msra.mxu0 0
          %1478 = vmatprep.subr.bf16.mxu0 0
          %1479 = vmatpush1.bf16.msra.mxu0 0
          %1480 = vmatprep.subr.bf16.mxu0 0
          %1481 = vmatpush1.bf16.msra.mxu0 0
          %1482 = vmatprep.subr.bf16.mxu0 0
          %1483 = vmatpush1.bf16.msra.mxu0 0
          %1484 = vmatprep.subr.bf16.mxu0 0
          %1485 = vmatpush1.bf16.msra.mxu0 0
          %1486 = vmatprep.subr.bf16.mxu0 0
          %1487 = vmatpush1.bf16.msra.mxu0 0
          %1488 = vmatprep.subr.bf16.mxu0 0
          %1489 = vmatpush1.bf16.msra.mxu0 %v1472
          %1490 = vmatprep.subr.bf16.mxu0 0
          %1491 = vmatpush2.bf16.msra.mxu0 0
          %1492 = vmatprep.subr.bf16.mxu0 0
          %1493 = vmatpush2.bf16.msra.mxu0 0
          %1494 = vmatprep.subr.bf16.mxu0 0
          %1495 = vmatpush2.bf16.msra.mxu0 0
          %1496 = vmatprep.subr.bf16.mxu0 0
          %1497 = vmatpush2.bf16.msra.mxu0 0
          %1498 = vmatprep.subr.bf16.mxu0 0
          %1499 = vmatpush2.bf16.msra.mxu0 0
          %1500 = vmatprep.subr.bf16.mxu0 0
          %1501 = vmatpush2.bf16.msra.mxu0 0
          %1502 = vmatprep.subr.bf16.mxu0 0
          %1503 = vmatpush2.bf16.msra.mxu0 0
          %1504 = vmatprep.subr.bf16.mxu0 0
          %1505 = vmatpush2.bf16.msra.mxu0 0
          %1506 = vmatprep.mubr.bf16.mxu0 0
          %1507 = vmatmul.mubr.bf16.gmra.mxu0 %v1469
          %v1508 = vpop.f32.mrf.mxu0
          %v1509 = vadd.f32 0.0, %v1508
          %v1510 = vpop.f32.mrf.mxu0
          %v1511 = vpop.f32.mrf.mxu0
          %v1512 = vpop.f32.mrf.mxu0
          %1513 = vdwg.mxu0
          %1515 = vrot.lane.b32.xlu0 %v1509, 16
          %v1516 = vpop.permute.xlu0 %1515
          %v1518 = vadd.f32 %v1464, %v1516
          %vm1519 = vcmask 195712
          %1520 = vst.msk [vmem:[#allocation4] sm:$0xff] %vm1519, %v1518
          %1521 = vst.msk [vmem:[%s1433] sm:$0xff] %vm1171, %v1438
          %1522 = vrot.lane.b32.xlu0 %v1233, 104
          %v1523 = vpop.permute.xlu0 %1522
          %1524 = vrot.lane.b32.xlu0 %v1238, 104
          %v1525 = vpop.permute.xlu0 %1524
          %v1527 = vsel %vm1100, %v1523, 0
          %v1530 = vsel %vm1100, %v1525, 0
          %1532 = vmatprep.subr.bf16.mxu0 0
          %1533 = vmatpush1.bf16.xpose.msra.mxu0 0
          %1534 = vmatprep.subr.bf16.mxu0 0
          %1535 = vmatpush1.bf16.xpose.msra.mxu0 0
          %1536 = vmatprep.subr.bf16.mxu0 0
          %1537 = vmatpush1.bf16.xpose.msra.mxu0 0
          %1538 = vmatprep.subr.bf16.mxu0 0
          %1539 = vmatpush1.bf16.xpose.msra.mxu0 0
          %1540 = vmatprep.subr.bf16.mxu0 0
          %1541 = vmatpush1.bf16.xpose.msra.mxu0 0
          %1542 = vmatprep.subr.bf16.mxu0 0
          %1543 = vmatpush1.bf16.xpose.msra.mxu0 0
          %1544 = vmatprep.subr.bf16.mxu0 0
          %1545 = vmatpush1.bf16.xpose.msra.mxu0 0
          %1546 = vmatprep.subr.bf16.mxu0 0
          %1547 = vmatpush1.bf16.xpose.msra.mxu0 %v1530
          %1548 = vmatprep.subr.bf16.mxu0 0
          %1549 = vmatpush2.bf16.xpose.msra.mxu0 0
          %1550 = vmatprep.subr.bf16.mxu0 0
          %1551 = vmatpush2.bf16.xpose.msra.mxu0 0
          %1552 = vmatprep.subr.bf16.mxu0 0
          %1553 = vmatpush2.bf16.xpose.msra.mxu0 0
          %1554 = vmatprep.subr.bf16.mxu0 0
          %1555 = vmatpush2.bf16.xpose.msra.mxu0 0
          %1556 = vmatprep.subr.bf16.mxu0 0
          %1557 = vmatpush2.bf16.xpose.msra.mxu0 0
          %1558 = vmatprep.subr.bf16.mxu0 0
          %1559 = vmatpush2.bf16.xpose.msra.mxu0 0
          %1560 = vmatprep.subr.bf16.mxu0 0
          %1561 = vmatpush2.bf16.xpose.msra.mxu0 0
          %1562 = vmatprep.subr.bf16.mxu0 0
          %1563 = vmatpush2.bf16.xpose.msra.mxu0 0
          %1564 = vmatprep.mubr.bf16.mxu0 0
          %1565 = vmatmul.mubr.bf16.gmra.mxu0 %v1527
          %v1566 = vpop.f32.mrf.mxu0
          %v1567 = vadd.f32 0.0, %v1566
          %v1568 = vpop.f32.mrf.mxu0
          %v1569 = vpop.f32.mrf.mxu0
          %v1570 = vpop.f32.mrf.mxu0
          %1571 = vdwg.mxu0
          %v1572 = vmul.f32 %v1567, 0.35355338
          %v1573 = vadd.f32 %v1572, %v1099
          %s1574 = scalar_lea.vmem [#allocation2], 24
          %v1575 = vld [vmem:[%s1574] sm:$0xff]
          %v1576 = vsel %vm1100, %v1573, -inf
          %1577 = vmax.xlane.f32.xlu0 %v1576
          %v1578 = vpop.xlane.xlu0 %1577
          %v1579 = vmax.f32 %v1575, %v1578
          %v1580 = vsub.f32 %v1575, %v1579
          %v1581 = vmul.f32 %v1580, 1.442695
          %v1582 = vpow.pop %v1581
          %1584 = vset.pattern.permute.xlu0 0
          %1585 = vperm.xlu0 %1584, %v1579
          %v1586 = vpop.permute.xlu0 %1585
          %v1588 = vsub.f32 %v1573, %v1586
          %v1589 = vmul.f32 %v1588, 1.442695
          %v1590 = vpow.pop %v1589
          %s1591 = scalar_lea.vmem [#allocation3], 24
          %v1592 = vld [vmem:[%s1591] sm:$0xff]
          %v1593 = vmul.f32 %v1582, %v1592
          %v1594 = vsel %vm1100, %v1590, 0.0
          %1595 = vadd.xlane.f32.xlu0 %v1594
          %v1596 = vpop.xlane.xlu0 %1595
          %v1597 = vadd.f32 %v1593, %v1596
          %1598 = vst.msk [vmem:[%s1591] sm:$0xff] %vm1171, %v1597
          %v1599 = vld [vmem:[#allocation4] sm:$0xff]
          %1601 = vset.pattern.permute.xlu0 0
          %1602 = vperm.xlu0 %1601, %v1582
          %v1603 = vpop.permute.xlu0 %1602
          %v1605 = vmul.f32 %v1603, %v1599
          %v1606 = vpack.c.bf16 %v1590, %v1590
          %1607 = vrot.lane.b32.xlu0 %v1324, 104
          %v1608 = vpop.permute.xlu0 %1607
          %v1610 = vsel %vm1100, %v1606, 0
          %v1613 = vsel %vm1184, %v1608, 0
          %1615 = vmatprep.subr.bf16.mxu0 0
          %1616 = vmatpush1.bf16.msra.mxu0 0
          %1617 = vmatprep.subr.bf16.mxu0 0
          %1618 = vmatpush1.bf16.msra.mxu0 0
          %1619 = vmatprep.subr.bf16.mxu0 0
          %1620 = vmatpush1.bf16.msra.mxu0 0
          %1621 = vmatprep.subr.bf16.mxu0 0
          %1622 = vmatpush1.bf16.msra.mxu0 0
          %1623 = vmatprep.subr.bf16.mxu0 0
          %1624 = vmatpush1.bf16.msra.mxu0 0
          %1625 = vmatprep.subr.bf16.mxu0 0
          %1626 = vmatpush1.bf16.msra.mxu0 0
          %1627 = vmatprep.subr.bf16.mxu0 0
          %1628 = vmatpush1.bf16.msra.mxu0 0
          %1629 = vmatprep.subr.bf16.mxu0 0
          %1630 = vmatpush1.bf16.msra.mxu0 %v1613
          %1631 = vmatprep.subr.bf16.mxu0 0
          %1632 = vmatpush2.bf16.msra.mxu0 0
          %1633 = vmatprep.subr.bf16.mxu0 0
          %1634 = vmatpush2.bf16.msra.mxu0 0
          %1635 = vmatprep.subr.bf16.mxu0 0
          %1636 = vmatpush2.bf16.msra.mxu0 0
          %1637 = vmatprep.subr.bf16.mxu0 0
          %1638 = vmatpush2.bf16.msra.mxu0 0
          %1639 = vmatprep.subr.bf16.mxu0 0
          %1640 = vmatpush2.bf16.msra.mxu0 0
          %1641 = vmatprep.subr.bf16.mxu0 0
          %1642 = vmatpush2.bf16.msra.mxu0 0
          %1643 = vmatprep.subr.bf16.mxu0 0
          %1644 = vmatpush2.bf16.msra.mxu0 0
          %1645 = vmatprep.subr.bf16.mxu0 0
          %1646 = vmatpush2.bf16.msra.mxu0 0
          %1647 = vmatprep.mubr.bf16.mxu0 0
          %1648 = vmatmul.mubr.bf16.gmra.mxu0 %v1610
          %v1649 = vpop.f32.mrf.mxu0
          %v1650 = vadd.f32 0.0, %v1649
          %v1651 = vpop.f32.mrf.mxu0
          %v1652 = vpop.f32.mrf.mxu0
          %v1653 = vpop.f32.mrf.mxu0
          %1654 = vdwg.mxu0
          %1656 = vrot.lane.b32.xlu0 %v1650, 24
          %v1657 = vpop.permute.xlu0 %1656
          %v1659 = vadd.f32 %v1605, %v1657
          %vm1660 = vcmask 261312
          %1661 = vst.msk [vmem:[#allocation4] sm:$0xff] %vm1660, %v1659
          %1662 = vst.msk [vmem:[%s1574] sm:$0xff] %vm1171, %v1579
          %v1663 = vld [vmem:[#allocation4] sm:$0xff]
          %v1664 = vld [vmem:[#allocation3] sm:$0xff]
          %v1665 = vrcp.pop %v1664
          %1667 = vset.pattern.permute.xlu0 0
          %1668 = vperm.xlu0 %1667, %v1665
          %v1669 = vpop.permute.xlu0 %1668
          %v1671 = vmul.f32 %v1663, %v1669
          %v1672 = vld [vmem:[%s1306] sm:$0xff]
          %v1673 = vrcp.pop %v1672
          %1675 = vset.pattern.permute.xlu0 0
          %1676 = vperm.xlu0 %1675, %v1673
          %v1677 = vpop.permute.xlu0 %1676
          %v1679 = vmul.f32 %v1663, %v1677
          %v1680 = vld [vmem:[%s1450] sm:$0xff]
          %v1681 = vrcp.pop %v1680
          %1683 = vset.pattern.permute.xlu0 0
          %1684 = vperm.xlu0 %1683, %v1681
          %v1685 = vpop.permute.xlu0 %1684
          %v1687 = vmul.f32 %v1663, %v1685
          %v1688 = vld [vmem:[%s1591] sm:$0xff]
          %v1689 = vrcp.pop %v1688
          %1691 = vset.pattern.permute.xlu0 0
          %1692 = vperm.xlu0 %1691, %v1689
          %v1693 = vpop.permute.xlu0 %1692
          %v1695 = vmul.f32 %v1663, %v1693
          %v1696 = vsel %vm1100, %v1671, %v1679
          %vm1697 = vcmask 130048
          %v1698 = vsel %vm1697, %v1696, %v1687
          %vm1699 = vcmask 195584
          %v1700 = vsel %vm1699, %v1698, %v1695
          %v1701 = vld [vmem:[%s4] sm:$0xf]
          %v1702 = vld [vmem:[%s4 + $0x4] sm:$0xf]
          %v1703 = vpack.c.bf16 %v1700, %v1700
          %v1706 = vunpack.c.l.b16 %v1701
          %v1707 = vunpack.c.l.b16 %v1702
          %v1708 = vpack.c.b16 %v1707, %v1706
          %vm1709 = vcmask 261120
          %v1711 = vsel %vm1709, %v1703, 0
          %v1714 = vsel %vm1709, %v1708, 0
          %1716 = vmatprep.subr.bf16.mxu0 0
          %1717 = vmatpush1.bf16.xpose.msra.mxu0 0
          %1718 = vmatprep.subr.bf16.mxu0 0
          %1719 = vmatpush1.bf16.xpose.msra.mxu0 0
          %1720 = vmatprep.subr.bf16.mxu0 0
          %1721 = vmatpush1.bf16.xpose.msra.mxu0 0
          %1722 = vmatprep.subr.bf16.mxu0 0
          %1723 = vmatpush1.bf16.xpose.msra.mxu0 0
          %1724 = vmatprep.subr.bf16.mxu0 0
          %1725 = vmatpush1.bf16.xpose.msra.mxu0 0
          %1726 = vmatprep.subr.bf16.mxu0 0
          %1727 = vmatpush1.bf16.xpose.msra.mxu0 0
          %1728 = vmatprep.subr.bf16.mxu0 0
          %1729 = vmatpush1.bf16.xpose.msra.mxu0 0
          %1730 = vmatprep.subr.bf16.mxu0 0
          %1731 = vmatpush1.bf16.xpose.msra.mxu0 %v1714
          %1732 = vmatprep.subr.bf16.mxu0 0
          %1733 = vmatpush2.bf16.xpose.msra.mxu0 0
          %1734 = vmatprep.subr.bf16.mxu0 0
          %1735 = vmatpush2.bf16.xpose.msra.mxu0 0
          %1736 = vmatprep.subr.bf16.mxu0 0
          %1737 = vmatpush2.bf16.xpose.msra.mxu0 0
          %1738 = vmatprep.subr.bf16.mxu0 0
          %1739 = vmatpush2.bf16.xpose.msra.mxu0 0
          %1740 = vmatprep.subr.bf16.mxu0 0
          %1741 = vmatpush2.bf16.xpose.msra.mxu0 0
          %1742 = vmatprep.subr.bf16.mxu0 0
          %1743 = vmatpush2.bf16.xpose.msra.mxu0 0
          %1744 = vmatprep.subr.bf16.mxu0 0
          %1745 = vmatpush2.bf16.xpose.msra.mxu0 0
          %1746 = vmatprep.subr.bf16.mxu0 0
          %1747 = vmatpush2.bf16.xpose.msra.mxu0 0
          %1748 = vmatprep.mubr.bf16.mxu0 0
          %1749 = vmatmul.mubr.bf16.gmra.mxu0 %v1711
          %v1750 = vpop.f32.mrf.mxu0
          %v1751 = vadd.f32 0.0, %v1750
          %v1752 = vpop.f32.mrf.mxu0
          %v1753 = vpop.f32.mrf.mxu0
          %v1754 = vpop.f32.mrf.mxu0
          %1755 = vdwg.mxu0
          %v1756 = vmul.f32 %v1751, 0.17677669
          %v1757 = vld [vmem:[%s5] sm:$0xf]
          %v1758 = vld [vmem:[%s5 + $0x4] sm:$0xf]
          %v1759 = vmul.f32 %v1756, %v1756
          %v1760 = vmul.f32 %v1756, %v1759
          %v1761 = vmul.f32 %v1760, 0.044715
          %v1762 = vadd.f32 %v1756, %v1761
          %v1763 = vmul.f32 %v1762, 0.7978846
          %v1764 = vtanh.pop %v1763
          %v1765 = vadd.f32 %v1764, 1.0
          %v1766 = vmul.f32 %v1765, 0.5
          %v1767 = vmul.f32 %v1756, %v1766
          %v1768 = vmul.f32 %v1767, %v1767
          %v1769 = vsel %vm1697, %v1768, 0.0
          %1770 = vadd.xlane.f32.xlu0 %v1769
          %v1771 = vpop.xlane.xlu0 %1770
          %v1772 = vadd.f32 %v1771, 1e-12
          %v1773 = vrsqrt.pop %v1772
          %v1774 = vmul.f32 %v1767, %v1773
          %v1775 = vmul.f32 %v1774, 4.0
          %v1776 = vpack.c.bf16 %v1775, %v1775
          %v1777 = vld [vmem:[%s498] sm:$0xff]
          %v1780 = vunpack.c.l.b16 %v1757
          %v1781 = vunpack.c.l.b16 %v1758
          %v1782 = vpack.c.b16 %v1781, %v1780
          %v1785 = vsel %vm1697, %v1776, 0
          %1787 = vmatprep.subr.bf16.mxu0 0
          %1788 = vmatpush1.bf16.msra.mxu0 0
          %1789 = vmatprep.subr.bf16.mxu0 0
          %1790 = vmatpush1.bf16.msra.mxu0 0
          %1791 = vmatprep.subr.bf16.mxu0 0
          %1792 = vmatpush1.bf16.msra.mxu0 0
          %1793 = vmatprep.subr.bf16.mxu0 0
          %1794 = vmatpush1.bf16.msra.mxu0 0
          %1795 = vmatprep.subr.bf16.mxu0 0
          %1796 = vmatpush1.bf16.msra.mxu0 0
          %1797 = vmatprep.subr.bf16.mxu0 0
          %1798 = vmatpush1.bf16.msra.mxu0 0
          %1799 = vmatprep.subr.bf16.mxu0 0
          %1800 = vmatpush1.bf16.msra.mxu0 0
          %1801 = vmatprep.subr.bf16.mxu0 0
          %1802 = vmatpush1.bf16.msra.mxu0 %v1782
          %1803 = vmatprep.subr.bf16.mxu0 0
          %1804 = vmatpush2.bf16.msra.mxu0 0
          %1805 = vmatprep.subr.bf16.mxu0 0
          %1806 = vmatpush2.bf16.msra.mxu0 0
          %1807 = vmatprep.subr.bf16.mxu0 0
          %1808 = vmatpush2.bf16.msra.mxu0 0
          %1809 = vmatprep.subr.bf16.mxu0 0
          %1810 = vmatpush2.bf16.msra.mxu0 0
          %1811 = vmatprep.subr.bf16.mxu0 0
          %1812 = vmatpush2.bf16.msra.mxu0 0
          %1813 = vmatprep.subr.bf16.mxu0 0
          %1814 = vmatpush2.bf16.msra.mxu0 0
          %1815 = vmatprep.subr.bf16.mxu0 0
          %1816 = vmatpush2.bf16.msra.mxu0 0
          %1817 = vmatprep.subr.bf16.mxu0 0
          %1818 = vmatpush2.bf16.msra.mxu0 0
          %1819 = vmatprep.mubr.bf16.mxu0 0
          %1820 = vmatmul.mubr.bf16.gmra.mxu0 %v1785
          %v1821 = vpop.f32.mrf.mxu0
          %v1822 = vadd.f32 %v1777, %v1821
          %v1823 = vpop.f32.mrf.mxu0
          %v1824 = vpop.f32.mrf.mxu0
          %v1825 = vpop.f32.mrf.mxu0
          %1826 = vdwg.mxu0
          %v1827 = vld [vmem:[%s8] sm:$0x1]
          %v1828 = vld [vmem:[%s9] sm:$0x1]
          %v1829 = vsel %vm1709, %v1822, 0.0
          %1830 = vadd.xlane.f32.xlu0 %v1829
          %v1831 = vpop.xlane.xlu0 %1830
          %v1832 = vrcp.pop 32.0
          %v1833 = vmul.f32 %v1831, %v1832
          %v1834 = vsub.f32 %v1822, %v1833
          %v1835 = vmul.f32 %v1834, %v1834
          %v1836 = vsel %vm1709, %v1835, 0.0
          %1837 = vadd.xlane.f32.xlu0 %v1836
          %v1838 = vpop.xlane.xlu0 %1837
          %v1839 = vmul.f32 %v1838, %v1832
          %v1840 = vadd.f32 %v1839, 1e-05
          %v1841 = vrsqrt.pop %v1840
          %v1842 = vmul.f32 %v1834, %v1841
          %v1844 = vlaneseq
          %v1845 = vshrl.u32 %v1844, 7
          %v1846 = vsub.s32 0, %v1845
          %v1847 = vrot.slane %v1827, %v1846
          %v1849 = vmul.f32 %v1842, %v1847
          %v1851 = vlaneseq
          %v1852 = vshrl.u32 %v1851, 7
          %v1853 = vsub.s32 0, %v1852
          %v1854 = vrot.slane %v1828, %v1853
          %v1856 = vadd.f32 %v1849, %v1854
          %v1857 = vld [vmem:[%s6] sm:$0xf]
          %v1858 = vld [vmem:[%s6 + $0x4] sm:$0xf]
          %v1859 = vld [vmem:[%s6 + $0x8] sm:$0xf]
          %v1860 = vld [vmem:[%s6 + $0xc] sm:$0xf]
          %v1861 = vld [vmem:[%s6 + $0x10] sm:$0xf]
          %v1862 = vld [vmem:[%s6 + $0x14] sm:$0xf]
          %v1863 = vld [vmem:[%s6 + $0x18] sm:$0xf]
          %v1864 = vld [vmem:[%s6 + $0x1c] sm:$0xf]
          %v1865 = vpack.c.bf16 %v1856, %v1856
          %v1874 = vunpack.c.l.b16 %v1857
          %v1875 = vunpack.c.l.b16 %v1858
          %v1876 = vunpack.c.l.b16 %v1859
          %v1877 = vunpack.c.l.b16 %v1860
          %v1878 = vunpack.c.l.b16 %v1861
          %v1879 = vunpack.c.l.b16 %v1862
          %v1880 = vunpack.c.l.b16 %v1863
          %v1881 = vunpack.c.l.b16 %v1864
          %v1882 = vpack.c.b16 %v1875, %v1874
          %v1883 = vpack.c.b16 %v1877, %v1876
          %v1884 = vpack.c.b16 %v1879, %v1878
          %v1885 = vpack.c.b16 %v1881, %v1880
          %v1887 = vsel %vm1709, %v1865, 0
          %v1890 = vsel %vm1709, %v1882, 0
          %v1893 = vsel %vm1709, %v1883, 0
          %v1896 = vsel %vm1709, %v1884, 0
          %v1899 = vsel %vm1709, %v1885, 0
          %1901 = vmatprep.subr.bf16.mxu0 0
          %1902 = vmatpush1.bf16.xpose.msra.mxu0 0
          %1903 = vmatprep.subr.bf16.mxu0 0
          %1904 = vmatpush1.bf16.xpose.msra.mxu0 0
          %1905 = vmatprep.subr.bf16.mxu0 0
          %1906 = vmatpush1.bf16.xpose.msra.mxu0 0
          %1907 = vmatprep.subr.bf16.mxu0 0
          %1908 = vmatpush1.bf16.xpose.msra.mxu0 0
          %1909 = vmatprep.subr.bf16.mxu0 0
          %1910 = vmatpush1.bf16.xpose.msra.mxu0 %v1899
          %1911 = vmatprep.subr.bf16.mxu0 0
          %1912 = vmatpush1.bf16.xpose.msra.mxu0 %v1896
          %1913 = vmatprep.subr.bf16.mxu0 0
          %1914 = vmatpush1.bf16.xpose.msra.mxu0 %v1893
          %1915 = vmatprep.subr.bf16.mxu0 0
          %1916 = vmatpush1.bf16.xpose.msra.mxu0 %v1890
          %1917 = vmatprep.subr.bf16.mxu0 0
          %1918 = vmatpush2.bf16.xpose.msra.mxu0 0
          %1919 = vmatprep.subr.bf16.mxu0 0
          %1920 = vmatpush2.bf16.xpose.msra.mxu0 0
          %1921 = vmatprep.subr.bf16.mxu0 0
          %1922 = vmatpush2.bf16.xpose.msra.mxu0 0
          %1923 = vmatprep.subr.bf16.mxu0 0
          %1924 = vmatpush2.bf16.xpose.msra.mxu0 0
          %1925 = vmatprep.subr.bf16.mxu0 0
          %1926 = vmatpush2.bf16.xpose.msra.mxu0 0
          %1927 = vmatprep.subr.bf16.mxu0 0
          %1928 = vmatpush2.bf16.xpose.msra.mxu0 0
          %1929 = vmatprep.subr.bf16.mxu0 0
          %1930 = vmatpush2.bf16.xpose.msra.mxu0 0
          %1931 = vmatprep.subr.bf16.mxu0 0
          %1932 = vmatpush2.bf16.xpose.msra.mxu0 0
          %1933 = vmatprep.mubr.bf16.mxu0 0
          %1934 = vmatmul.mubr.bf16.gmra.mxu0 %v1887
          %v1935 = vpop.f32.mrf.mxu0
          %v1936 = vadd.f32 0.0, %v1935
          %v1937 = vpop.f32.mrf.mxu0
          %v1938 = vpop.f32.mrf.mxu0
          %v1939 = vpop.f32.mrf.mxu0
          %1940 = vdwg.mxu0
          %v1941 = vmul.f32 %v1936, 0.17677669
          %v1942 = vld [vmem:[%s7] sm:$0xf]
          %v1943 = vld [vmem:[%s7 + $0x4] sm:$0xf]
          %v1944 = vld [vmem:[%s7 + $0x8] sm:$0xf]
          %v1945 = vld [vmem:[%s7 + $0xc] sm:$0xf]
          %v1946 = vld [vmem:[%s7 + $0x10] sm:$0xf]
          %v1947 = vld [vmem:[%s7 + $0x14] sm:$0xf]
          %v1948 = vld [vmem:[%s7 + $0x18] sm:$0xf]
          %v1949 = vld [vmem:[%s7 + $0x1c] sm:$0xf]
          %v1950 = vmul.f32 %v1941, %v1941
          %v1951 = vmul.f32 %v1941, %v1950
          %v1952 = vmul.f32 %v1951, 0.044715
          %v1953 = vadd.f32 %v1941, %v1952
          %v1954 = vmul.f32 %v1953, 0.7978846
          %v1955 = vtanh.pop %v1954
          %v1956 = vadd.f32 %v1955, 1.0
          %v1957 = vmul.f32 %v1956, 0.5
          %v1958 = vmul.f32 %v1941, %v1957
          %v1959 = vmul.f32 %v1958, %v1958
          %vm1960 = vcmask 523264
          %v1961 = vsel %vm1960, %v1959, 0.0
          %1962 = vadd.xlane.f32.xlu0 %v1961
          %v1963 = vpop.xlane.xlu0 %1962
          %v1964 = vadd.f32 %v1963, 1e-12
          %v1965 = vrsqrt.pop %v1964
          %v1966 = vmul.f32 %v1958, %v1965
          %v1967 = vmul.f32 %v1966, 8.0
          %v1968 = vpack.c.bf16 %v1967, %v1967
          %v1977 = vunpack.c.l.b16 %v1942
          %v1978 = vunpack.c.l.b16 %v1943
          %v1979 = vunpack.c.l.b16 %v1944
          %v1980 = vunpack.c.l.b16 %v1945
          %v1981 = vunpack.c.l.b16 %v1946
          %v1982 = vunpack.c.l.b16 %v1947
          %v1983 = vunpack.c.l.b16 %v1948
          %v1984 = vunpack.c.l.b16 %v1949
          %v1985 = vpack.c.b16 %v1978, %v1977
          %v1986 = vpack.c.b16 %v1980, %v1979
          %v1987 = vpack.c.b16 %v1982, %v1981
          %v1988 = vpack.c.b16 %v1984, %v1983
          %v1994 = vsel %vm1960, %v1968, 0
          %1996 = vmatprep.subr.bf16.mxu0 0
          %1997 = vmatpush1.bf16.msra.mxu0 0
          %1998 = vmatprep.subr.bf16.mxu0 0
          %1999 = vmatpush1.bf16.msra.mxu0 0
          %2000 = vmatprep.subr.bf16.mxu0 0
          %2001 = vmatpush1.bf16.msra.mxu0 0
          %2002 = vmatprep.subr.bf16.mxu0 0
          %2003 = vmatpush1.bf16.msra.mxu0 0
          %2004 = vmatprep.subr.bf16.mxu0 0
          %2005 = vmatpush1.bf16.msra.mxu0 %v1988
          %2006 = vmatprep.subr.bf16.mxu0 0
          %2007 = vmatpush1.bf16.msra.mxu0 %v1987
          %2008 = vmatprep.subr.bf16.mxu0 0
          %2009 = vmatpush1.bf16.msra.mxu0 %v1986
          %2010 = vmatprep.subr.bf16.mxu0 0
          %2011 = vmatpush1.bf16.msra.mxu0 %v1985
          %2012 = vmatprep.subr.bf16.mxu0 0
          %2013 = vmatpush2.bf16.msra.mxu0 0
          %2014 = vmatprep.subr.bf16.mxu0 0
          %2015 = vmatpush2.bf16.msra.mxu0 0
          %2016 = vmatprep.subr.bf16.mxu0 0
          %2017 = vmatpush2.bf16.msra.mxu0 0
          %2018 = vmatprep.subr.bf16.mxu0 0
          %2019 = vmatpush2.bf16.msra.mxu0 0
          %2020 = vmatprep.subr.bf16.mxu0 0
          %2021 = vmatpush2.bf16.msra.mxu0 0
          %2022 = vmatprep.subr.bf16.mxu0 0
          %2023 = vmatpush2.bf16.msra.mxu0 0
          %2024 = vmatprep.subr.bf16.mxu0 0
          %2025 = vmatpush2.bf16.msra.mxu0 0
          %2026 = vmatprep.subr.bf16.mxu0 0
          %2027 = vmatpush2.bf16.msra.mxu0 0
          %2028 = vmatprep.mubr.bf16.mxu0 0
          %2029 = vmatmul.mubr.bf16.gmra.mxu0 %v1994
          %v2030 = vpop.f32.mrf.mxu0
          %v2031 = vadd.f32 %v1822, %v2030
          %v2032 = vpop.f32.mrf.mxu0
          %v2033 = vpop.f32.mrf.mxu0
          %v2034 = vpop.f32.mrf.mxu0
          %2035 = vdwg.mxu0
          %2036 = vst.msk [vmem:[%s462] sm:$0xff] %vm1709, %v2031
        $region72: #{tokenformer_layer_forward.3} parent=59 // pred_fallthru
          _
        %s2037 = sand.u32 %s299, 1
        %s2038 = scalar_lea.sflag [#allocation6], %s2037
        %s2039 = sand.u32 %s299, 1
        %s2040 = smul.addr %s2039, 8
        %s2041 = scalar_lea.vmem [#allocation5], %s2040
        // Predicated region
        $region73: #{tokenformer_layer_forward.3} parent=59 // pred_check
          %p2042 = pneg %p309
        $region74: #{tokenformer_layer_forward.3} parent=59 // pred_check_branch
          %2044 = sbr.rel (%p2042) target = $region76
        $region75: #{tokenformer_layer_forward.3} parent=59 // pred_region
          %s2046 = ssub.s32 128, 128
          %2047 = vsyncadd %s2038, %s2046
          %s2048 = sadd.s32 %s30, %s29
          %s2049 = smul.addr %s2048, 128
          %s2050 = scalar_lea.hbm %s10, %s2049
          %s2052 = sshll.u32 %s2041, 4
          %s2053 = int_to_ptr.vmem [resolvable:$true] %s2052
          %2055 = dma.vmem_to_hbm [thread:$0]  %s2053, 128, %s2050, %s2038
        $region76: #{tokenformer_layer_forward.3} parent=59 // pred_fallthru
          _
      $region60: #{tokenformer_layer_forward.3} parent=5 // pred_fallthru
        _
      %p2056 = scmp.le.s32.totalorder 2, %s19
      // Predicated region
      $region77: #{tokenformer_layer_forward.3} parent=5 // pred_check
        %p2057 = pneg %p2056
      $region78: #{tokenformer_layer_forward.3} parent=5 // pred_check_branch
        %2059 = sbr.rel (%p2057) target = $region80
      $region79: #{tokenformer_layer_forward.3} parent=5 // pred_region
        %s2060 = ssub.s32 %s19, 2
        // Predicated region
        $region81: #{tokenformer_layer_forward.3} parent=79 // pred_check
          %p2061 = pneg %p315
        $region82: #{tokenformer_layer_forward.3} parent=79 // pred_check_branch
          %2063 = sbr.rel (%p2061) target = $region84
        $region83: #{tokenformer_layer_forward.3} parent=79 // pred_region
          %s2064 = sand.u32 %s300, 1
          %s2065 = scalar_lea.sflag [#allocation6], %s2064
          %s2066 = sand.u32 %s300, 1
          %s2067 = smul.addr %s2066, 8
          %s2068 = scalar_lea.vmem [#allocation5], %s2067
          %2069 = dma.done %s2065, 128
        $region84: #{tokenformer_layer_forward.3} parent=79 // pred_fallthru
          _
      $region80: #{tokenformer_layer_forward.3} parent=5 // pred_fallthru
        _
    $region6: #{tokenformer_layer_forward.3} parent=1 // loop_footer
      %s23 = sadd.s32 1, %s19
    $region7: #{tokenformer_layer_forward.3} parent=1 // loop_footer_branch
      %18 = sbr.rel target = $region3
    $region8: #{tokenformer_layer_forward.3} parent=1 // loop_exit
      _
    %2070 = vsyncpa [#allocation6], 1
    %s2071 = scalar_lea.sflag [#allocation6], 1
    %2072 = vsyncpa %s2071, 1

</llo_original>
